<compile_context>
chip_gen: v5e
topology: v5e:2x2
jax: 0.10.0
libtpu: 0.0.40
codegen_flags: <defaults>
</compile_context>

<pallas_src>
import math

import jax
import jax.numpy as jnp
from jax import lax
from jax.experimental import pallas as pl
from jax.experimental.pallas import tpu as pltpu

N_EMBD = 384          # fixed by the module (nn.Linear(n_embd, head_size))
BLOCK_SIZE = 128      # `block_size` from the module (max T for the tril mask)
DROPOUT_P = 0.2       # TODO(synk): dropout is stochastic in train mode; this kernel
                      # implements eval-mode semantics (dropout == identity).


def _head_kernel(x_ref, w_ref, o_ref):
    # x_ref: (Bb, T, C) f32   w_ref: (C, 3H) bf16 (scale folded into q columns)
    # o_ref: (Bb, T, H) f32
    Bb, T, C = x_ref.shape
    H = w_ref.shape[1] // 3

    # Fused QKV projection: one (Bb*T, C) @ (C, 3H) bf16 MXU matmul, f32 accumulate.
    x = x_ref[...].astype(jnp.bfloat16).reshape(Bb * T, C)
    qkv = jnp.dot(x, w_ref[...], preferred_element_type=jnp.float32)   # (Bb*T, 3H)
    qkv = qkv.reshape(Bb, T, 3 * H)

    q = qkv[:, :, 0 * H:1 * H].astype(jnp.bfloat16)   # scale already folded in
    k = qkv[:, :, 1 * H:2 * H].astype(jnp.bfloat16)
    v = qkv[:, :, 2 * H:3 * H].astype(jnp.bfloat16)

    # Attention logits: batched contraction over H (no explicit k transpose).
    wei = jnp.einsum('bqh,bkh->bqk', q, k,
                     preferred_element_type=jnp.float32)               # (Bb, T, T)

    # causal mask: strictly-upper entries -> -inf (diagonal always unmasked, so
    # every row has at least one finite logit and softmax is NaN-free)
    row = lax.broadcasted_iota(jnp.int32, (Bb, T, T), 1)
    col = lax.broadcasted_iota(jnp.int32, (Bb, T, T), 2)
    wei = jnp.where(col <= row, wei, -jnp.inf)

    # numerically stable softmax along last axis (f32)
    m = jnp.max(wei, axis=-1, keepdims=True)
    e = jnp.exp(wei - m)
    s = jnp.sum(e, axis=-1, keepdims=True)
    p = e * pl.reciprocal(s, approx=True)

    # (dropout: identity in eval mode)

    out = jnp.einsum('bqk,bkh->bqh', p.astype(jnp.bfloat16), v,
                     preferred_element_type=jnp.float32)               # (Bb, T, H)
    o_ref[...] = out.astype(o_ref.dtype)


def prepare_head_params(wq, wk, wv, n_embd=N_EMBD):
    """Bake PyTorch-style (H, C) Linear weights into one (C, 3H) bf16 matrix.

    The attention scale C**-0.5 (C == n_embd, exactly as in the PyTorch module —
    NOT head_size**-0.5) is folded into the q columns so the kernel never scales
    the (T, T) logit matrix. Call this once at parameter-load time, not per step.
    """
    scale = float(n_embd) ** -0.5
    w = jnp.concatenate([wq.T * scale, wk.T, wv.T], axis=1)   # (C, 3H)
    return w.astype(jnp.bfloat16)


def _pick_batch_block(B, max_bb=8):
    """Largest divisor of B that is <= max_bb, preferring >= 2 grid steps
    (so both v7x TensorCores are used when the batch axis is 'parallel')."""
    divisors = [d for d in range(1, min(B, max_bb) + 1) if B % d == 0]
    two_step = [d for d in divisors if B // d >= 2]
    return max(two_step) if two_step else max(divisors)


def head_forward(x, w_qkv):
    """x: (B, T, C) f32; w_qkv: pre-baked (C, 3H) bf16 from prepare_head_params."""
    B, T, C = x.shape
    three_h = w_qkv.shape[1]
    H = three_h // 3
    assert C == N_EMBD and w_qkv.shape[0] == C and three_h % 3 == 0
    assert T <= BLOCK_SIZE

    Bb = _pick_batch_block(B)
    grid = (B // Bb,)

    return pl.pallas_call(
        _head_kernel,
        out_shape=jax.ShapeDtypeStruct((B, T, H), x.dtype),
        grid_spec=pltpu.PrefetchScalarGridSpec(
            num_scalar_prefetch=0,
            grid=grid,
            in_specs=[
                pl.BlockSpec((Bb, T, C), lambda i: (i, 0, 0)),      # x batch block
                pl.BlockSpec((C, three_h), lambda i: (0, 0)),       # fused W (resident)
            ],
            out_specs=pl.BlockSpec((Bb, T, H), lambda i: (i, 0, 0)),
        ),
        compiler_params=pltpu.CompilerParams(
            dimension_semantics=("parallel",),
        ),
    )(x, w_qkv)


def reference_forward(x, wq, wk, wv):
    """Pure-JAX f32 reference mirroring the PyTorch forward (eval mode)."""
    B, T, C = x.shape
    q = x @ wq.T
    k = x @ wk.T
    v = x @ wv.T
    wei = (q @ jnp.swapaxes(k, -2, -1)) * (C ** (-0.5))
    mask = jnp.tril(jnp.ones((T, T), dtype=bool))
    wei = jnp.where(mask, wei, -jnp.inf)
    wei = jax.nn.softmax(wei, axis=-1)
    return wei @ v


if __name__ == "__main__":
    B = 8            # blocked Bb=4 per grid step -> 2 parallel steps
    T = 128          # == block_size; any T <= 128 works
    C = N_EMBD       # 384, fixed by the module
    H = 64           # head_size

    key = jax.random.PRNGKey(0)
    kx, kq, kk, kv = jax.random.split(key, 4)

    x = jax.random.normal(kx, (B, T, C), dtype=jnp.float32)
    # deterministic "nn.Linear(n_embd, head_size, bias=False)" weights, shape (H, C)
    bound = 1.0 / math.sqrt(C)
    wq = jax.random.uniform(kq, (H, C), jnp.float32, -bound, bound)
    wk = jax.random.uniform(kk, (H, C), jnp.float32, -bound, bound)
    wv = jax.random.uniform(kv, (H, C), jnp.float32, -bound, bound)

    # Fold / transpose / cast the weights ONCE (parameter-load time), not per call.
    w_qkv = prepare_head_params(wq, wk, wv)

    out = head_forward(x, w_qkv)
    out = jax.block_until_ready(out)

    ref = reference_forward(x, wq, wk, wv)
    assert out.shape == (B, T, H)
    # bf16 MXU operands -> relaxed tolerance vs. the pure-f32 reference
    assert jnp.allclose(out, ref, atol=2e-2, rtol=2e-2), "mismatch vs reference"

    print("KERNEL_OK")
</pallas_src>

<mosaic_0001>
module attributes {stable_mosaic.version = 11 : i64} {
  func.func @_head_kernel(%arg0: i32, %arg1: memref<4x128x384xf32, #tpu.memory_space<vmem>>, %arg2: memref<384x192xbf16, #tpu.memory_space<vmem>>, %arg3: memref<4x128x64xf32, #tpu.memory_space<vmem>>) attributes {dimension_semantics = [#tpu.dimension_semantics<parallel>], iteration_bounds = array<i64: 2>, scalar_prefetch = 0 : i64, scratch_operands = 0 : i64, tpu.core_type = #tpu.core_type<tc>, window_params = [{transform_indices = @transform_0, window_bounds = array<i64: 4, 128, 384>}, {pipeline_mode = #tpu.pipeline_mode<synchronous>, transform_indices = @transform_1, window_bounds = array<i64: 384, 192>}, {transform_indices = @transform_2, window_bounds = array<i64: 4, 128, 64>}]} {
    %c0 = arith.constant 0 : index
    %c0_0 = arith.constant 0 : index
    %c0_1 = arith.constant 0 : index
    %0 = vector.load %arg1[%c0, %c0_0, %c0_1] : memref<4x128x384xf32, #tpu.memory_space<vmem>>, vector<4x128x384xf32>
    %1 = arith.truncf %0 : vector<4x128x384xf32> to vector<4x128x384xbf16>
    %2 = vector.shape_cast %1 : vector<4x128x384xbf16> to vector<512x384xbf16>
    %c0_2 = arith.constant 0 : index
    %c0_3 = arith.constant 0 : index
    %3 = vector.load %arg2[%c0_2, %c0_3] : memref<384x192xbf16, #tpu.memory_space<vmem>>, vector<384x192xbf16>
    %cst = arith.constant dense<0.000000e+00> : vector<512x192xf32>
    %4 = tpu.matmul %2, %3, %cst {dimension_numbers = #tpu.dot_dimension_numbers<[1], [0], [0], [1], [0, 0, 1, 1], [], []>} : vector<512x384xbf16>, vector<384x192xbf16>, vector<512x192xf32> -> vector<512x192xf32>
    %5 = vector.shape_cast %4 : vector<512x192xf32> to vector<4x128x192xf32>
    %6 = vector.extract_strided_slice %5 {offsets = [0, 0, 0], sizes = [4, 128, 64], strides = [1, 1, 1]} : vector<4x128x192xf32> to vector<4x128x64xf32>
    %7 = arith.truncf %6 : vector<4x128x64xf32> to vector<4x128x64xbf16>
    %8 = vector.extract_strided_slice %5 {offsets = [0, 0, 64], sizes = [4, 128, 64], strides = [1, 1, 1]} : vector<4x128x192xf32> to vector<4x128x64xf32>
    %9 = arith.truncf %8 : vector<4x128x64xf32> to vector<4x128x64xbf16>
    %10 = vector.extract_strided_slice %5 {offsets = [0, 0, 128], sizes = [4, 128, 64], strides = [1, 1, 1]} : vector<4x128x192xf32> to vector<4x128x64xf32>
    %11 = arith.truncf %10 : vector<4x128x64xf32> to vector<4x128x64xbf16>
    "tpu.trace_start"() <{level = 10 : i32, message = "bqh,bkh->bqk"}> : () -> ()
    %cst_4 = arith.constant dense<0.000000e+00> : vector<4x128x128xf32>
    %12 = tpu.matmul %7, %9, %cst_4 {dimension_numbers = #tpu.dot_dimension_numbers<[2], [2], [1], [1], [0, 0, 0, 1, 1, 1], [0], [0]>} : vector<4x128x64xbf16>, vector<4x128x64xbf16>, vector<4x128x128xf32> -> vector<4x128x128xf32>
    "tpu.trace_stop"() : () -> ()
    %13 = tpu.iota {dimensions = array<i32: 1>} : vector<4x128x128xi32>
    %14 = tpu.iota {dimensions = array<i32: 2>} : vector<4x128x128xi32>
    %15 = arith.cmpi sle, %14, %13 : vector<4x128x128xi32>
    %cst_5 = arith.constant 0xFF800000 : f32
    %16 = vector.broadcast %cst_5 : f32 to vector<4x128x128xf32>
    %17 = arith.select %15, %12, %16 : vector<4x128x128xi1>, vector<4x128x128xf32>
    %cst_6 = arith.constant dense<0xFF800000> : vector<4x128xf32>
    %18 = vector.multi_reduction <maximumf>, %17, %cst_6 [2] : vector<4x128x128xf32> to vector<4x128xf32>
    %19 = vector.shape_cast %18 : vector<4x128xf32> to vector<4x128x1xf32>
    %20 = vector.broadcast %19 : vector<4x128x1xf32> to vector<4x128x128xf32>
    %21 = arith.subf %17, %20 : vector<4x128x128xf32>
    %22 = math.exp %21 : vector<4x128x128xf32>
    %cst_7 = arith.constant dense<0.000000e+00> : vector<4x128xf32>
    %23 = vector.multi_reduction <add>, %22, %cst_7 [2] : vector<4x128x128xf32> to vector<4x128xf32>
    %24 = vector.shape_cast %23 : vector<4x128xf32> to vector<4x128x1xf32>
    %25 = tpu.reciprocal %24 {approx = true} : vector<4x128x1xf32> -> vector<4x128x1xf32>
    %26 = vector.broadcast %25 : vector<4x128x1xf32> to vector<4x128x128xf32>
    %27 = arith.mulf %22, %26 : vector<4x128x128xf32>
    %28 = arith.truncf %27 : vector<4x128x128xf32> to vector<4x128x128xbf16>
    "tpu.trace_start"() <{level = 10 : i32, message = "bqk,bkh->bqh"}> : () -> ()
    %cst_8 = arith.constant dense<0.000000e+00> : vector<4x128x64xf32>
    %29 = tpu.matmul %28, %11, %cst_8 {dimension_numbers = #tpu.dot_dimension_numbers<[2], [1], [1], [2], [0, 0, 0, 1, 1, 2], [0], [0]>} : vector<4x128x128xbf16>, vector<4x128x64xbf16>, vector<4x128x64xf32> -> vector<4x128x64xf32>
    "tpu.trace_stop"() : () -> ()
    %c0_9 = arith.constant 0 : index
    %c0_10 = arith.constant 0 : index
    %c0_11 = arith.constant 0 : index
    %30 = vector.load %arg3[%c0_9, %c0_10, %c0_11] : memref<4x128x64xf32, #tpu.memory_space<vmem>>, vector<4x128x64xf32>
    tpu.vector_store %arg3[%c0_9, %c0_10, %c0_11], %29 {strides = array<i32>} : memref<4x128x64xf32, #tpu.memory_space<vmem>>, vector<4x128x64xf32>,
    return
  }
  func.func @transform_0(%arg0: i32) -> (i32, i32, i32) {
    %c0_i32 = arith.constant 0 : i32
    %c0_i32_0 = arith.constant 0 : i32
    %c0_i32_1 = arith.constant 0 : i32
    return %arg0, %c0_i32, %c0_i32_0 : i32, i32, i32
  }
  func.func @transform_1(%arg0: i32) -> (i32, i32) {
    %c0_i32 = arith.constant 0 : i32
    %c0_i32_0 = arith.constant 0 : i32
    %c0_i32_1 = arith.constant 0 : i32
    return %c0_i32, %c0_i32_0 : i32, i32
  }
  func.func @transform_2(%arg0: i32) -> (i32, i32, i32) {
    %c0_i32 = arith.constant 0 : i32
    %c0_i32_0 = arith.constant 0 : i32
    %c0_i32_1 = arith.constant 0 : i32
    return %arg0, %c0_i32, %c0_i32_0 : i32, i32, i32
  }
}

</mosaic_0001>

<llo_original>
// kernel: tpu_custom_call.1
$region0: #{tpu_custom_call.1}
  #allocation0 [shape = 'u32[]', space=smem, size = 0x4, offset = 0x4, fixed_abs, tag = 'smem constant byte address 0x4 - core index']
  #allocation1 [shape = 'u32[72,128]{1,0:T(1,128)}', space=vmem, size = 0x9000, scoped, tag = 'internal scratch']
  %s0 = inlined_call_operand.hbm [shape: f32[8,128,384], index: 0, kind: input, shape index: {}]
  %s1 = inlined_call_operand.vmem [shape: bf16[384,192], index: 1, kind: input, shape index: {}]
  %s2 = inlined_call_operand.vmem [shape: f32[8,128,64], index: 2, kind: output, shape index: {}]
  %s3 = sld [smem:[#allocation0]]
  $region45: #{tpu_custom_call.1} parent=0
    _
  %s5 = ssub.s32 1, %s3
  %s6 = scalar_select 0, %s5, %s3
  $region1: #{tpu_custom_call.1} parent=0
    #allocation2 [shape = 'u8[1572864]{0}', space=vmem, size = 0x180000, scoped, tag = 'input window, operand 0']
    #allocation3 [shape = 's32[2]{0}', space=sflag, size = 0x8, scoped, tag = 'scoped memory for tpu_custom_call.1']
    %7 = vsyncpa [#allocation3], 0
    %s8 = scalar_lea.sflag [#allocation3], 1
    %9 = vsyncpa %s8, 0
    loop: start=0, step=1, limit=4
    $region2: #{tpu_custom_call.1} parent=1 // loop_pre_header
      _
    $region3: #{tpu_custom_call.1} parent=1 // loop_header
      %s11 = sphi 0, %s15
      %p12 = scmp.ge.s32.totalorder %s11, 4
      %s21 = sphi 0, %s23
      %s24 = sphi 0, %s21
      %s25 = sphi 0, %s24
      %s41 = sphi 0, %s25
      %s45 = sphi 0, %s45
      %s47 = sphi 0, %s45
      %s48 = sphi 0, %s47
      %s62 = sphi 0, %s48
      %s68 = sphi 0, %s70
      %s71 = sphi 0, %s68
      %s72 = sphi 0, %s71
      %s88 = sphi 0, %s72
    $region4: #{tpu_custom_call.1} parent=1 // loop_header_branch
      %14 = sbr.rel (%p12) target = $region8
    $region5: #{tpu_custom_call.1} parent=1 // loop_body
      %s16 = ssub.s32 %s11, 1
      %s17 = ssub.s32 %s11, 2
      %s18 = sadd.s32 %s11, 1
      %s19 = ssub.s32 %s11, %s18
      %p20 = scmp.eq.s32.totalorder %s19, 0
      %s22 = sadd.s32 %s21, 1
      %s23 = scalar_select %p20, %s21, %s22
      %p26 = pneg %p20
      %p27 = scmp.eq.s32.totalorder %s11, 1
      %p28 = por %p26, %p27
      %p29 = scmp.ne.s32.totalorder %s21, %s24
      %p30 = scmp.eq.s32.totalorder %s11, 0
      %p31 = por %p29, %p30
      %p32 = scmp.ne.s32.totalorder %s21, %s24
      %p33 = scmp.eq.s32.totalorder %s16, 1
      %p34 = por %p32, %p33
      %p35 = scmp.ne.s32.totalorder %s24, %s25
      %p36 = scmp.eq.s32.totalorder %s16, 0
      %p37 = por %p35, %p36
      %p38 = scmp.ne.s32.totalorder %s24, %s25
      %p39 = scmp.eq.s32.totalorder %s17, 1
      %p40 = por %p38, %p39
      %p42 = scmp.ne.s32.totalorder %s25, %s41
      %p43 = scmp.eq.s32.totalorder %s17, 0
      %p44 = por %p42, %p43
      %s46 = sadd.s32 %s45, 1
      %p49 = scmp.eq.s32.totalorder %s11, 1
      %p50 = scmp.ne.s32.totalorder %s45, %s47
      %p51 = scmp.eq.s32.totalorder %s11, 0
      %p52 = por %p50, %p51
      %p53 = scmp.ne.s32.totalorder %s45, %s47
      %p54 = scmp.eq.s32.totalorder %s16, 1
      %p55 = por %p53, %p54
      %p56 = scmp.ne.s32.totalorder %s47, %s48
      %p57 = scmp.eq.s32.totalorder %s16, 0
      %p58 = por %p56, %p57
      %p59 = scmp.ne.s32.totalorder %s47, %s48
      %p60 = scmp.eq.s32.totalorder %s17, 1
      %p61 = por %p59, %p60
      %p63 = scmp.ne.s32.totalorder %s48, %s62
      %p64 = scmp.eq.s32.totalorder %s17, 0
      %p65 = por %p63, %p64
      %s66 = ssub.s32 %s11, %s18
      %p67 = scmp.eq.s32.totalorder %s66, 0
      %s69 = sadd.s32 %s68, 1
      %s70 = scalar_select %p67, %s68, %s69
      %p73 = pneg %p67
      %p74 = scmp.eq.s32.totalorder %s11, 1
      %p75 = por %p73, %p74
      %p76 = scmp.ne.s32.totalorder %s68, %s71
      %p77 = scmp.eq.s32.totalorder %s11, 0
      %p78 = por %p76, %p77
      %p79 = scmp.ne.s32.totalorder %s68, %s71
      %p80 = scmp.eq.s32.totalorder %s16, 1
      %p81 = por %p79, %p80
      %p82 = scmp.ne.s32.totalorder %s71, %s72
      %p83 = scmp.eq.s32.totalorder %s16, 0
      %p84 = por %p82, %p83
      %p85 = scmp.ne.s32.totalorder %s71, %s72
      %p86 = scmp.eq.s32.totalorder %s17, 1
      %p87 = por %p85, %p86
      %p89 = scmp.ne.s32.totalorder %s72, %s88
      %p90 = scmp.eq.s32.totalorder %s17, 0
      %p91 = por %p89, %p90
      %p92 = scmp.le.s32.totalorder 1, %s11
      %p93 = scmp.lt.s32.totalorder %s11, 3
      %p94 = pnand %p92, %p93
      %p95 = pneg %p94
      // Predicated region
      $region9: #{tpu_custom_call.1} parent=5 // pred_check
        _
      $region10: #{tpu_custom_call.1} parent=5 // pred_check_branch
        %97 = sbr.rel (%p94) target = $region12
      $region11: #{tpu_custom_call.1} parent=5 // pred_region
        %s98 = ssub.s32 %s11, 1
        // Predicated region
        $region13: #{tpu_custom_call.1} parent=11 // pred_check
          %p99 = pneg %p58
        $region14: #{tpu_custom_call.1} parent=11 // pred_check_branch
          %101 = sbr.rel (%p99) target = $region16
        $region15: #{tpu_custom_call.1} parent=11 // pred_region
          _
        $region16: #{tpu_custom_call.1} parent=11 // pred_fallthru
          _
      $region12: #{tpu_custom_call.1} parent=5 // pred_fallthru
        _
      %p102 = scmp.lt.s32.totalorder %s11, 2
      // Predicated region
      $region17: #{tpu_custom_call.1} parent=5 // pred_check
        %p103 = pneg %p102
      $region18: #{tpu_custom_call.1} parent=5 // pred_check_branch
        %105 = sbr.rel (%p103) target = $region20
      $region19: #{tpu_custom_call.1} parent=5 // pred_region
        // Predicated region
        $region21: #{tpu_custom_call.1} parent=19 // pred_check
          %p106 = pneg %p31
        $region22: #{tpu_custom_call.1} parent=19 // pred_check_branch
          %108 = sbr.rel (%p106) target = $region24
        $region23: #{tpu_custom_call.1} parent=19 // pred_region
          %s109 = sand.u32 %s21, 1
          %s110 = scalar_lea.sflag [#allocation3], %s109
          %s111 = sand.u32 %s21, 1
          %s112 = smul.addr %s111, 1536
          %s113 = scalar_lea.vmem [#allocation2], %s112
          %s114 = smul.u32 4, %s11
          %116 = vsyncadd %s110, 0
          %s117 = smul.addr %s114, 48
          %s118 = smul.addr %s117, 8
          %s119 = scalar_lea.hbm %s0, %s118
          %s120 = sshll.u32 %s119, 4
          %s121 = int_to_ptr.hbm [resolvable:$true] %s120
          %s122 = sshll.u32 %s113, 4
          %s123 = int_to_ptr.vmem [resolvable:$true] %s122
          %128 = dma.hbm_to_vmem [thread:$0]  %s121, 24576, %s123, %s110, 384, 384, 24
        $region24: #{tpu_custom_call.1} parent=19 // pred_fallthru
          _
      $region20: #{tpu_custom_call.1} parent=5 // pred_fallthru
        _
      %p129 = scmp.le.s32.totalorder 1, %s11
      %p130 = scmp.lt.s32.totalorder %s11, 3
      %p131 = pnand %p129, %p130
      %p132 = pneg %p131
      // Predicated region
      $region25: #{tpu_custom_call.1} parent=5 // pred_check
        _
      $region26: #{tpu_custom_call.1} parent=5 // pred_check_branch
        %134 = sbr.rel (%p131) target = $region28
      $region27: #{tpu_custom_call.1} parent=5 // pred_region
        %s135 = ssub.s32 %s11, 1
        %s136 = sand.u32 %s24, 1
        %s137 = scalar_lea.sflag [#allocation3], %s136
        %s138 = sand.u32 %s24, 1
        %s139 = smul.addr %s138, 1536
        %s140 = scalar_lea.vmem [#allocation2], %s139
        // Predicated region
        $region29: #{tpu_custom_call.1} parent=27 // pred_check
          %p141 = pneg %p37
        $region30: #{tpu_custom_call.1} parent=27 // pred_check_branch
          %143 = sbr.rel (%p141) target = $region32
        $region31: #{tpu_custom_call.1} parent=27 // pred_region
          %145 = dma.done %s137, 24576
        $region32: #{tpu_custom_call.1} parent=27 // pred_fallthru
          _
        %s146 = sand.u32 %s24, 1
        %s147 = scalar_lea.sflag [#allocation3], %s146
        %s148 = sand.u32 %s24, 1
        %s149 = smul.addr %s148, 1536
        %s150 = scalar_lea.vmem [#allocation2], %s149
        %p151 = pneg %p37
        %p152 = pneg %p34
        %p153 = pneg %p58
        %p154 = pneg %p55
        %p155 = pneg %p84
        %p156 = pneg %p81
        %s157 = smul.u32 4, %s16
        %p158 = scmp.lt.s32.totalorder %s157, 7
        %s159 = scalar_select %p158, %s157, 7
        %s160 = smul.addr %s159, 16
        %s161 = smul.addr %s160, 8
        %s162 = scalar_lea.vmem %s2, %s161
        %s163 = smul.u32 4, %s16
        %s164 = smul.u32 4, %s16
        %p165 = scmp.lt.s32.totalorder %s164, 7
        %s166 = scalar_select %p165, %s164, 7
        %s167 = smul.addr %s166, 16
        %s168 = smul.addr %s167, 8
        %s169 = scalar_lea.vmem %s2, %s168
        %s170 = smul.u32 4, %s16
        %v171 = vld [vmem:[%s140] sm:$0xff]
        %v172 = vld [vmem:[%s140 + $0x8] sm:$0xff]
        %v173 = vld [vmem:[%s140 + $0x10] sm:$0xff]
        %v174 = vld [vmem:[%s140 + $0x18] sm:$0xff]
        %v175 = vld [vmem:[%s140 + $0x20] sm:$0xff]
        %v176 = vld [vmem:[%s140 + $0x28] sm:$0xff]
        %v177 = vld [vmem:[%s140 + $0x30] sm:$0xff]
        %v178 = vld [vmem:[%s140 + $0x38] sm:$0xff]
        %v179 = vld [vmem:[%s140 + $0x40] sm:$0xff]
        %v180 = vld [vmem:[%s140 + $0x48] sm:$0xff]
        %v181 = vld [vmem:[%s140 + $0x50] sm:$0xff]
        %v182 = vld [vmem:[%s140 + $0x58] sm:$0xff]
        %v183 = vld [vmem:[%s140 + $0x60] sm:$0xff]
        %v184 = vld [vmem:[%s140 + $0x68] sm:$0xff]
        %v185 = vld [vmem:[%s140 + $0x70] sm:$0xff]
        %v186 = vld [vmem:[%s140 + $0x78] sm:$0xff]
        %v187 = vld [vmem:[%s140 + $0x80] sm:$0xff]
        %v188 = vld [vmem:[%s140 + $0x88] sm:$0xff]
        %v189 = vld [vmem:[%s140 + $0x90] sm:$0xff]
        %v190 = vld [vmem:[%s140 + $0x98] sm:$0xff]
        %v191 = vld [vmem:[%s140 + $0xa0] sm:$0xff]
        %v192 = vld [vmem:[%s140 + $0xa8] sm:$0xff]
        %v193 = vld [vmem:[%s140 + $0xb0] sm:$0xff]
        %v194 = vld [vmem:[%s140 + $0xb8] sm:$0xff]
        %v195 = vld [vmem:[%s140 + $0xc0] sm:$0xff]
        %v196 = vld [vmem:[%s140 + $0xc8] sm:$0xff]
        %v197 = vld [vmem:[%s140 + $0xd0] sm:$0xff]
        %v198 = vld [vmem:[%s140 + $0xd8] sm:$0xff]
        %v199 = vld [vmem:[%s140 + $0xe0] sm:$0xff]
        %v200 = vld [vmem:[%s140 + $0xe8] sm:$0xff]
        %v201 = vld [vmem:[%s140 + $0xf0] sm:$0xff]
        %v202 = vld [vmem:[%s140 + $0xf8] sm:$0xff]
        %v203 = vld [vmem:[%s140 + $0x100] sm:$0xff]
        %v204 = vld [vmem:[%s140 + $0x108] sm:$0xff]
        %v205 = vld [vmem:[%s140 + $0x110] sm:$0xff]
        %v206 = vld [vmem:[%s140 + $0x118] sm:$0xff]
        %v207 = vld [vmem:[%s140 + $0x120] sm:$0xff]
        %v208 = vld [vmem:[%s140 + $0x128] sm:$0xff]
        %v209 = vld [vmem:[%s140 + $0x130] sm:$0xff]
        %v210 = vld [vmem:[%s140 + $0x138] sm:$0xff]
        %v211 = vld [vmem:[%s140 + $0x140] sm:$0xff]
        %v212 = vld [vmem:[%s140 + $0x148] sm:$0xff]
        %v213 = vld [vmem:[%s140 + $0x150] sm:$0xff]
        %v214 = vld [vmem:[%s140 + $0x158] sm:$0xff]
        %v215 = vld [vmem:[%s140 + $0x160] sm:$0xff]
        %v216 = vld [vmem:[%s140 + $0x168] sm:$0xff]
        %v217 = vld [vmem:[%s140 + $0x170] sm:$0xff]
        %v218 = vld [vmem:[%s140 + $0x178] sm:$0xff]
        %v219 = vld [vmem:[%s140 + $0x180] sm:$0xff]
        %v220 = vld [vmem:[%s140 + $0x188] sm:$0xff]
        %v221 = vld [vmem:[%s140 + $0x190] sm:$0xff]
        %v222 = vld [vmem:[%s140 + $0x198] sm:$0xff]
        %v223 = vld [vmem:[%s140 + $0x1a0] sm:$0xff]
        %v224 = vld [vmem:[%s140 + $0x1a8] sm:$0xff]
        %v225 = vld [vmem:[%s140 + $0x1b0] sm:$0xff]
        %v226 = vld [vmem:[%s140 + $0x1b8] sm:$0xff]
        %v227 = vld [vmem:[%s140 + $0x1c0] sm:$0xff]
        %v228 = vld [vmem:[%s140 + $0x1c8] sm:$0xff]
        %v229 = vld [vmem:[%s140 + $0x1d0] sm:$0xff]
        %v230 = vld [vmem:[%s140 + $0x1d8] sm:$0xff]
        %v231 = vld [vmem:[%s140 + $0x1e0] sm:$0xff]
        %v232 = vld [vmem:[%s140 + $0x1e8] sm:$0xff]
        %v233 = vld [vmem:[%s140 + $0x1f0] sm:$0xff]
        %v234 = vld [vmem:[%s140 + $0x1f8] sm:$0xff]
        %v235 = vld [vmem:[%s140 + $0x200] sm:$0xff]
        %v236 = vld [vmem:[%s140 + $0x208] sm:$0xff]
        %v237 = vld [vmem:[%s140 + $0x210] sm:$0xff]
        %v238 = vld [vmem:[%s140 + $0x218] sm:$0xff]
        %v239 = vld [vmem:[%s140 + $0x220] sm:$0xff]
        %v240 = vld [vmem:[%s140 + $0x228] sm:$0xff]
        %v241 = vld [vmem:[%s140 + $0x230] sm:$0xff]
        %v242 = vld [vmem:[%s140 + $0x238] sm:$0xff]
        %v243 = vld [vmem:[%s140 + $0x240] sm:$0xff]
        %v244 = vld [vmem:[%s140 + $0x248] sm:$0xff]
        %v245 = vld [vmem:[%s140 + $0x250] sm:$0xff]
        %v246 = vld [vmem:[%s140 + $0x258] sm:$0xff]
        %v247 = vld [vmem:[%s140 + $0x260] sm:$0xff]
        %v248 = vld [vmem:[%s140 + $0x268] sm:$0xff]
        %v249 = vld [vmem:[%s140 + $0x270] sm:$0xff]
        %v250 = vld [vmem:[%s140 + $0x278] sm:$0xff]
        %v251 = vld [vmem:[%s140 + $0x280] sm:$0xff]
        %v252 = vld [vmem:[%s140 + $0x288] sm:$0xff]
        %v253 = vld [vmem:[%s140 + $0x290] sm:$0xff]
        %v254 = vld [vmem:[%s140 + $0x298] sm:$0xff]
        %v255 = vld [vmem:[%s140 + $0x2a0] sm:$0xff]
        %v256 = vld [vmem:[%s140 + $0x2a8] sm:$0xff]
        %v257 = vld [vmem:[%s140 + $0x2b0] sm:$0xff]
        %v258 = vld [vmem:[%s140 + $0x2b8] sm:$0xff]
        %v259 = vld [vmem:[%s140 + $0x2c0] sm:$0xff]
        %v260 = vld [vmem:[%s140 + $0x2c8] sm:$0xff]
        %v261 = vld [vmem:[%s140 + $0x2d0] sm:$0xff]
        %v262 = vld [vmem:[%s140 + $0x2d8] sm:$0xff]
        %v263 = vld [vmem:[%s140 + $0x2e0] sm:$0xff]
        %v264 = vld [vmem:[%s140 + $0x2e8] sm:$0xff]
        %v265 = vld [vmem:[%s140 + $0x2f0] sm:$0xff]
        %v266 = vld [vmem:[%s140 + $0x2f8] sm:$0xff]
        %v267 = vld [vmem:[%s140 + $0x300] sm:$0xff]
        %v268 = vld [vmem:[%s140 + $0x308] sm:$0xff]
        %v269 = vld [vmem:[%s140 + $0x310] sm:$0xff]
        %v270 = vld [vmem:[%s140 + $0x318] sm:$0xff]
        %v271 = vld [vmem:[%s140 + $0x320] sm:$0xff]
        %v272 = vld [vmem:[%s140 + $0x328] sm:$0xff]
        %v273 = vld [vmem:[%s140 + $0x330] sm:$0xff]
        %v274 = vld [vmem:[%s140 + $0x338] sm:$0xff]
        %v275 = vld [vmem:[%s140 + $0x340] sm:$0xff]
        %v276 = vld [vmem:[%s140 + $0x348] sm:$0xff]
        %v277 = vld [vmem:[%s140 + $0x350] sm:$0xff]
        %v278 = vld [vmem:[%s140 + $0x358] sm:$0xff]
        %v279 = vld [vmem:[%s140 + $0x360] sm:$0xff]
        %v280 = vld [vmem:[%s140 + $0x368] sm:$0xff]
        %v281 = vld [vmem:[%s140 + $0x370] sm:$0xff]
        %v282 = vld [vmem:[%s140 + $0x378] sm:$0xff]
        %v283 = vld [vmem:[%s140 + $0x380] sm:$0xff]
        %v284 = vld [vmem:[%s140 + $0x388] sm:$0xff]
        %v285 = vld [vmem:[%s140 + $0x390] sm:$0xff]
        %v286 = vld [vmem:[%s140 + $0x398] sm:$0xff]
        %v287 = vld [vmem:[%s140 + $0x3a0] sm:$0xff]
        %v288 = vld [vmem:[%s140 + $0x3a8] sm:$0xff]
        %v289 = vld [vmem:[%s140 + $0x3b0] sm:$0xff]
        %v290 = vld [vmem:[%s140 + $0x3b8] sm:$0xff]
        %v291 = vld [vmem:[%s140 + $0x3c0] sm:$0xff]
        %v292 = vld [vmem:[%s140 + $0x3c8] sm:$0xff]
        %v293 = vld [vmem:[%s140 + $0x3d0] sm:$0xff]
        %v294 = vld [vmem:[%s140 + $0x3d8] sm:$0xff]
        %v295 = vld [vmem:[%s140 + $0x3e0] sm:$0xff]
        %v296 = vld [vmem:[%s140 + $0x3e8] sm:$0xff]
        %v297 = vld [vmem:[%s140 + $0x3f0] sm:$0xff]
        %v298 = vld [vmem:[%s140 + $0x3f8] sm:$0xff]
        %v299 = vld [vmem:[%s140 + $0x400] sm:$0xff]
        %v300 = vld [vmem:[%s140 + $0x408] sm:$0xff]
        %v301 = vld [vmem:[%s140 + $0x410] sm:$0xff]
        %v302 = vld [vmem:[%s140 + $0x418] sm:$0xff]
        %v303 = vld [vmem:[%s140 + $0x420] sm:$0xff]
        %v304 = vld [vmem:[%s140 + $0x428] sm:$0xff]
        %v305 = vld [vmem:[%s140 + $0x430] sm:$0xff]
        %v306 = vld [vmem:[%s140 + $0x438] sm:$0xff]
        %v307 = vld [vmem:[%s140 + $0x440] sm:$0xff]
        %v308 = vld [vmem:[%s140 + $0x448] sm:$0xff]
        %v309 = vld [vmem:[%s140 + $0x450] sm:$0xff]
        %v310 = vld [vmem:[%s140 + $0x458] sm:$0xff]
        %v311 = vld [vmem:[%s140 + $0x460] sm:$0xff]
        %v312 = vld [vmem:[%s140 + $0x468] sm:$0xff]
        %v313 = vld [vmem:[%s140 + $0x470] sm:$0xff]
        %v314 = vld [vmem:[%s140 + $0x478] sm:$0xff]
        %v315 = vld [vmem:[%s140 + $0x480] sm:$0xff]
        %v316 = vld [vmem:[%s140 + $0x488] sm:$0xff]
        %v317 = vld [vmem:[%s140 + $0x490] sm:$0xff]
        %v318 = vld [vmem:[%s140 + $0x498] sm:$0xff]
        %v319 = vld [vmem:[%s140 + $0x4a0] sm:$0xff]
        %v320 = vld [vmem:[%s140 + $0x4a8] sm:$0xff]
        %v321 = vld [vmem:[%s140 + $0x4b0] sm:$0xff]
        %v322 = vld [vmem:[%s140 + $0x4b8] sm:$0xff]
        %v323 = vld [vmem:[%s140 + $0x4c0] sm:$0xff]
        %v324 = vld [vmem:[%s140 + $0x4c8] sm:$0xff]
        %v325 = vld [vmem:[%s140 + $0x4d0] sm:$0xff]
        %v326 = vld [vmem:[%s140 + $0x4d8] sm:$0xff]
        %v327 = vld [vmem:[%s140 + $0x4e0] sm:$0xff]
        %v328 = vld [vmem:[%s140 + $0x4e8] sm:$0xff]
        %v329 = vld [vmem:[%s140 + $0x4f0] sm:$0xff]
        %v330 = vld [vmem:[%s140 + $0x4f8] sm:$0xff]
        %v331 = vld [vmem:[%s140 + $0x500] sm:$0xff]
        %v332 = vld [vmem:[%s140 + $0x508] sm:$0xff]
        %v333 = vld [vmem:[%s140 + $0x510] sm:$0xff]
        %v334 = vld [vmem:[%s140 + $0x518] sm:$0xff]
        %v335 = vld [vmem:[%s140 + $0x520] sm:$0xff]
        %v336 = vld [vmem:[%s140 + $0x528] sm:$0xff]
        %v337 = vld [vmem:[%s140 + $0x530] sm:$0xff]
        %v338 = vld [vmem:[%s140 + $0x538] sm:$0xff]
        %v339 = vld [vmem:[%s140 + $0x540] sm:$0xff]
        %v340 = vld [vmem:[%s140 + $0x548] sm:$0xff]
        %v341 = vld [vmem:[%s140 + $0x550] sm:$0xff]
        %v342 = vld [vmem:[%s140 + $0x558] sm:$0xff]
        %v343 = vld [vmem:[%s140 + $0x560] sm:$0xff]
        %v344 = vld [vmem:[%s140 + $0x568] sm:$0xff]
        %v345 = vld [vmem:[%s140 + $0x570] sm:$0xff]
        %v346 = vld [vmem:[%s140 + $0x578] sm:$0xff]
        %v347 = vld [vmem:[%s140 + $0x580] sm:$0xff]
        %v348 = vld [vmem:[%s140 + $0x588] sm:$0xff]
        %v349 = vld [vmem:[%s140 + $0x590] sm:$0xff]
        %v350 = vld [vmem:[%s140 + $0x598] sm:$0xff]
        %v351 = vld [vmem:[%s140 + $0x5a0] sm:$0xff]
        %v352 = vld [vmem:[%s140 + $0x5a8] sm:$0xff]
        %v353 = vld [vmem:[%s140 + $0x5b0] sm:$0xff]
        %v354 = vld [vmem:[%s140 + $0x5b8] sm:$0xff]
        %v355 = vld [vmem:[%s140 + $0x5c0] sm:$0xff]
        %v356 = vld [vmem:[%s140 + $0x5c8] sm:$0xff]
        %v357 = vld [vmem:[%s140 + $0x5d0] sm:$0xff]
        %v358 = vld [vmem:[%s140 + $0x5d8] sm:$0xff]
        %v359 = vld [vmem:[%s140 + $0x5e0] sm:$0xff]
        %v360 = vld [vmem:[%s140 + $0x5e8] sm:$0xff]
        %v361 = vld [vmem:[%s140 + $0x5f0] sm:$0xff]
        %v362 = vld [vmem:[%s140 + $0x5f8] sm:$0xff]
        %v363 = vpack.c.bf16 %v172, %v171
        %v364 = vpack.c.bf16 %v173, %v173
        %v365 = vpack.c.bf16 %v175, %v174
        %v366 = vpack.c.bf16 %v176, %v176
        %v367 = vpack.c.bf16 %v178, %v177
        %v368 = vpack.c.bf16 %v179, %v179
        %v369 = vpack.c.bf16 %v181, %v180
        %v370 = vpack.c.bf16 %v182, %v182
        %v371 = vpack.c.bf16 %v184, %v183
        %v372 = vpack.c.bf16 %v185, %v185
        %v373 = vpack.c.bf16 %v187, %v186
        %v374 = vpack.c.bf16 %v188, %v188
        %v375 = vpack.c.bf16 %v190, %v189
        %v376 = vpack.c.bf16 %v191, %v191
        %v377 = vpack.c.bf16 %v193, %v192
        %v378 = vpack.c.bf16 %v194, %v194
        %v379 = vpack.c.bf16 %v196, %v195
        %v380 = vpack.c.bf16 %v197, %v197
        %v381 = vpack.c.bf16 %v199, %v198
        %v382 = vpack.c.bf16 %v200, %v200
        %v383 = vpack.c.bf16 %v202, %v201
        %v384 = vpack.c.bf16 %v203, %v203
        %v385 = vpack.c.bf16 %v205, %v204
        %v386 = vpack.c.bf16 %v206, %v206
        %v387 = vpack.c.bf16 %v208, %v207
        %v388 = vpack.c.bf16 %v209, %v209
        %v389 = vpack.c.bf16 %v211, %v210
        %v390 = vpack.c.bf16 %v212, %v212
        %v391 = vpack.c.bf16 %v214, %v213
        %v392 = vpack.c.bf16 %v215, %v215
        %v393 = vpack.c.bf16 %v217, %v216
        %v394 = vpack.c.bf16 %v218, %v218
        %v395 = vpack.c.bf16 %v220, %v219
        %v396 = vpack.c.bf16 %v221, %v221
        %v397 = vpack.c.bf16 %v223, %v222
        %v398 = vpack.c.bf16 %v224, %v224
        %v399 = vpack.c.bf16 %v226, %v225
        %v400 = vpack.c.bf16 %v227, %v227
        %v401 = vpack.c.bf16 %v229, %v228
        %v402 = vpack.c.bf16 %v230, %v230
        %v403 = vpack.c.bf16 %v232, %v231
        %v404 = vpack.c.bf16 %v233, %v233
        %v405 = vpack.c.bf16 %v235, %v234
        %v406 = vpack.c.bf16 %v236, %v236
        %v407 = vpack.c.bf16 %v238, %v237
        %v408 = vpack.c.bf16 %v239, %v239
        %v409 = vpack.c.bf16 %v241, %v240
        %v410 = vpack.c.bf16 %v242, %v242
        %v411 = vpack.c.bf16 %v244, %v243
        %v412 = vpack.c.bf16 %v245, %v245
        %v413 = vpack.c.bf16 %v247, %v246
        %v414 = vpack.c.bf16 %v248, %v248
        %v415 = vpack.c.bf16 %v250, %v249
        %v416 = vpack.c.bf16 %v251, %v251
        %v417 = vpack.c.bf16 %v253, %v252
        %v418 = vpack.c.bf16 %v254, %v254
        %v419 = vpack.c.bf16 %v256, %v255
        %v420 = vpack.c.bf16 %v257, %v257
        %v421 = vpack.c.bf16 %v259, %v258
        %v422 = vpack.c.bf16 %v260, %v260
        %v423 = vpack.c.bf16 %v262, %v261
        %v424 = vpack.c.bf16 %v263, %v263
        %v425 = vpack.c.bf16 %v265, %v264
        %v426 = vpack.c.bf16 %v266, %v266
        %v427 = vpack.c.bf16 %v268, %v267
        %v428 = vpack.c.bf16 %v269, %v269
        %v429 = vpack.c.bf16 %v271, %v270
        %v430 = vpack.c.bf16 %v272, %v272
        %v431 = vpack.c.bf16 %v274, %v273
        %v432 = vpack.c.bf16 %v275, %v275
        %v433 = vpack.c.bf16 %v277, %v276
        %v434 = vpack.c.bf16 %v278, %v278
        %v435 = vpack.c.bf16 %v280, %v279
        %v436 = vpack.c.bf16 %v281, %v281
        %v437 = vpack.c.bf16 %v283, %v282
        %v438 = vpack.c.bf16 %v284, %v284
        %v439 = vpack.c.bf16 %v286, %v285
        %v440 = vpack.c.bf16 %v287, %v287
        %v441 = vpack.c.bf16 %v289, %v288
        %v442 = vpack.c.bf16 %v290, %v290
        %v443 = vpack.c.bf16 %v292, %v291
        %v444 = vpack.c.bf16 %v293, %v293
        %v445 = vpack.c.bf16 %v295, %v294
        %v446 = vpack.c.bf16 %v296, %v296
        %v447 = vpack.c.bf16 %v298, %v297
        %v448 = vpack.c.bf16 %v299, %v299
        %v449 = vpack.c.bf16 %v301, %v300
        %v450 = vpack.c.bf16 %v302, %v302
        %v451 = vpack.c.bf16 %v304, %v303
        %v452 = vpack.c.bf16 %v305, %v305
        %v453 = vpack.c.bf16 %v307, %v306
        %v454 = vpack.c.bf16 %v308, %v308
        %v455 = vpack.c.bf16 %v310, %v309
        %v456 = vpack.c.bf16 %v311, %v311
        %v457 = vpack.c.bf16 %v313, %v312
        %v458 = vpack.c.bf16 %v314, %v314
        %v459 = vpack.c.bf16 %v316, %v315
        %v460 = vpack.c.bf16 %v317, %v317
        %v461 = vpack.c.bf16 %v319, %v318
        %v462 = vpack.c.bf16 %v320, %v320
        %v463 = vpack.c.bf16 %v322, %v321
        %v464 = vpack.c.bf16 %v323, %v323
        %v465 = vpack.c.bf16 %v325, %v324
        %v466 = vpack.c.bf16 %v326, %v326
        %v467 = vpack.c.bf16 %v328, %v327
        %v468 = vpack.c.bf16 %v329, %v329
        %v469 = vpack.c.bf16 %v331, %v330
        %v470 = vpack.c.bf16 %v332, %v332
        %v471 = vpack.c.bf16 %v334, %v333
        %v472 = vpack.c.bf16 %v335, %v335
        %v473 = vpack.c.bf16 %v337, %v336
        %v474 = vpack.c.bf16 %v338, %v338
        %v475 = vpack.c.bf16 %v340, %v339
        %v476 = vpack.c.bf16 %v341, %v341
        %v477 = vpack.c.bf16 %v343, %v342
        %v478 = vpack.c.bf16 %v344, %v344
        %v479 = vpack.c.bf16 %v346, %v345
        %v480 = vpack.c.bf16 %v347, %v347
        %v481 = vpack.c.bf16 %v349, %v348
        %v482 = vpack.c.bf16 %v350, %v350
        %v483 = vpack.c.bf16 %v352, %v351
        %v484 = vpack.c.bf16 %v353, %v353
        %v485 = vpack.c.bf16 %v355, %v354
        %v486 = vpack.c.bf16 %v356, %v356
        %v487 = vpack.c.bf16 %v358, %v357
        %v488 = vpack.c.bf16 %v359, %v359
        %v489 = vpack.c.bf16 %v361, %v360
        %v490 = vpack.c.bf16 %v362, %v362
        %v491 = vld [vmem:[%s1] sm:$0xff]
        %v492 = vld [vmem:[%s1 + $0x8] sm:$0xff]
        %v493 = vld [vmem:[%s1 + $0x10] sm:$0xff]
        %v494 = vld [vmem:[%s1 + $0x18] sm:$0xff]
        %v495 = vld [vmem:[%s1 + $0x20] sm:$0xff]
        %v496 = vld [vmem:[%s1 + $0x28] sm:$0xff]
        %v497 = vld [vmem:[%s1 + $0x30] sm:$0xff]
        %v498 = vld [vmem:[%s1 + $0x38] sm:$0xff]
        %v499 = vld [vmem:[%s1 + $0x40] sm:$0xff]
        %v500 = vld [vmem:[%s1 + $0x48] sm:$0xff]
        %v501 = vld [vmem:[%s1 + $0x50] sm:$0xff]
        %v502 = vld [vmem:[%s1 + $0x58] sm:$0xff]
        %v503 = vld [vmem:[%s1 + $0x60] sm:$0xff]
        %v504 = vld [vmem:[%s1 + $0x68] sm:$0xff]
        %v505 = vld [vmem:[%s1 + $0x70] sm:$0xff]
        %v506 = vld [vmem:[%s1 + $0x78] sm:$0xff]
        %v507 = vld [vmem:[%s1 + $0x80] sm:$0xff]
        %v508 = vld [vmem:[%s1 + $0x88] sm:$0xff]
        %v509 = vld [vmem:[%s1 + $0x90] sm:$0xff]
        %v510 = vld [vmem:[%s1 + $0x98] sm:$0xff]
        %v511 = vld [vmem:[%s1 + $0xa0] sm:$0xff]
        %v512 = vld [vmem:[%s1 + $0xa8] sm:$0xff]
        %v513 = vld [vmem:[%s1 + $0xb0] sm:$0xff]
        %v514 = vld [vmem:[%s1 + $0xb8] sm:$0xff]
        %v515 = vld [vmem:[%s1 + $0xc0] sm:$0xff]
        %v516 = vld [vmem:[%s1 + $0xc8] sm:$0xff]
        %v517 = vld [vmem:[%s1 + $0xd0] sm:$0xff]
        %v518 = vld [vmem:[%s1 + $0xd8] sm:$0xff]
        %v519 = vld [vmem:[%s1 + $0xe0] sm:$0xff]
        %v520 = vld [vmem:[%s1 + $0xe8] sm:$0xff]
        %v521 = vld [vmem:[%s1 + $0xf0] sm:$0xff]
        %v522 = vld [vmem:[%s1 + $0xf8] sm:$0xff]
        %v523 = vld [vmem:[%s1 + $0x100] sm:$0xff]
        %v524 = vld [vmem:[%s1 + $0x108] sm:$0xff]
        %v525 = vld [vmem:[%s1 + $0x110] sm:$0xff]
        %v526 = vld [vmem:[%s1 + $0x118] sm:$0xff]
        %v527 = vld [vmem:[%s1 + $0x120] sm:$0xff]
        %v528 = vld [vmem:[%s1 + $0x128] sm:$0xff]
        %v529 = vld [vmem:[%s1 + $0x130] sm:$0xff]
        %v530 = vld [vmem:[%s1 + $0x138] sm:$0xff]
        %v531 = vld [vmem:[%s1 + $0x140] sm:$0xff]
        %v532 = vld [vmem:[%s1 + $0x148] sm:$0xff]
        %v533 = vld [vmem:[%s1 + $0x150] sm:$0xff]
        %v534 = vld [vmem:[%s1 + $0x158] sm:$0xff]
        %v535 = vld [vmem:[%s1 + $0x160] sm:$0xff]
        %v536 = vld [vmem:[%s1 + $0x168] sm:$0xff]
        %v537 = vld [vmem:[%s1 + $0x170] sm:$0xff]
        %v538 = vld [vmem:[%s1 + $0x178] sm:$0xff]
        %v667 = vunpack.c.l.b16 %v363
        %v668 = vunpack.c.h.b16 %v363
        %v669 = vunpack.c.l.b16 %v364
        %v670 = vunpack.c.l.b16 %v365
        %v671 = vunpack.c.h.b16 %v365
        %v672 = vunpack.c.l.b16 %v366
        %v673 = vunpack.c.l.b16 %v367
        %v674 = vunpack.c.h.b16 %v367
        %v675 = vunpack.c.l.b16 %v368
        %v676 = vunpack.c.l.b16 %v369
        %v677 = vunpack.c.h.b16 %v369
        %v678 = vunpack.c.l.b16 %v370
        %v679 = vunpack.c.l.b16 %v371
        %v680 = vunpack.c.h.b16 %v371
        %v681 = vunpack.c.l.b16 %v372
        %v682 = vunpack.c.l.b16 %v373
        %v683 = vunpack.c.h.b16 %v373
        %v684 = vunpack.c.l.b16 %v374
        %v685 = vunpack.c.l.b16 %v375
        %v686 = vunpack.c.h.b16 %v375
        %v687 = vunpack.c.l.b16 %v376
        %v688 = vunpack.c.l.b16 %v377
        %v689 = vunpack.c.h.b16 %v377
        %v690 = vunpack.c.l.b16 %v378
        %v691 = vunpack.c.l.b16 %v379
        %v692 = vunpack.c.h.b16 %v379
        %v693 = vunpack.c.l.b16 %v380
        %v694 = vunpack.c.l.b16 %v381
        %v695 = vunpack.c.h.b16 %v381
        %v696 = vunpack.c.l.b16 %v382
        %v697 = vunpack.c.l.b16 %v383
        %v698 = vunpack.c.h.b16 %v383
        %v699 = vunpack.c.l.b16 %v384
        %v700 = vunpack.c.l.b16 %v385
        %v701 = vunpack.c.h.b16 %v385
        %v702 = vunpack.c.l.b16 %v386
        %v703 = vunpack.c.l.b16 %v387
        %v704 = vunpack.c.h.b16 %v387
        %v705 = vunpack.c.l.b16 %v388
        %v706 = vunpack.c.l.b16 %v389
        %v707 = vunpack.c.h.b16 %v389
        %v708 = vunpack.c.l.b16 %v390
        %v709 = vunpack.c.l.b16 %v391
        %v710 = vunpack.c.h.b16 %v391
        %v711 = vunpack.c.l.b16 %v392
        %v712 = vunpack.c.l.b16 %v393
        %v713 = vunpack.c.h.b16 %v393
        %v714 = vunpack.c.l.b16 %v394
        %v715 = vunpack.c.l.b16 %v395
        %v716 = vunpack.c.h.b16 %v395
        %v717 = vunpack.c.l.b16 %v396
        %v718 = vunpack.c.l.b16 %v397
        %v719 = vunpack.c.h.b16 %v397
        %v720 = vunpack.c.l.b16 %v398
        %v721 = vunpack.c.l.b16 %v399
        %v722 = vunpack.c.h.b16 %v399
        %v723 = vunpack.c.l.b16 %v400
        %v724 = vunpack.c.l.b16 %v401
        %v725 = vunpack.c.h.b16 %v401
        %v726 = vunpack.c.l.b16 %v402
        %v727 = vunpack.c.l.b16 %v403
        %v728 = vunpack.c.h.b16 %v403
        %v729 = vunpack.c.l.b16 %v404
        %v730 = vunpack.c.l.b16 %v405
        %v731 = vunpack.c.h.b16 %v405
        %v732 = vunpack.c.l.b16 %v406
        %v733 = vunpack.c.l.b16 %v407
        %v734 = vunpack.c.h.b16 %v407
        %v735 = vunpack.c.l.b16 %v408
        %v736 = vunpack.c.l.b16 %v409
        %v737 = vunpack.c.h.b16 %v409
        %v738 = vunpack.c.l.b16 %v410
        %v739 = vunpack.c.l.b16 %v411
        %v740 = vunpack.c.h.b16 %v411
        %v741 = vunpack.c.l.b16 %v412
        %v742 = vunpack.c.l.b16 %v413
        %v743 = vunpack.c.h.b16 %v413
        %v744 = vunpack.c.l.b16 %v414
        %v745 = vunpack.c.l.b16 %v415
        %v746 = vunpack.c.h.b16 %v415
        %v747 = vunpack.c.l.b16 %v416
        %v748 = vunpack.c.l.b16 %v417
        %v749 = vunpack.c.h.b16 %v417
        %v750 = vunpack.c.l.b16 %v418
        %v751 = vunpack.c.l.b16 %v419
        %v752 = vunpack.c.h.b16 %v419
        %v753 = vunpack.c.l.b16 %v420
        %v754 = vunpack.c.l.b16 %v421
        %v755 = vunpack.c.h.b16 %v421
        %v756 = vunpack.c.l.b16 %v422
        %v757 = vunpack.c.l.b16 %v423
        %v758 = vunpack.c.h.b16 %v423
        %v759 = vunpack.c.l.b16 %v424
        %v760 = vunpack.c.l.b16 %v425
        %v761 = vunpack.c.h.b16 %v425
        %v762 = vunpack.c.l.b16 %v426
        %v763 = vunpack.c.l.b16 %v427
        %v764 = vunpack.c.h.b16 %v427
        %v765 = vunpack.c.l.b16 %v428
        %v766 = vunpack.c.l.b16 %v429
        %v767 = vunpack.c.h.b16 %v429
        %v768 = vunpack.c.l.b16 %v430
        %v769 = vunpack.c.l.b16 %v431
        %v770 = vunpack.c.h.b16 %v431
        %v771 = vunpack.c.l.b16 %v432
        %v772 = vunpack.c.l.b16 %v433
        %v773 = vunpack.c.h.b16 %v433
        %v774 = vunpack.c.l.b16 %v434
        %v775 = vunpack.c.l.b16 %v435
        %v776 = vunpack.c.h.b16 %v435
        %v777 = vunpack.c.l.b16 %v436
        %v778 = vunpack.c.l.b16 %v437
        %v779 = vunpack.c.h.b16 %v437
        %v780 = vunpack.c.l.b16 %v438
        %v781 = vunpack.c.l.b16 %v439
        %v782 = vunpack.c.h.b16 %v439
        %v783 = vunpack.c.l.b16 %v440
        %v784 = vunpack.c.l.b16 %v441
        %v785 = vunpack.c.h.b16 %v441
        %v786 = vunpack.c.l.b16 %v442
        %v787 = vunpack.c.l.b16 %v443
        %v788 = vunpack.c.h.b16 %v443
        %v789 = vunpack.c.l.b16 %v444
        %v790 = vunpack.c.l.b16 %v445
        %v791 = vunpack.c.h.b16 %v445
        %v792 = vunpack.c.l.b16 %v446
        %v793 = vunpack.c.l.b16 %v447
        %v794 = vunpack.c.h.b16 %v447
        %v795 = vunpack.c.l.b16 %v448
        %v796 = vunpack.c.l.b16 %v449
        %v797 = vunpack.c.h.b16 %v449
        %v798 = vunpack.c.l.b16 %v450
        %v799 = vunpack.c.l.b16 %v451
        %v800 = vunpack.c.h.b16 %v451
        %v801 = vunpack.c.l.b16 %v452
        %v802 = vunpack.c.l.b16 %v453
        %v803 = vunpack.c.h.b16 %v453
        %v804 = vunpack.c.l.b16 %v454
        %v805 = vunpack.c.l.b16 %v455
        %v806 = vunpack.c.h.b16 %v455
        %v807 = vunpack.c.l.b16 %v456
        %v808 = vunpack.c.l.b16 %v457
        %v809 = vunpack.c.h.b16 %v457
        %v810 = vunpack.c.l.b16 %v458
        %v811 = vunpack.c.l.b16 %v459
        %v812 = vunpack.c.h.b16 %v459
        %v813 = vunpack.c.l.b16 %v460
        %v814 = vunpack.c.l.b16 %v461
        %v815 = vunpack.c.h.b16 %v461
        %v816 = vunpack.c.l.b16 %v462
        %v817 = vunpack.c.l.b16 %v463
        %v818 = vunpack.c.h.b16 %v463
        %v819 = vunpack.c.l.b16 %v464
        %v820 = vunpack.c.l.b16 %v465
        %v821 = vunpack.c.h.b16 %v465
        %v822 = vunpack.c.l.b16 %v466
        %v823 = vunpack.c.l.b16 %v467
        %v824 = vunpack.c.h.b16 %v467
        %v825 = vunpack.c.l.b16 %v468
        %v826 = vunpack.c.l.b16 %v469
        %v827 = vunpack.c.h.b16 %v469
        %v828 = vunpack.c.l.b16 %v470
        %v829 = vunpack.c.l.b16 %v471
        %v830 = vunpack.c.h.b16 %v471
        %v831 = vunpack.c.l.b16 %v472
        %v832 = vunpack.c.l.b16 %v473
        %v833 = vunpack.c.h.b16 %v473
        %v834 = vunpack.c.l.b16 %v474
        %v835 = vunpack.c.l.b16 %v475
        %v836 = vunpack.c.h.b16 %v475
        %v837 = vunpack.c.l.b16 %v476
        %v838 = vunpack.c.l.b16 %v477
        %v839 = vunpack.c.h.b16 %v477
        %v840 = vunpack.c.l.b16 %v478
        %v841 = vunpack.c.l.b16 %v479
        %v842 = vunpack.c.h.b16 %v479
        %v843 = vunpack.c.l.b16 %v480
        %v844 = vunpack.c.l.b16 %v481
        %v845 = vunpack.c.h.b16 %v481
        %v846 = vunpack.c.l.b16 %v482
        %v847 = vunpack.c.l.b16 %v483
        %v848 = vunpack.c.h.b16 %v483
        %v849 = vunpack.c.l.b16 %v484
        %v850 = vunpack.c.l.b16 %v485
        %v851 = vunpack.c.h.b16 %v485
        %v852 = vunpack.c.l.b16 %v486
        %v853 = vunpack.c.l.b16 %v487
        %v854 = vunpack.c.h.b16 %v487
        %v855 = vunpack.c.l.b16 %v488
        %v856 = vunpack.c.l.b16 %v489
        %v857 = vunpack.c.h.b16 %v489
        %v858 = vunpack.c.l.b16 %v490
        %v859 = vpack.c.b16 %v670, %v667
        %v860 = vpack.c.b16 %v671, %v668
        %v861 = vpack.c.b16 %v672, %v669
        %v862 = vpack.c.b16 %v676, %v673
        %v863 = vpack.c.b16 %v677, %v674
        %v864 = vpack.c.b16 %v678, %v675
        %v865 = vpack.c.b16 %v682, %v679
        %v866 = vpack.c.b16 %v683, %v680
        %v867 = vpack.c.b16 %v684, %v681
        %v868 = vpack.c.b16 %v688, %v685
        %v869 = vpack.c.b16 %v689, %v686
        %v870 = vpack.c.b16 %v690, %v687
        %v871 = vpack.c.b16 %v694, %v691
        %v872 = vpack.c.b16 %v695, %v692
        %v873 = vpack.c.b16 %v696, %v693
        %v874 = vpack.c.b16 %v700, %v697
        %v875 = vpack.c.b16 %v701, %v698
        %v876 = vpack.c.b16 %v702, %v699
        %v877 = vpack.c.b16 %v706, %v703
        %v878 = vpack.c.b16 %v707, %v704
        %v879 = vpack.c.b16 %v708, %v705
        %v880 = vpack.c.b16 %v712, %v709
        %v881 = vpack.c.b16 %v713, %v710
        %v882 = vpack.c.b16 %v714, %v711
        %v883 = vpack.c.b16 %v718, %v715
        %v884 = vpack.c.b16 %v719, %v716
        %v885 = vpack.c.b16 %v720, %v717
        %v886 = vpack.c.b16 %v724, %v721
        %v887 = vpack.c.b16 %v725, %v722
        %v888 = vpack.c.b16 %v726, %v723
        %v889 = vpack.c.b16 %v730, %v727
        %v890 = vpack.c.b16 %v731, %v728
        %v891 = vpack.c.b16 %v732, %v729
        %v892 = vpack.c.b16 %v736, %v733
        %v893 = vpack.c.b16 %v737, %v734
        %v894 = vpack.c.b16 %v738, %v735
        %v895 = vpack.c.b16 %v742, %v739
        %v896 = vpack.c.b16 %v743, %v740
        %v897 = vpack.c.b16 %v744, %v741
        %v898 = vpack.c.b16 %v748, %v745
        %v899 = vpack.c.b16 %v749, %v746
        %v900 = vpack.c.b16 %v750, %v747
        %v901 = vpack.c.b16 %v754, %v751
        %v902 = vpack.c.b16 %v755, %v752
        %v903 = vpack.c.b16 %v756, %v753
        %v904 = vpack.c.b16 %v760, %v757
        %v905 = vpack.c.b16 %v761, %v758
        %v906 = vpack.c.b16 %v762, %v759
        %v907 = vpack.c.b16 %v766, %v763
        %v908 = vpack.c.b16 %v767, %v764
        %v909 = vpack.c.b16 %v768, %v765
        %v910 = vpack.c.b16 %v772, %v769
        %v911 = vpack.c.b16 %v773, %v770
        %v912 = vpack.c.b16 %v774, %v771
        %v913 = vpack.c.b16 %v778, %v775
        %v914 = vpack.c.b16 %v779, %v776
        %v915 = vpack.c.b16 %v780, %v777
        %v916 = vpack.c.b16 %v784, %v781
        %v917 = vpack.c.b16 %v785, %v782
        %v918 = vpack.c.b16 %v786, %v783
        %v919 = vpack.c.b16 %v790, %v787
        %v920 = vpack.c.b16 %v791, %v788
        %v921 = vpack.c.b16 %v792, %v789
        %v922 = vpack.c.b16 %v796, %v793
        %v923 = vpack.c.b16 %v797, %v794
        %v924 = vpack.c.b16 %v798, %v795
        %v925 = vpack.c.b16 %v802, %v799
        %v926 = vpack.c.b16 %v803, %v800
        %v927 = vpack.c.b16 %v804, %v801
        %v928 = vpack.c.b16 %v808, %v805
        %v929 = vpack.c.b16 %v809, %v806
        %v930 = vpack.c.b16 %v810, %v807
        %v931 = vpack.c.b16 %v814, %v811
        %v932 = vpack.c.b16 %v815, %v812
        %v933 = vpack.c.b16 %v816, %v813
        %v934 = vpack.c.b16 %v820, %v817
        %v935 = vpack.c.b16 %v821, %v818
        %v936 = vpack.c.b16 %v822, %v819
        %v937 = vpack.c.b16 %v826, %v823
        %v938 = vpack.c.b16 %v827, %v824
        %v939 = vpack.c.b16 %v828, %v825
        %v940 = vpack.c.b16 %v832, %v829
        %v941 = vpack.c.b16 %v833, %v830
        %v942 = vpack.c.b16 %v834, %v831
        %v943 = vpack.c.b16 %v838, %v835
        %v944 = vpack.c.b16 %v839, %v836
        %v945 = vpack.c.b16 %v840, %v837
        %v946 = vpack.c.b16 %v844, %v841
        %v947 = vpack.c.b16 %v845, %v842
        %v948 = vpack.c.b16 %v846, %v843
        %v949 = vpack.c.b16 %v850, %v847
        %v950 = vpack.c.b16 %v851, %v848
        %v951 = vpack.c.b16 %v852, %v849
        %v952 = vpack.c.b16 %v856, %v853
        %v953 = vpack.c.b16 %v857, %v854
        %v954 = vpack.c.b16 %v858, %v855
        %v1099 = vunpack.c.l.b16 %v491
        %v1100 = vunpack.c.h.b16 %v491
        %v1101 = vunpack.c.l.b16 %v492
        %v1102 = vunpack.c.h.b16 %v492
        %v1103 = vunpack.c.l.b16 %v493
        %v1104 = vunpack.c.h.b16 %v493
        %v1105 = vunpack.c.l.b16 %v494
        %v1106 = vunpack.c.h.b16 %v494
        %v1107 = vunpack.c.l.b16 %v495
        %v1108 = vunpack.c.h.b16 %v495
        %v1109 = vunpack.c.l.b16 %v496
        %v1110 = vunpack.c.h.b16 %v496
        %v1111 = vunpack.c.l.b16 %v497
        %v1112 = vunpack.c.h.b16 %v497
        %v1113 = vunpack.c.l.b16 %v498
        %v1114 = vunpack.c.h.b16 %v498
        %v1115 = vunpack.c.l.b16 %v499
        %v1116 = vunpack.c.h.b16 %v499
        %v1117 = vunpack.c.l.b16 %v500
        %v1118 = vunpack.c.h.b16 %v500
        %v1119 = vunpack.c.l.b16 %v501
        %v1120 = vunpack.c.h.b16 %v501
        %v1121 = vunpack.c.l.b16 %v502
        %v1122 = vunpack.c.h.b16 %v502
        %v1123 = vunpack.c.l.b16 %v503
        %v1124 = vunpack.c.h.b16 %v503
        %v1125 = vunpack.c.l.b16 %v504
        %v1126 = vunpack.c.h.b16 %v504
        %v1127 = vunpack.c.l.b16 %v505
        %v1128 = vunpack.c.h.b16 %v505
        %v1129 = vunpack.c.l.b16 %v506
        %v1130 = vunpack.c.h.b16 %v506
        %v1131 = vunpack.c.l.b16 %v507
        %v1132 = vunpack.c.h.b16 %v507
        %v1133 = vunpack.c.l.b16 %v508
        %v1134 = vunpack.c.h.b16 %v508
        %v1135 = vunpack.c.l.b16 %v509
        %v1136 = vunpack.c.h.b16 %v509
        %v1137 = vunpack.c.l.b16 %v510
        %v1138 = vunpack.c.h.b16 %v510
        %v1139 = vunpack.c.l.b16 %v511
        %v1140 = vunpack.c.h.b16 %v511
        %v1141 = vunpack.c.l.b16 %v512
        %v1142 = vunpack.c.h.b16 %v512
        %v1143 = vunpack.c.l.b16 %v513
        %v1144 = vunpack.c.h.b16 %v513
        %v1145 = vunpack.c.l.b16 %v514
        %v1146 = vunpack.c.h.b16 %v514
        %v1147 = vunpack.c.l.b16 %v515
        %v1148 = vunpack.c.h.b16 %v515
        %v1149 = vunpack.c.l.b16 %v516
        %v1150 = vunpack.c.h.b16 %v516
        %v1151 = vunpack.c.l.b16 %v517
        %v1152 = vunpack.c.h.b16 %v517
        %v1153 = vunpack.c.l.b16 %v518
        %v1154 = vunpack.c.h.b16 %v518
        %v1155 = vunpack.c.l.b16 %v519
        %v1156 = vunpack.c.h.b16 %v519
        %v1157 = vunpack.c.l.b16 %v520
        %v1158 = vunpack.c.h.b16 %v520
        %v1159 = vunpack.c.l.b16 %v521
        %v1160 = vunpack.c.h.b16 %v521
        %v1161 = vunpack.c.l.b16 %v522
        %v1162 = vunpack.c.h.b16 %v522
        %v1163 = vunpack.c.l.b16 %v523
        %v1164 = vunpack.c.h.b16 %v523
        %v1165 = vunpack.c.l.b16 %v524
        %v1166 = vunpack.c.h.b16 %v524
        %v1167 = vunpack.c.l.b16 %v525
        %v1168 = vunpack.c.h.b16 %v525
        %v1169 = vunpack.c.l.b16 %v526
        %v1170 = vunpack.c.h.b16 %v526
        %v1171 = vunpack.c.l.b16 %v527
        %v1172 = vunpack.c.h.b16 %v527
        %v1173 = vunpack.c.l.b16 %v528
        %v1174 = vunpack.c.h.b16 %v528
        %v1175 = vunpack.c.l.b16 %v529
        %v1176 = vunpack.c.h.b16 %v529
        %v1177 = vunpack.c.l.b16 %v530
        %v1178 = vunpack.c.h.b16 %v530
        %v1179 = vunpack.c.l.b16 %v531
        %v1180 = vunpack.c.h.b16 %v531
        %v1181 = vunpack.c.l.b16 %v532
        %v1182 = vunpack.c.h.b16 %v532
        %v1183 = vunpack.c.l.b16 %v533
        %v1184 = vunpack.c.h.b16 %v533
        %v1185 = vunpack.c.l.b16 %v534
        %v1186 = vunpack.c.h.b16 %v534
        %v1187 = vunpack.c.l.b16 %v535
        %v1188 = vunpack.c.h.b16 %v535
        %v1189 = vunpack.c.l.b16 %v536
        %v1190 = vunpack.c.h.b16 %v536
        %v1191 = vunpack.c.l.b16 %v537
        %v1192 = vunpack.c.h.b16 %v537
        %v1193 = vunpack.c.l.b16 %v538
        %v1194 = vunpack.c.h.b16 %v538
        %v1195 = vpack.c.b16 %v1101, %v1099
        %v1196 = vpack.c.b16 %v1102, %v1100
        %v1197 = vpack.c.b16 %v1105, %v1103
        %v1198 = vpack.c.b16 %v1106, %v1104
        %v1199 = vpack.c.b16 %v1109, %v1107
        %v1200 = vpack.c.b16 %v1110, %v1108
        %v1201 = vpack.c.b16 %v1113, %v1111
        %v1202 = vpack.c.b16 %v1114, %v1112
        %v1203 = vpack.c.b16 %v1117, %v1115
        %v1204 = vpack.c.b16 %v1118, %v1116
        %v1205 = vpack.c.b16 %v1121, %v1119
        %v1206 = vpack.c.b16 %v1122, %v1120
        %v1207 = vpack.c.b16 %v1125, %v1123
        %v1208 = vpack.c.b16 %v1126, %v1124
        %v1209 = vpack.c.b16 %v1129, %v1127
        %v1210 = vpack.c.b16 %v1130, %v1128
        %v1211 = vpack.c.b16 %v1133, %v1131
        %v1212 = vpack.c.b16 %v1134, %v1132
        %v1213 = vpack.c.b16 %v1137, %v1135
        %v1214 = vpack.c.b16 %v1138, %v1136
        %v1215 = vpack.c.b16 %v1141, %v1139
        %v1216 = vpack.c.b16 %v1142, %v1140
        %v1217 = vpack.c.b16 %v1145, %v1143
        %v1218 = vpack.c.b16 %v1146, %v1144
        %v1219 = vpack.c.b16 %v1149, %v1147
        %v1220 = vpack.c.b16 %v1150, %v1148
        %v1221 = vpack.c.b16 %v1153, %v1151
        %v1222 = vpack.c.b16 %v1154, %v1152
        %v1223 = vpack.c.b16 %v1157, %v1155
        %v1224 = vpack.c.b16 %v1158, %v1156
        %v1225 = vpack.c.b16 %v1161, %v1159
        %v1226 = vpack.c.b16 %v1162, %v1160
        %v1227 = vpack.c.b16 %v1165, %v1163
        %v1228 = vpack.c.b16 %v1166, %v1164
        %v1229 = vpack.c.b16 %v1169, %v1167
        %v1230 = vpack.c.b16 %v1170, %v1168
        %v1231 = vpack.c.b16 %v1173, %v1171
        %v1232 = vpack.c.b16 %v1174, %v1172
        %v1233 = vpack.c.b16 %v1177, %v1175
        %v1234 = vpack.c.b16 %v1178, %v1176
        %v1235 = vpack.c.b16 %v1181, %v1179
        %v1236 = vpack.c.b16 %v1182, %v1180
        %v1237 = vpack.c.b16 %v1185, %v1183
        %v1238 = vpack.c.b16 %v1186, %v1184
        %v1239 = vpack.c.b16 %v1189, %v1187
        %v1240 = vpack.c.b16 %v1190, %v1188
        %v1241 = vpack.c.b16 %v1193, %v1191
        %v1242 = vpack.c.b16 %v1194, %v1192
        %1291 = vmatpush.bf16.msra.mxu0 %v1209
        %1292 = vmatpush.bf16.msra.mxu0 %v1207
        %1293 = vmatpush.bf16.msra.mxu0 %v1205
        %1294 = vmatpush.bf16.msra.mxu0 %v1203
        %1295 = vmatpush.bf16.msra.mxu0 %v1201
        %1296 = vmatpush.bf16.msra.mxu0 %v1199
        %1297 = vmatpush.bf16.msra.mxu0 %v1197
        %1298 = vmatpush.bf16.msra.mxu0 %v1195
        %1299 = vmatmul.bf16.gmra.mxu0 %v859
        %v1300 = vpop.f32.mrf.mxu0
        %v1301 = vadd.f32 0.0, %v1300
        %v1302 = vpop.f32.mrf.mxu0
        %v1303 = vadd.f32 0.0, %v1302
        %1304 = vmatmul.bf16.gmra.mxu0 %v862
        %v1305 = vpop.f32.mrf.mxu0
        %v1306 = vadd.f32 0.0, %v1305
        %v1307 = vpop.f32.mrf.mxu0
        %v1308 = vadd.f32 0.0, %v1307
        %1309 = vmatmul.bf16.gmra.mxu0 %v865
        %v1310 = vpop.f32.mrf.mxu0
        %v1311 = vadd.f32 0.0, %v1310
        %v1312 = vpop.f32.mrf.mxu0
        %v1313 = vadd.f32 0.0, %v1312
        %1314 = vmatmul.bf16.gmra.mxu0 %v868
        %v1315 = vpop.f32.mrf.mxu0
        %v1316 = vadd.f32 0.0, %v1315
        %v1317 = vpop.f32.mrf.mxu0
        %v1318 = vadd.f32 0.0, %v1317
        %1319 = vmatmul.bf16.gmra.mxu0 %v871
        %v1320 = vpop.f32.mrf.mxu0
        %v1321 = vadd.f32 0.0, %v1320
        %v1322 = vpop.f32.mrf.mxu0
        %v1323 = vadd.f32 0.0, %v1322
        %1324 = vmatmul.bf16.gmra.mxu0 %v874
        %v1325 = vpop.f32.mrf.mxu0
        %v1326 = vadd.f32 0.0, %v1325
        %v1327 = vpop.f32.mrf.mxu0
        %v1328 = vadd.f32 0.0, %v1327
        %1329 = vmatmul.bf16.gmra.mxu0 %v877
        %v1330 = vpop.f32.mrf.mxu0
        %v1331 = vadd.f32 0.0, %v1330
        %v1332 = vpop.f32.mrf.mxu0
        %v1333 = vadd.f32 0.0, %v1332
        %1334 = vmatmul.bf16.gmra.mxu0 %v880
        %v1335 = vpop.f32.mrf.mxu0
        %v1336 = vadd.f32 0.0, %v1335
        %v1337 = vpop.f32.mrf.mxu0
        %v1338 = vadd.f32 0.0, %v1337
        %1339 = vmatmul.bf16.gmra.mxu0 %v883
        %v1340 = vpop.f32.mrf.mxu0
        %v1341 = vadd.f32 0.0, %v1340
        %v1342 = vpop.f32.mrf.mxu0
        %v1343 = vadd.f32 0.0, %v1342
        %1344 = vmatmul.bf16.gmra.mxu0 %v886
        %v1345 = vpop.f32.mrf.mxu0
        %v1346 = vadd.f32 0.0, %v1345
        %v1347 = vpop.f32.mrf.mxu0
        %v1348 = vadd.f32 0.0, %v1347
        %1349 = vmatmul.bf16.gmra.mxu0 %v889
        %v1350 = vpop.f32.mrf.mxu0
        %v1351 = vadd.f32 0.0, %v1350
        %v1352 = vpop.f32.mrf.mxu0
        %v1353 = vadd.f32 0.0, %v1352
        %1354 = vmatmul.bf16.gmra.mxu0 %v892
        %v1355 = vpop.f32.mrf.mxu0
        %v1356 = vadd.f32 0.0, %v1355
        %v1357 = vpop.f32.mrf.mxu0
        %v1358 = vadd.f32 0.0, %v1357
        %1359 = vmatmul.bf16.gmra.mxu0 %v895
        %v1360 = vpop.f32.mrf.mxu0
        %v1361 = vadd.f32 0.0, %v1360
        %v1362 = vpop.f32.mrf.mxu0
        %v1363 = vadd.f32 0.0, %v1362
        %1364 = vmatmul.bf16.gmra.mxu0 %v898
        %v1365 = vpop.f32.mrf.mxu0
        %v1366 = vadd.f32 0.0, %v1365
        %v1367 = vpop.f32.mrf.mxu0
        %v1368 = vadd.f32 0.0, %v1367
        %1369 = vmatmul.bf16.gmra.mxu0 %v901
        %v1370 = vpop.f32.mrf.mxu0
        %v1371 = vadd.f32 0.0, %v1370
        %v1372 = vpop.f32.mrf.mxu0
        %v1373 = vadd.f32 0.0, %v1372
        %1374 = vmatmul.bf16.gmra.mxu0 %v904
        %v1375 = vpop.f32.mrf.mxu0
        %v1376 = vadd.f32 0.0, %v1375
        %v1377 = vpop.f32.mrf.mxu0
        %v1378 = vadd.f32 0.0, %v1377
        %1379 = vmatmul.bf16.gmra.mxu0 %v907
        %v1380 = vpop.f32.mrf.mxu0
        %v1381 = vadd.f32 0.0, %v1380
        %v1382 = vpop.f32.mrf.mxu0
        %v1383 = vadd.f32 0.0, %v1382
        %1384 = vmatmul.bf16.gmra.mxu0 %v910
        %v1385 = vpop.f32.mrf.mxu0
        %v1386 = vadd.f32 0.0, %v1385
        %v1387 = vpop.f32.mrf.mxu0
        %v1388 = vadd.f32 0.0, %v1387
        %1389 = vmatmul.bf16.gmra.mxu0 %v913
        %v1390 = vpop.f32.mrf.mxu0
        %v1391 = vadd.f32 0.0, %v1390
        %v1392 = vpop.f32.mrf.mxu0
        %v1393 = vadd.f32 0.0, %v1392
        %1394 = vmatmul.bf16.gmra.mxu0 %v916
        %v1395 = vpop.f32.mrf.mxu0
        %v1396 = vadd.f32 0.0, %v1395
        %v1397 = vpop.f32.mrf.mxu0
        %v1398 = vadd.f32 0.0, %v1397
        %1399 = vmatmul.bf16.gmra.mxu0 %v919
        %v1400 = vpop.f32.mrf.mxu0
        %v1401 = vadd.f32 0.0, %v1400
        %v1402 = vpop.f32.mrf.mxu0
        %v1403 = vadd.f32 0.0, %v1402
        %1404 = vmatmul.bf16.gmra.mxu0 %v922
        %v1405 = vpop.f32.mrf.mxu0
        %v1406 = vadd.f32 0.0, %v1405
        %v1407 = vpop.f32.mrf.mxu0
        %v1408 = vadd.f32 0.0, %v1407
        %1409 = vmatmul.bf16.gmra.mxu0 %v925
        %v1410 = vpop.f32.mrf.mxu0
        %v1411 = vadd.f32 0.0, %v1410
        %v1412 = vpop.f32.mrf.mxu0
        %v1413 = vadd.f32 0.0, %v1412
        %1414 = vmatmul.bf16.gmra.mxu0 %v928
        %v1415 = vpop.f32.mrf.mxu0
        %v1416 = vadd.f32 0.0, %v1415
        %v1417 = vpop.f32.mrf.mxu0
        %v1418 = vadd.f32 0.0, %v1417
        %1419 = vmatmul.bf16.gmra.mxu0 %v931
        %v1420 = vpop.f32.mrf.mxu0
        %v1421 = vadd.f32 0.0, %v1420
        %v1422 = vpop.f32.mrf.mxu0
        %v1423 = vadd.f32 0.0, %v1422
        %1424 = vmatmul.bf16.gmra.mxu0 %v934
        %v1425 = vpop.f32.mrf.mxu0
        %v1426 = vadd.f32 0.0, %v1425
        %v1427 = vpop.f32.mrf.mxu0
        %v1428 = vadd.f32 0.0, %v1427
        %1429 = vmatmul.bf16.gmra.mxu0 %v937
        %v1430 = vpop.f32.mrf.mxu0
        %v1431 = vadd.f32 0.0, %v1430
        %v1432 = vpop.f32.mrf.mxu0
        %v1433 = vadd.f32 0.0, %v1432
        %1434 = vmatmul.bf16.gmra.mxu0 %v940
        %v1435 = vpop.f32.mrf.mxu0
        %v1436 = vadd.f32 0.0, %v1435
        %v1437 = vpop.f32.mrf.mxu0
        %v1438 = vadd.f32 0.0, %v1437
        %1439 = vmatmul.bf16.gmra.mxu0 %v943
        %v1440 = vpop.f32.mrf.mxu0
        %v1441 = vadd.f32 0.0, %v1440
        %v1442 = vpop.f32.mrf.mxu0
        %v1443 = vadd.f32 0.0, %v1442
        %1444 = vmatmul.bf16.gmra.mxu0 %v946
        %v1445 = vpop.f32.mrf.mxu0
        %v1446 = vadd.f32 0.0, %v1445
        %v1447 = vpop.f32.mrf.mxu0
        %v1448 = vadd.f32 0.0, %v1447
        %1449 = vmatmul.bf16.gmra.mxu0 %v949
        %v1450 = vpop.f32.mrf.mxu0
        %v1451 = vadd.f32 0.0, %v1450
        %v1452 = vpop.f32.mrf.mxu0
        %v1453 = vadd.f32 0.0, %v1452
        %1454 = vmatmul.bf16.gmra.mxu0 %v952
        %v1455 = vpop.f32.mrf.mxu0
        %v1456 = vadd.f32 0.0, %v1455
        %v1457 = vpop.f32.mrf.mxu0
        %v1458 = vadd.f32 0.0, %v1457
        %1459 = vdwg.mxu0
        %1460 = vmatpush.bf16.msra.mxu0 %v1225
        %1461 = vmatpush.bf16.msra.mxu0 %v1223
        %1462 = vmatpush.bf16.msra.mxu0 %v1221
        %1463 = vmatpush.bf16.msra.mxu0 %v1219
        %1464 = vmatpush.bf16.msra.mxu0 %v1217
        %1465 = vmatpush.bf16.msra.mxu0 %v1215
        %1466 = vmatpush.bf16.msra.mxu0 %v1213
        %1467 = vmatpush.bf16.msra.mxu0 %v1211
        %1468 = vmatmul.bf16.gmra.mxu0 %v860
        %v1469 = vpop.f32.mrf.mxu0
        %v1470 = vadd.f32 %v1301, %v1469
        %v1471 = vpop.f32.mrf.mxu0
        %v1472 = vadd.f32 %v1303, %v1471
        %1473 = vmatmul.bf16.gmra.mxu0 %v863
        %v1474 = vpop.f32.mrf.mxu0
        %v1475 = vadd.f32 %v1306, %v1474
        %v1476 = vpop.f32.mrf.mxu0
        %v1477 = vadd.f32 %v1308, %v1476
        %1478 = vmatmul.bf16.gmra.mxu0 %v866
        %v1479 = vpop.f32.mrf.mxu0
        %v1480 = vadd.f32 %v1311, %v1479
        %v1481 = vpop.f32.mrf.mxu0
        %v1482 = vadd.f32 %v1313, %v1481
        %1483 = vmatmul.bf16.gmra.mxu0 %v869
        %v1484 = vpop.f32.mrf.mxu0
        %v1485 = vadd.f32 %v1316, %v1484
        %v1486 = vpop.f32.mrf.mxu0
        %v1487 = vadd.f32 %v1318, %v1486
        %1488 = vmatmul.bf16.gmra.mxu0 %v872
        %v1489 = vpop.f32.mrf.mxu0
        %v1490 = vadd.f32 %v1321, %v1489
        %v1491 = vpop.f32.mrf.mxu0
        %v1492 = vadd.f32 %v1323, %v1491
        %1493 = vmatmul.bf16.gmra.mxu0 %v875
        %v1494 = vpop.f32.mrf.mxu0
        %v1495 = vadd.f32 %v1326, %v1494
        %v1496 = vpop.f32.mrf.mxu0
        %v1497 = vadd.f32 %v1328, %v1496
        %1498 = vmatmul.bf16.gmra.mxu0 %v878
        %v1499 = vpop.f32.mrf.mxu0
        %v1500 = vadd.f32 %v1331, %v1499
        %v1501 = vpop.f32.mrf.mxu0
        %v1502 = vadd.f32 %v1333, %v1501
        %1503 = vmatmul.bf16.gmra.mxu0 %v881
        %v1504 = vpop.f32.mrf.mxu0
        %v1505 = vadd.f32 %v1336, %v1504
        %v1506 = vpop.f32.mrf.mxu0
        %v1507 = vadd.f32 %v1338, %v1506
        %1508 = vmatmul.bf16.gmra.mxu0 %v884
        %v1509 = vpop.f32.mrf.mxu0
        %v1510 = vadd.f32 %v1341, %v1509
        %v1511 = vpop.f32.mrf.mxu0
        %v1512 = vadd.f32 %v1343, %v1511
        %1513 = vmatmul.bf16.gmra.mxu0 %v887
        %v1514 = vpop.f32.mrf.mxu0
        %v1515 = vadd.f32 %v1346, %v1514
        %v1516 = vpop.f32.mrf.mxu0
        %v1517 = vadd.f32 %v1348, %v1516
        %1518 = vmatmul.bf16.gmra.mxu0 %v890
        %v1519 = vpop.f32.mrf.mxu0
        %v1520 = vadd.f32 %v1351, %v1519
        %v1521 = vpop.f32.mrf.mxu0
        %v1522 = vadd.f32 %v1353, %v1521
        %1523 = vmatmul.bf16.gmra.mxu0 %v893
        %v1524 = vpop.f32.mrf.mxu0
        %v1525 = vadd.f32 %v1356, %v1524
        %v1526 = vpop.f32.mrf.mxu0
        %v1527 = vadd.f32 %v1358, %v1526
        %1528 = vmatmul.bf16.gmra.mxu0 %v896
        %v1529 = vpop.f32.mrf.mxu0
        %v1530 = vadd.f32 %v1361, %v1529
        %v1531 = vpop.f32.mrf.mxu0
        %v1532 = vadd.f32 %v1363, %v1531
        %1533 = vmatmul.bf16.gmra.mxu0 %v899
        %v1534 = vpop.f32.mrf.mxu0
        %v1535 = vadd.f32 %v1366, %v1534
        %v1536 = vpop.f32.mrf.mxu0
        %v1537 = vadd.f32 %v1368, %v1536
        %1538 = vmatmul.bf16.gmra.mxu0 %v902
        %v1539 = vpop.f32.mrf.mxu0
        %v1540 = vadd.f32 %v1371, %v1539
        %v1541 = vpop.f32.mrf.mxu0
        %v1542 = vadd.f32 %v1373, %v1541
        %1543 = vmatmul.bf16.gmra.mxu0 %v905
        %v1544 = vpop.f32.mrf.mxu0
        %v1545 = vadd.f32 %v1376, %v1544
        %v1546 = vpop.f32.mrf.mxu0
        %v1547 = vadd.f32 %v1378, %v1546
        %1548 = vmatmul.bf16.gmra.mxu0 %v908
        %v1549 = vpop.f32.mrf.mxu0
        %v1550 = vadd.f32 %v1381, %v1549
        %v1551 = vpop.f32.mrf.mxu0
        %v1552 = vadd.f32 %v1383, %v1551
        %1553 = vmatmul.bf16.gmra.mxu0 %v911
        %v1554 = vpop.f32.mrf.mxu0
        %v1555 = vadd.f32 %v1386, %v1554
        %v1556 = vpop.f32.mrf.mxu0
        %v1557 = vadd.f32 %v1388, %v1556
        %1558 = vmatmul.bf16.gmra.mxu0 %v914
        %v1559 = vpop.f32.mrf.mxu0
        %v1560 = vadd.f32 %v1391, %v1559
        %v1561 = vpop.f32.mrf.mxu0
        %v1562 = vadd.f32 %v1393, %v1561
        %1563 = vmatmul.bf16.gmra.mxu0 %v917
        %v1564 = vpop.f32.mrf.mxu0
        %v1565 = vadd.f32 %v1396, %v1564
        %v1566 = vpop.f32.mrf.mxu0
        %v1567 = vadd.f32 %v1398, %v1566
        %1568 = vmatmul.bf16.gmra.mxu0 %v920
        %v1569 = vpop.f32.mrf.mxu0
        %v1570 = vadd.f32 %v1401, %v1569
        %v1571 = vpop.f32.mrf.mxu0
        %v1572 = vadd.f32 %v1403, %v1571
        %1573 = vmatmul.bf16.gmra.mxu0 %v923
        %v1574 = vpop.f32.mrf.mxu0
        %v1575 = vadd.f32 %v1406, %v1574
        %v1576 = vpop.f32.mrf.mxu0
        %v1577 = vadd.f32 %v1408, %v1576
        %1578 = vmatmul.bf16.gmra.mxu0 %v926
        %v1579 = vpop.f32.mrf.mxu0
        %v1580 = vadd.f32 %v1411, %v1579
        %v1581 = vpop.f32.mrf.mxu0
        %v1582 = vadd.f32 %v1413, %v1581
        %1583 = vmatmul.bf16.gmra.mxu0 %v929
        %v1584 = vpop.f32.mrf.mxu0
        %v1585 = vadd.f32 %v1416, %v1584
        %v1586 = vpop.f32.mrf.mxu0
        %v1587 = vadd.f32 %v1418, %v1586
        %1588 = vmatmul.bf16.gmra.mxu0 %v932
        %v1589 = vpop.f32.mrf.mxu0
        %v1590 = vadd.f32 %v1421, %v1589
        %v1591 = vpop.f32.mrf.mxu0
        %v1592 = vadd.f32 %v1423, %v1591
        %1593 = vmatmul.bf16.gmra.mxu0 %v935
        %v1594 = vpop.f32.mrf.mxu0
        %v1595 = vadd.f32 %v1426, %v1594
        %v1596 = vpop.f32.mrf.mxu0
        %v1597 = vadd.f32 %v1428, %v1596
        %1598 = vmatmul.bf16.gmra.mxu0 %v938
        %v1599 = vpop.f32.mrf.mxu0
        %v1600 = vadd.f32 %v1431, %v1599
        %v1601 = vpop.f32.mrf.mxu0
        %v1602 = vadd.f32 %v1433, %v1601
        %1603 = vmatmul.bf16.gmra.mxu0 %v941
        %v1604 = vpop.f32.mrf.mxu0
        %v1605 = vadd.f32 %v1436, %v1604
        %v1606 = vpop.f32.mrf.mxu0
        %v1607 = vadd.f32 %v1438, %v1606
        %1608 = vmatmul.bf16.gmra.mxu0 %v944
        %v1609 = vpop.f32.mrf.mxu0
        %v1610 = vadd.f32 %v1441, %v1609
        %v1611 = vpop.f32.mrf.mxu0
        %v1612 = vadd.f32 %v1443, %v1611
        %1613 = vmatmul.bf16.gmra.mxu0 %v947
        %v1614 = vpop.f32.mrf.mxu0
        %v1615 = vadd.f32 %v1446, %v1614
        %v1616 = vpop.f32.mrf.mxu0
        %v1617 = vadd.f32 %v1448, %v1616
        %1618 = vmatmul.bf16.gmra.mxu0 %v950
        %v1619 = vpop.f32.mrf.mxu0
        %v1620 = vadd.f32 %v1451, %v1619
        %v1621 = vpop.f32.mrf.mxu0
        %v1622 = vadd.f32 %v1453, %v1621
        %1623 = vmatmul.bf16.gmra.mxu0 %v953
        %v1624 = vpop.f32.mrf.mxu0
        %v1625 = vadd.f32 %v1456, %v1624
        %v1626 = vpop.f32.mrf.mxu0
        %v1627 = vadd.f32 %v1458, %v1626
        %1628 = vdwg.mxu0
        %1629 = vmatpush.bf16.msra.mxu0 %v1241
        %1630 = vmatpush.bf16.msra.mxu0 %v1239
        %1631 = vmatpush.bf16.msra.mxu0 %v1237
        %1632 = vmatpush.bf16.msra.mxu0 %v1235
        %1633 = vmatpush.bf16.msra.mxu0 %v1233
        %1634 = vmatpush.bf16.msra.mxu0 %v1231
        %1635 = vmatpush.bf16.msra.mxu0 %v1229
        %1636 = vmatpush.bf16.msra.mxu0 %v1227
        %1637 = vmatmul.bf16.gmra.mxu0 %v861
        %v1638 = vpop.f32.mrf.mxu0
        %v1639 = vadd.f32 %v1470, %v1638
        %v1640 = vpop.f32.mrf.mxu0
        %v1641 = vadd.f32 %v1472, %v1640
        %1642 = vmatmul.bf16.gmra.mxu0 %v864
        %v1643 = vpop.f32.mrf.mxu0
        %v1644 = vadd.f32 %v1475, %v1643
        %v1645 = vpop.f32.mrf.mxu0
        %v1646 = vadd.f32 %v1477, %v1645
        %1647 = vmatmul.bf16.gmra.mxu0 %v867
        %v1648 = vpop.f32.mrf.mxu0
        %v1649 = vadd.f32 %v1480, %v1648
        %v1650 = vpop.f32.mrf.mxu0
        %v1651 = vadd.f32 %v1482, %v1650
        %1652 = vmatmul.bf16.gmra.mxu0 %v870
        %v1653 = vpop.f32.mrf.mxu0
        %v1654 = vadd.f32 %v1485, %v1653
        %v1655 = vpop.f32.mrf.mxu0
        %v1656 = vadd.f32 %v1487, %v1655
        %1657 = vmatmul.bf16.gmra.mxu0 %v873
        %v1658 = vpop.f32.mrf.mxu0
        %v1659 = vadd.f32 %v1490, %v1658
        %v1660 = vpop.f32.mrf.mxu0
        %v1661 = vadd.f32 %v1492, %v1660
        %1662 = vmatmul.bf16.gmra.mxu0 %v876
        %v1663 = vpop.f32.mrf.mxu0
        %v1664 = vadd.f32 %v1495, %v1663
        %v1665 = vpop.f32.mrf.mxu0
        %v1666 = vadd.f32 %v1497, %v1665
        %1667 = vmatmul.bf16.gmra.mxu0 %v879
        %v1668 = vpop.f32.mrf.mxu0
        %v1669 = vadd.f32 %v1500, %v1668
        %v1670 = vpop.f32.mrf.mxu0
        %v1671 = vadd.f32 %v1502, %v1670
        %1672 = vmatmul.bf16.gmra.mxu0 %v882
        %v1673 = vpop.f32.mrf.mxu0
        %v1674 = vadd.f32 %v1505, %v1673
        %v1675 = vpop.f32.mrf.mxu0
        %v1676 = vadd.f32 %v1507, %v1675
        %1677 = vmatmul.bf16.gmra.mxu0 %v885
        %v1678 = vpop.f32.mrf.mxu0
        %v1679 = vadd.f32 %v1510, %v1678
        %v1680 = vpop.f32.mrf.mxu0
        %v1681 = vadd.f32 %v1512, %v1680
        %1682 = vmatmul.bf16.gmra.mxu0 %v888
        %v1683 = vpop.f32.mrf.mxu0
        %v1684 = vadd.f32 %v1515, %v1683
        %v1685 = vpop.f32.mrf.mxu0
        %v1686 = vadd.f32 %v1517, %v1685
        %1687 = vmatmul.bf16.gmra.mxu0 %v891
        %v1688 = vpop.f32.mrf.mxu0
        %v1689 = vadd.f32 %v1520, %v1688
        %v1690 = vpop.f32.mrf.mxu0
        %v1691 = vadd.f32 %v1522, %v1690
        %1692 = vmatmul.bf16.gmra.mxu0 %v894
        %v1693 = vpop.f32.mrf.mxu0
        %v1694 = vadd.f32 %v1525, %v1693
        %v1695 = vpop.f32.mrf.mxu0
        %v1696 = vadd.f32 %v1527, %v1695
        %1697 = vmatmul.bf16.gmra.mxu0 %v897
        %v1698 = vpop.f32.mrf.mxu0
        %v1699 = vadd.f32 %v1530, %v1698
        %v1700 = vpop.f32.mrf.mxu0
        %v1701 = vadd.f32 %v1532, %v1700
        %1702 = vmatmul.bf16.gmra.mxu0 %v900
        %v1703 = vpop.f32.mrf.mxu0
        %v1704 = vadd.f32 %v1535, %v1703
        %v1705 = vpop.f32.mrf.mxu0
        %v1706 = vadd.f32 %v1537, %v1705
        %1707 = vmatmul.bf16.gmra.mxu0 %v903
        %v1708 = vpop.f32.mrf.mxu0
        %v1709 = vadd.f32 %v1540, %v1708
        %v1710 = vpop.f32.mrf.mxu0
        %v1711 = vadd.f32 %v1542, %v1710
        %1712 = vmatmul.bf16.gmra.mxu0 %v906
        %v1713 = vpop.f32.mrf.mxu0
        %v1714 = vadd.f32 %v1545, %v1713
        %v1715 = vpop.f32.mrf.mxu0
        %v1716 = vadd.f32 %v1547, %v1715
        %1717 = vmatmul.bf16.gmra.mxu0 %v909
        %v1718 = vpop.f32.mrf.mxu0
        %v1719 = vadd.f32 %v1550, %v1718
        %v1720 = vpop.f32.mrf.mxu0
        %v1721 = vadd.f32 %v1552, %v1720
        %1722 = vmatmul.bf16.gmra.mxu0 %v912
        %v1723 = vpop.f32.mrf.mxu0
        %v1724 = vadd.f32 %v1555, %v1723
        %v1725 = vpop.f32.mrf.mxu0
        %v1726 = vadd.f32 %v1557, %v1725
        %1727 = vmatmul.bf16.gmra.mxu0 %v915
        %v1728 = vpop.f32.mrf.mxu0
        %v1729 = vadd.f32 %v1560, %v1728
        %v1730 = vpop.f32.mrf.mxu0
        %v1731 = vadd.f32 %v1562, %v1730
        %1732 = vmatmul.bf16.gmra.mxu0 %v918
        %v1733 = vpop.f32.mrf.mxu0
        %v1734 = vadd.f32 %v1565, %v1733
        %v1735 = vpop.f32.mrf.mxu0
        %v1736 = vadd.f32 %v1567, %v1735
        %1737 = vmatmul.bf16.gmra.mxu0 %v921
        %v1738 = vpop.f32.mrf.mxu0
        %v1739 = vadd.f32 %v1570, %v1738
        %v1740 = vpop.f32.mrf.mxu0
        %v1741 = vadd.f32 %v1572, %v1740
        %1742 = vmatmul.bf16.gmra.mxu0 %v924
        %v1743 = vpop.f32.mrf.mxu0
        %v1744 = vadd.f32 %v1575, %v1743
        %v1745 = vpop.f32.mrf.mxu0
        %v1746 = vadd.f32 %v1577, %v1745
        %1747 = vmatmul.bf16.gmra.mxu0 %v927
        %v1748 = vpop.f32.mrf.mxu0
        %v1749 = vadd.f32 %v1580, %v1748
        %v1750 = vpop.f32.mrf.mxu0
        %v1751 = vadd.f32 %v1582, %v1750
        %1752 = vmatmul.bf16.gmra.mxu0 %v930
        %v1753 = vpop.f32.mrf.mxu0
        %v1754 = vadd.f32 %v1585, %v1753
        %v1755 = vpop.f32.mrf.mxu0
        %v1756 = vadd.f32 %v1587, %v1755
        %1757 = vmatmul.bf16.gmra.mxu0 %v933
        %v1758 = vpop.f32.mrf.mxu0
        %v1759 = vadd.f32 %v1590, %v1758
        %v1760 = vpop.f32.mrf.mxu0
        %v1761 = vadd.f32 %v1592, %v1760
        %1762 = vmatmul.bf16.gmra.mxu0 %v936
        %v1763 = vpop.f32.mrf.mxu0
        %v1764 = vadd.f32 %v1595, %v1763
        %v1765 = vpop.f32.mrf.mxu0
        %v1766 = vadd.f32 %v1597, %v1765
        %1767 = vmatmul.bf16.gmra.mxu0 %v939
        %v1768 = vpop.f32.mrf.mxu0
        %v1769 = vadd.f32 %v1600, %v1768
        %v1770 = vpop.f32.mrf.mxu0
        %v1771 = vadd.f32 %v1602, %v1770
        %1772 = vmatmul.bf16.gmra.mxu0 %v942
        %v1773 = vpop.f32.mrf.mxu0
        %v1774 = vadd.f32 %v1605, %v1773
        %v1775 = vpop.f32.mrf.mxu0
        %v1776 = vadd.f32 %v1607, %v1775
        %1777 = vmatmul.bf16.gmra.mxu0 %v945
        %v1778 = vpop.f32.mrf.mxu0
        %v1779 = vadd.f32 %v1610, %v1778
        %v1780 = vpop.f32.mrf.mxu0
        %v1781 = vadd.f32 %v1612, %v1780
        %1782 = vmatmul.bf16.gmra.mxu0 %v948
        %v1783 = vpop.f32.mrf.mxu0
        %v1784 = vadd.f32 %v1615, %v1783
        %v1785 = vpop.f32.mrf.mxu0
        %v1786 = vadd.f32 %v1617, %v1785
        %1787 = vmatmul.bf16.gmra.mxu0 %v951
        %v1788 = vpop.f32.mrf.mxu0
        %v1789 = vadd.f32 %v1620, %v1788
        %v1790 = vpop.f32.mrf.mxu0
        %v1791 = vadd.f32 %v1622, %v1790
        %1792 = vmatmul.bf16.gmra.mxu0 %v954
        %v1793 = vpop.f32.mrf.mxu0
        %v1794 = vadd.f32 %v1625, %v1793
        %v1795 = vpop.f32.mrf.mxu0
        %v1796 = vadd.f32 %v1627, %v1795
        %1797 = vdwg.mxu0
        %1798 = vmatpush.bf16.msra.mxu0 %v1210
        %1799 = vmatpush.bf16.msra.mxu0 %v1208
        %1800 = vmatpush.bf16.msra.mxu0 %v1206
        %1801 = vmatpush.bf16.msra.mxu0 %v1204
        %1802 = vmatpush.bf16.msra.mxu0 %v1202
        %1803 = vmatpush.bf16.msra.mxu0 %v1200
        %1804 = vmatpush.bf16.msra.mxu0 %v1198
        %1805 = vmatpush.bf16.msra.mxu0 %v1196
        %1806 = vmatmul.bf16.gmra.mxu0 %v859
        %v1807 = vpop.f32.mrf.mxu0
        %v1808 = vadd.f32 0.0, %v1807
        %v1809 = vpop.f32.mrf.mxu0
        %v1810 = vadd.f32 0.0, %v1809
        %1811 = vmatmul.bf16.gmra.mxu0 %v862
        %v1812 = vpop.f32.mrf.mxu0
        %v1813 = vadd.f32 0.0, %v1812
        %v1814 = vpop.f32.mrf.mxu0
        %v1815 = vadd.f32 0.0, %v1814
        %1816 = vmatmul.bf16.gmra.mxu0 %v865
        %v1817 = vpop.f32.mrf.mxu0
        %v1818 = vadd.f32 0.0, %v1817
        %v1819 = vpop.f32.mrf.mxu0
        %v1820 = vadd.f32 0.0, %v1819
        %1821 = vmatmul.bf16.gmra.mxu0 %v868
        %v1822 = vpop.f32.mrf.mxu0
        %v1823 = vadd.f32 0.0, %v1822
        %v1824 = vpop.f32.mrf.mxu0
        %v1825 = vadd.f32 0.0, %v1824
        %1826 = vmatmul.bf16.gmra.mxu0 %v871
        %v1827 = vpop.f32.mrf.mxu0
        %v1828 = vadd.f32 0.0, %v1827
        %v1829 = vpop.f32.mrf.mxu0
        %v1830 = vadd.f32 0.0, %v1829
        %1831 = vmatmul.bf16.gmra.mxu0 %v874
        %v1832 = vpop.f32.mrf.mxu0
        %v1833 = vadd.f32 0.0, %v1832
        %v1834 = vpop.f32.mrf.mxu0
        %v1835 = vadd.f32 0.0, %v1834
        %1836 = vmatmul.bf16.gmra.mxu0 %v877
        %v1837 = vpop.f32.mrf.mxu0
        %v1838 = vadd.f32 0.0, %v1837
        %v1839 = vpop.f32.mrf.mxu0
        %v1840 = vadd.f32 0.0, %v1839
        %1841 = vmatmul.bf16.gmra.mxu0 %v880
        %v1842 = vpop.f32.mrf.mxu0
        %v1843 = vadd.f32 0.0, %v1842
        %v1844 = vpop.f32.mrf.mxu0
        %v1845 = vadd.f32 0.0, %v1844
        %1846 = vmatmul.bf16.gmra.mxu0 %v883
        %v1847 = vpop.f32.mrf.mxu0
        %v1848 = vadd.f32 0.0, %v1847
        %v1849 = vpop.f32.mrf.mxu0
        %v1850 = vadd.f32 0.0, %v1849
        %1851 = vmatmul.bf16.gmra.mxu0 %v886
        %v1852 = vpop.f32.mrf.mxu0
        %v1853 = vadd.f32 0.0, %v1852
        %v1854 = vpop.f32.mrf.mxu0
        %v1855 = vadd.f32 0.0, %v1854
        %1856 = vmatmul.bf16.gmra.mxu0 %v889
        %v1857 = vpop.f32.mrf.mxu0
        %v1858 = vadd.f32 0.0, %v1857
        %v1859 = vpop.f32.mrf.mxu0
        %v1860 = vadd.f32 0.0, %v1859
        %1861 = vmatmul.bf16.gmra.mxu0 %v892
        %v1862 = vpop.f32.mrf.mxu0
        %v1863 = vadd.f32 0.0, %v1862
        %v1864 = vpop.f32.mrf.mxu0
        %v1865 = vadd.f32 0.0, %v1864
        %1866 = vmatmul.bf16.gmra.mxu0 %v895
        %v1867 = vpop.f32.mrf.mxu0
        %v1868 = vadd.f32 0.0, %v1867
        %v1869 = vpop.f32.mrf.mxu0
        %v1870 = vadd.f32 0.0, %v1869
        %1871 = vmatmul.bf16.gmra.mxu0 %v898
        %v1872 = vpop.f32.mrf.mxu0
        %v1873 = vadd.f32 0.0, %v1872
        %v1874 = vpop.f32.mrf.mxu0
        %v1875 = vadd.f32 0.0, %v1874
        %1876 = vmatmul.bf16.gmra.mxu0 %v901
        %v1877 = vpop.f32.mrf.mxu0
        %v1878 = vadd.f32 0.0, %v1877
        %v1879 = vpop.f32.mrf.mxu0
        %v1880 = vadd.f32 0.0, %v1879
        %1881 = vmatmul.bf16.gmra.mxu0 %v904
        %v1882 = vpop.f32.mrf.mxu0
        %v1883 = vadd.f32 0.0, %v1882
        %v1884 = vpop.f32.mrf.mxu0
        %v1885 = vadd.f32 0.0, %v1884
        %1886 = vmatmul.bf16.gmra.mxu0 %v907
        %v1887 = vpop.f32.mrf.mxu0
        %v1888 = vadd.f32 0.0, %v1887
        %v1889 = vpop.f32.mrf.mxu0
        %v1890 = vadd.f32 0.0, %v1889
        %1891 = vmatmul.bf16.gmra.mxu0 %v910
        %v1892 = vpop.f32.mrf.mxu0
        %v1893 = vadd.f32 0.0, %v1892
        %v1894 = vpop.f32.mrf.mxu0
        %v1895 = vadd.f32 0.0, %v1894
        %1896 = vmatmul.bf16.gmra.mxu0 %v913
        %v1897 = vpop.f32.mrf.mxu0
        %v1898 = vadd.f32 0.0, %v1897
        %v1899 = vpop.f32.mrf.mxu0
        %v1900 = vadd.f32 0.0, %v1899
        %1901 = vmatmul.bf16.gmra.mxu0 %v916
        %v1902 = vpop.f32.mrf.mxu0
        %v1903 = vadd.f32 0.0, %v1902
        %v1904 = vpop.f32.mrf.mxu0
        %v1905 = vadd.f32 0.0, %v1904
        %1906 = vmatmul.bf16.gmra.mxu0 %v919
        %v1907 = vpop.f32.mrf.mxu0
        %v1908 = vadd.f32 0.0, %v1907
        %v1909 = vpop.f32.mrf.mxu0
        %v1910 = vadd.f32 0.0, %v1909
        %1911 = vmatmul.bf16.gmra.mxu0 %v922
        %v1912 = vpop.f32.mrf.mxu0
        %v1913 = vadd.f32 0.0, %v1912
        %v1914 = vpop.f32.mrf.mxu0
        %v1915 = vadd.f32 0.0, %v1914
        %1916 = vmatmul.bf16.gmra.mxu0 %v925
        %v1917 = vpop.f32.mrf.mxu0
        %v1918 = vadd.f32 0.0, %v1917
        %v1919 = vpop.f32.mrf.mxu0
        %v1920 = vadd.f32 0.0, %v1919
        %1921 = vmatmul.bf16.gmra.mxu0 %v928
        %v1922 = vpop.f32.mrf.mxu0
        %v1923 = vadd.f32 0.0, %v1922
        %v1924 = vpop.f32.mrf.mxu0
        %v1925 = vadd.f32 0.0, %v1924
        %1926 = vmatmul.bf16.gmra.mxu0 %v931
        %v1927 = vpop.f32.mrf.mxu0
        %v1928 = vadd.f32 0.0, %v1927
        %v1929 = vpop.f32.mrf.mxu0
        %v1930 = vadd.f32 0.0, %v1929
        %1931 = vmatmul.bf16.gmra.mxu0 %v934
        %v1932 = vpop.f32.mrf.mxu0
        %v1933 = vadd.f32 0.0, %v1932
        %v1934 = vpop.f32.mrf.mxu0
        %v1935 = vadd.f32 0.0, %v1934
        %1936 = vmatmul.bf16.gmra.mxu0 %v937
        %v1937 = vpop.f32.mrf.mxu0
        %v1938 = vadd.f32 0.0, %v1937
        %v1939 = vpop.f32.mrf.mxu0
        %v1940 = vadd.f32 0.0, %v1939
        %1941 = vmatmul.bf16.gmra.mxu0 %v940
        %v1942 = vpop.f32.mrf.mxu0
        %v1943 = vadd.f32 0.0, %v1942
        %v1944 = vpop.f32.mrf.mxu0
        %v1945 = vadd.f32 0.0, %v1944
        %1946 = vmatmul.bf16.gmra.mxu0 %v943
        %v1947 = vpop.f32.mrf.mxu0
        %v1948 = vadd.f32 0.0, %v1947
        %v1949 = vpop.f32.mrf.mxu0
        %v1950 = vadd.f32 0.0, %v1949
        %1951 = vmatmul.bf16.gmra.mxu0 %v946
        %v1952 = vpop.f32.mrf.mxu0
        %v1953 = vadd.f32 0.0, %v1952
        %v1954 = vpop.f32.mrf.mxu0
        %v1955 = vadd.f32 0.0, %v1954
        %1956 = vmatmul.bf16.gmra.mxu0 %v949
        %v1957 = vpop.f32.mrf.mxu0
        %v1958 = vadd.f32 0.0, %v1957
        %v1959 = vpop.f32.mrf.mxu0
        %v1960 = vadd.f32 0.0, %v1959
        %1961 = vmatmul.bf16.gmra.mxu0 %v952
        %v1962 = vpop.f32.mrf.mxu0
        %v1963 = vadd.f32 0.0, %v1962
        %v1964 = vpop.f32.mrf.mxu0
        %v1965 = vadd.f32 0.0, %v1964
        %1966 = vdwg.mxu0
        %1967 = vmatpush.bf16.msra.mxu0 %v1226
        %1968 = vmatpush.bf16.msra.mxu0 %v1224
        %1969 = vmatpush.bf16.msra.mxu0 %v1222
        %1970 = vmatpush.bf16.msra.mxu0 %v1220
        %1971 = vmatpush.bf16.msra.mxu0 %v1218
        %1972 = vmatpush.bf16.msra.mxu0 %v1216
        %1973 = vmatpush.bf16.msra.mxu0 %v1214
        %1974 = vmatpush.bf16.msra.mxu0 %v1212
        %1975 = vmatmul.bf16.gmra.mxu0 %v860
        %v1976 = vpop.f32.mrf.mxu0
        %v1977 = vadd.f32 %v1808, %v1976
        %v1978 = vpop.f32.mrf.mxu0
        %v1979 = vadd.f32 %v1810, %v1978
        %1980 = vmatmul.bf16.gmra.mxu0 %v863
        %v1981 = vpop.f32.mrf.mxu0
        %v1982 = vadd.f32 %v1813, %v1981
        %v1983 = vpop.f32.mrf.mxu0
        %v1984 = vadd.f32 %v1815, %v1983
        %1985 = vmatmul.bf16.gmra.mxu0 %v866
        %v1986 = vpop.f32.mrf.mxu0
        %v1987 = vadd.f32 %v1818, %v1986
        %v1988 = vpop.f32.mrf.mxu0
        %v1989 = vadd.f32 %v1820, %v1988
        %1990 = vmatmul.bf16.gmra.mxu0 %v869
        %v1991 = vpop.f32.mrf.mxu0
        %v1992 = vadd.f32 %v1823, %v1991
        %v1993 = vpop.f32.mrf.mxu0
        %v1994 = vadd.f32 %v1825, %v1993
        %1995 = vmatmul.bf16.gmra.mxu0 %v872
        %v1996 = vpop.f32.mrf.mxu0
        %v1997 = vadd.f32 %v1828, %v1996
        %v1998 = vpop.f32.mrf.mxu0
        %v1999 = vadd.f32 %v1830, %v1998
        %2000 = vmatmul.bf16.gmra.mxu0 %v875
        %v2001 = vpop.f32.mrf.mxu0
        %v2002 = vadd.f32 %v1833, %v2001
        %v2003 = vpop.f32.mrf.mxu0
        %v2004 = vadd.f32 %v1835, %v2003
        %2005 = vmatmul.bf16.gmra.mxu0 %v878
        %v2006 = vpop.f32.mrf.mxu0
        %v2007 = vadd.f32 %v1838, %v2006
        %v2008 = vpop.f32.mrf.mxu0
        %v2009 = vadd.f32 %v1840, %v2008
        %2010 = vmatmul.bf16.gmra.mxu0 %v881
        %v2011 = vpop.f32.mrf.mxu0
        %v2012 = vadd.f32 %v1843, %v2011
        %v2013 = vpop.f32.mrf.mxu0
        %v2014 = vadd.f32 %v1845, %v2013
        %2015 = vmatmul.bf16.gmra.mxu0 %v884
        %v2016 = vpop.f32.mrf.mxu0
        %v2017 = vadd.f32 %v1848, %v2016
        %v2018 = vpop.f32.mrf.mxu0
        %v2019 = vadd.f32 %v1850, %v2018
        %2020 = vmatmul.bf16.gmra.mxu0 %v887
        %v2021 = vpop.f32.mrf.mxu0
        %v2022 = vadd.f32 %v1853, %v2021
        %v2023 = vpop.f32.mrf.mxu0
        %v2024 = vadd.f32 %v1855, %v2023
        %2025 = vmatmul.bf16.gmra.mxu0 %v890
        %v2026 = vpop.f32.mrf.mxu0
        %v2027 = vadd.f32 %v1858, %v2026
        %v2028 = vpop.f32.mrf.mxu0
        %v2029 = vadd.f32 %v1860, %v2028
        %2030 = vmatmul.bf16.gmra.mxu0 %v893
        %v2031 = vpop.f32.mrf.mxu0
        %v2032 = vadd.f32 %v1863, %v2031
        %v2033 = vpop.f32.mrf.mxu0
        %v2034 = vadd.f32 %v1865, %v2033
        %2035 = vmatmul.bf16.gmra.mxu0 %v896
        %v2036 = vpop.f32.mrf.mxu0
        %v2037 = vadd.f32 %v1868, %v2036
        %v2038 = vpop.f32.mrf.mxu0
        %v2039 = vadd.f32 %v1870, %v2038
        %2040 = vmatmul.bf16.gmra.mxu0 %v899
        %v2041 = vpop.f32.mrf.mxu0
        %v2042 = vadd.f32 %v1873, %v2041
        %v2043 = vpop.f32.mrf.mxu0
        %v2044 = vadd.f32 %v1875, %v2043
        %2045 = vmatmul.bf16.gmra.mxu0 %v902
        %v2046 = vpop.f32.mrf.mxu0
        %v2047 = vadd.f32 %v1878, %v2046
        %v2048 = vpop.f32.mrf.mxu0
        %v2049 = vadd.f32 %v1880, %v2048
        %2050 = vmatmul.bf16.gmra.mxu0 %v905
        %v2051 = vpop.f32.mrf.mxu0
        %v2052 = vadd.f32 %v1883, %v2051
        %v2053 = vpop.f32.mrf.mxu0
        %v2054 = vadd.f32 %v1885, %v2053
        %2055 = vmatmul.bf16.gmra.mxu0 %v908
        %v2056 = vpop.f32.mrf.mxu0
        %v2057 = vadd.f32 %v1888, %v2056
        %v2058 = vpop.f32.mrf.mxu0
        %v2059 = vadd.f32 %v1890, %v2058
        %2060 = vmatmul.bf16.gmra.mxu0 %v911
        %v2061 = vpop.f32.mrf.mxu0
        %v2062 = vadd.f32 %v1893, %v2061
        %v2063 = vpop.f32.mrf.mxu0
        %v2064 = vadd.f32 %v1895, %v2063
        %2065 = vmatmul.bf16.gmra.mxu0 %v914
        %v2066 = vpop.f32.mrf.mxu0
        %v2067 = vadd.f32 %v1898, %v2066
        %v2068 = vpop.f32.mrf.mxu0
        %v2069 = vadd.f32 %v1900, %v2068
        %2070 = vmatmul.bf16.gmra.mxu0 %v917
        %v2071 = vpop.f32.mrf.mxu0
        %v2072 = vadd.f32 %v1903, %v2071
        %v2073 = vpop.f32.mrf.mxu0
        %v2074 = vadd.f32 %v1905, %v2073
        %2075 = vmatmul.bf16.gmra.mxu0 %v920
        %v2076 = vpop.f32.mrf.mxu0
        %v2077 = vadd.f32 %v1908, %v2076
        %v2078 = vpop.f32.mrf.mxu0
        %v2079 = vadd.f32 %v1910, %v2078
        %2080 = vmatmul.bf16.gmra.mxu0 %v923
        %v2081 = vpop.f32.mrf.mxu0
        %v2082 = vadd.f32 %v1913, %v2081
        %v2083 = vpop.f32.mrf.mxu0
        %v2084 = vadd.f32 %v1915, %v2083
        %2085 = vmatmul.bf16.gmra.mxu0 %v926
        %v2086 = vpop.f32.mrf.mxu0
        %v2087 = vadd.f32 %v1918, %v2086
        %v2088 = vpop.f32.mrf.mxu0
        %v2089 = vadd.f32 %v1920, %v2088
        %2090 = vmatmul.bf16.gmra.mxu0 %v929
        %v2091 = vpop.f32.mrf.mxu0
        %v2092 = vadd.f32 %v1923, %v2091
        %v2093 = vpop.f32.mrf.mxu0
        %v2094 = vadd.f32 %v1925, %v2093
        %2095 = vmatmul.bf16.gmra.mxu0 %v932
        %v2096 = vpop.f32.mrf.mxu0
        %v2097 = vadd.f32 %v1928, %v2096
        %v2098 = vpop.f32.mrf.mxu0
        %v2099 = vadd.f32 %v1930, %v2098
        %2100 = vmatmul.bf16.gmra.mxu0 %v935
        %v2101 = vpop.f32.mrf.mxu0
        %v2102 = vadd.f32 %v1933, %v2101
        %v2103 = vpop.f32.mrf.mxu0
        %v2104 = vadd.f32 %v1935, %v2103
        %2105 = vmatmul.bf16.gmra.mxu0 %v938
        %v2106 = vpop.f32.mrf.mxu0
        %v2107 = vadd.f32 %v1938, %v2106
        %v2108 = vpop.f32.mrf.mxu0
        %v2109 = vadd.f32 %v1940, %v2108
        %2110 = vmatmul.bf16.gmra.mxu0 %v941
        %v2111 = vpop.f32.mrf.mxu0
        %v2112 = vadd.f32 %v1943, %v2111
        %v2113 = vpop.f32.mrf.mxu0
        %v2114 = vadd.f32 %v1945, %v2113
        %2115 = vmatmul.bf16.gmra.mxu0 %v944
        %v2116 = vpop.f32.mrf.mxu0
        %v2117 = vadd.f32 %v1948, %v2116
        %v2118 = vpop.f32.mrf.mxu0
        %v2119 = vadd.f32 %v1950, %v2118
        %2120 = vmatmul.bf16.gmra.mxu0 %v947
        %v2121 = vpop.f32.mrf.mxu0
        %v2122 = vadd.f32 %v1953, %v2121
        %v2123 = vpop.f32.mrf.mxu0
        %v2124 = vadd.f32 %v1955, %v2123
        %2125 = vmatmul.bf16.gmra.mxu0 %v950
        %v2126 = vpop.f32.mrf.mxu0
        %v2127 = vadd.f32 %v1958, %v2126
        %v2128 = vpop.f32.mrf.mxu0
        %v2129 = vadd.f32 %v1960, %v2128
        %2130 = vmatmul.bf16.gmra.mxu0 %v953
        %v2131 = vpop.f32.mrf.mxu0
        %v2132 = vadd.f32 %v1963, %v2131
        %v2133 = vpop.f32.mrf.mxu0
        %v2134 = vadd.f32 %v1965, %v2133
        %2135 = vdwg.mxu0
        %2136 = vmatpush.bf16.msra.mxu0 %v1242
        %2137 = vmatpush.bf16.msra.mxu0 %v1240
        %2138 = vmatpush.bf16.msra.mxu0 %v1238
        %2139 = vmatpush.bf16.msra.mxu0 %v1236
        %2140 = vmatpush.bf16.msra.mxu0 %v1234
        %2141 = vmatpush.bf16.msra.mxu0 %v1232
        %2142 = vmatpush.bf16.msra.mxu0 %v1230
        %2143 = vmatpush.bf16.msra.mxu0 %v1228
        %2144 = vmatmul.bf16.gmra.mxu0 %v861
        %v2145 = vpop.f32.mrf.mxu0
        %v2146 = vadd.f32 %v1977, %v2145
        %v2147 = vpop.f32.mrf.mxu0
        %v2148 = vadd.f32 %v1979, %v2147
        %2149 = vmatmul.bf16.gmra.mxu0 %v864
        %v2150 = vpop.f32.mrf.mxu0
        %v2151 = vadd.f32 %v1982, %v2150
        %v2152 = vpop.f32.mrf.mxu0
        %v2153 = vadd.f32 %v1984, %v2152
        %2154 = vmatmul.bf16.gmra.mxu0 %v867
        %v2155 = vpop.f32.mrf.mxu0
        %v2156 = vadd.f32 %v1987, %v2155
        %v2157 = vpop.f32.mrf.mxu0
        %v2158 = vadd.f32 %v1989, %v2157
        %2159 = vmatmul.bf16.gmra.mxu0 %v870
        %v2160 = vpop.f32.mrf.mxu0
        %v2161 = vadd.f32 %v1992, %v2160
        %v2162 = vpop.f32.mrf.mxu0
        %v2163 = vadd.f32 %v1994, %v2162
        %2164 = vmatmul.bf16.gmra.mxu0 %v873
        %v2165 = vpop.f32.mrf.mxu0
        %v2166 = vadd.f32 %v1997, %v2165
        %v2167 = vpop.f32.mrf.mxu0
        %v2168 = vadd.f32 %v1999, %v2167
        %2169 = vmatmul.bf16.gmra.mxu0 %v876
        %v2170 = vpop.f32.mrf.mxu0
        %v2171 = vadd.f32 %v2002, %v2170
        %v2172 = vpop.f32.mrf.mxu0
        %v2173 = vadd.f32 %v2004, %v2172
        %2174 = vmatmul.bf16.gmra.mxu0 %v879
        %v2175 = vpop.f32.mrf.mxu0
        %v2176 = vadd.f32 %v2007, %v2175
        %v2177 = vpop.f32.mrf.mxu0
        %v2178 = vadd.f32 %v2009, %v2177
        %2179 = vmatmul.bf16.gmra.mxu0 %v882
        %v2180 = vpop.f32.mrf.mxu0
        %v2181 = vadd.f32 %v2012, %v2180
        %v2182 = vpop.f32.mrf.mxu0
        %v2183 = vadd.f32 %v2014, %v2182
        %2184 = vmatmul.bf16.gmra.mxu0 %v885
        %v2185 = vpop.f32.mrf.mxu0
        %v2186 = vadd.f32 %v2017, %v2185
        %v2187 = vpop.f32.mrf.mxu0
        %v2188 = vadd.f32 %v2019, %v2187
        %2189 = vmatmul.bf16.gmra.mxu0 %v888
        %v2190 = vpop.f32.mrf.mxu0
        %v2191 = vadd.f32 %v2022, %v2190
        %v2192 = vpop.f32.mrf.mxu0
        %v2193 = vadd.f32 %v2024, %v2192
        %2194 = vmatmul.bf16.gmra.mxu0 %v891
        %v2195 = vpop.f32.mrf.mxu0
        %v2196 = vadd.f32 %v2027, %v2195
        %v2197 = vpop.f32.mrf.mxu0
        %v2198 = vadd.f32 %v2029, %v2197
        %2199 = vmatmul.bf16.gmra.mxu0 %v894
        %v2200 = vpop.f32.mrf.mxu0
        %v2201 = vadd.f32 %v2032, %v2200
        %v2202 = vpop.f32.mrf.mxu0
        %v2203 = vadd.f32 %v2034, %v2202
        %2204 = vmatmul.bf16.gmra.mxu0 %v897
        %v2205 = vpop.f32.mrf.mxu0
        %v2206 = vadd.f32 %v2037, %v2205
        %v2207 = vpop.f32.mrf.mxu0
        %v2208 = vadd.f32 %v2039, %v2207
        %2209 = vmatmul.bf16.gmra.mxu0 %v900
        %v2210 = vpop.f32.mrf.mxu0
        %v2211 = vadd.f32 %v2042, %v2210
        %v2212 = vpop.f32.mrf.mxu0
        %v2213 = vadd.f32 %v2044, %v2212
        %2214 = vmatmul.bf16.gmra.mxu0 %v903
        %v2215 = vpop.f32.mrf.mxu0
        %v2216 = vadd.f32 %v2047, %v2215
        %v2217 = vpop.f32.mrf.mxu0
        %v2218 = vadd.f32 %v2049, %v2217
        %2219 = vmatmul.bf16.gmra.mxu0 %v906
        %v2220 = vpop.f32.mrf.mxu0
        %v2221 = vadd.f32 %v2052, %v2220
        %v2222 = vpop.f32.mrf.mxu0
        %v2223 = vadd.f32 %v2054, %v2222
        %2224 = vmatmul.bf16.gmra.mxu0 %v909
        %v2225 = vpop.f32.mrf.mxu0
        %v2226 = vadd.f32 %v2057, %v2225
        %v2227 = vpop.f32.mrf.mxu0
        %v2228 = vadd.f32 %v2059, %v2227
        %2229 = vmatmul.bf16.gmra.mxu0 %v912
        %v2230 = vpop.f32.mrf.mxu0
        %v2231 = vadd.f32 %v2062, %v2230
        %v2232 = vpop.f32.mrf.mxu0
        %v2233 = vadd.f32 %v2064, %v2232
        %2234 = vmatmul.bf16.gmra.mxu0 %v915
        %v2235 = vpop.f32.mrf.mxu0
        %v2236 = vadd.f32 %v2067, %v2235
        %v2237 = vpop.f32.mrf.mxu0
        %v2238 = vadd.f32 %v2069, %v2237
        %2239 = vmatmul.bf16.gmra.mxu0 %v918
        %v2240 = vpop.f32.mrf.mxu0
        %v2241 = vadd.f32 %v2072, %v2240
        %v2242 = vpop.f32.mrf.mxu0
        %v2243 = vadd.f32 %v2074, %v2242
        %2244 = vmatmul.bf16.gmra.mxu0 %v921
        %v2245 = vpop.f32.mrf.mxu0
        %v2246 = vadd.f32 %v2077, %v2245
        %v2247 = vpop.f32.mrf.mxu0
        %v2248 = vadd.f32 %v2079, %v2247
        %2249 = vmatmul.bf16.gmra.mxu0 %v924
        %v2250 = vpop.f32.mrf.mxu0
        %v2251 = vadd.f32 %v2082, %v2250
        %v2252 = vpop.f32.mrf.mxu0
        %v2253 = vadd.f32 %v2084, %v2252
        %2254 = vmatmul.bf16.gmra.mxu0 %v927
        %v2255 = vpop.f32.mrf.mxu0
        %v2256 = vadd.f32 %v2087, %v2255
        %v2257 = vpop.f32.mrf.mxu0
        %v2258 = vadd.f32 %v2089, %v2257
        %2259 = vmatmul.bf16.gmra.mxu0 %v930
        %v2260 = vpop.f32.mrf.mxu0
        %v2261 = vadd.f32 %v2092, %v2260
        %v2262 = vpop.f32.mrf.mxu0
        %v2263 = vadd.f32 %v2094, %v2262
        %2264 = vmatmul.bf16.gmra.mxu0 %v933
        %v2265 = vpop.f32.mrf.mxu0
        %v2266 = vadd.f32 %v2097, %v2265
        %v2267 = vpop.f32.mrf.mxu0
        %v2268 = vadd.f32 %v2099, %v2267
        %2269 = vmatmul.bf16.gmra.mxu0 %v936
        %v2270 = vpop.f32.mrf.mxu0
        %v2271 = vadd.f32 %v2102, %v2270
        %v2272 = vpop.f32.mrf.mxu0
        %v2273 = vadd.f32 %v2104, %v2272
        %2274 = vmatmul.bf16.gmra.mxu0 %v939
        %v2275 = vpop.f32.mrf.mxu0
        %v2276 = vadd.f32 %v2107, %v2275
        %v2277 = vpop.f32.mrf.mxu0
        %v2278 = vadd.f32 %v2109, %v2277
        %2279 = vmatmul.bf16.gmra.mxu0 %v942
        %v2280 = vpop.f32.mrf.mxu0
        %v2281 = vadd.f32 %v2112, %v2280
        %v2282 = vpop.f32.mrf.mxu0
        %v2283 = vadd.f32 %v2114, %v2282
        %2284 = vmatmul.bf16.gmra.mxu0 %v945
        %v2285 = vpop.f32.mrf.mxu0
        %v2286 = vadd.f32 %v2117, %v2285
        %v2287 = vpop.f32.mrf.mxu0
        %v2288 = vadd.f32 %v2119, %v2287
        %2289 = vmatmul.bf16.gmra.mxu0 %v948
        %v2290 = vpop.f32.mrf.mxu0
        %v2291 = vadd.f32 %v2122, %v2290
        %v2292 = vpop.f32.mrf.mxu0
        %v2293 = vadd.f32 %v2124, %v2292
        %2294 = vmatmul.bf16.gmra.mxu0 %v951
        %v2295 = vpop.f32.mrf.mxu0
        %v2296 = vadd.f32 %v2127, %v2295
        %v2297 = vpop.f32.mrf.mxu0
        %v2298 = vadd.f32 %v2129, %v2297
        %2299 = vmatmul.bf16.gmra.mxu0 %v954
        %v2300 = vpop.f32.mrf.mxu0
        %v2301 = vadd.f32 %v2132, %v2300
        %v2302 = vpop.f32.mrf.mxu0
        %v2303 = vadd.f32 %v2134, %v2302
        %2304 = vdwg.mxu0
        %v2305 = vpack.c.bf16 %v1639, %v1639
        %v2306 = vpack.c.bf16 %v1641, %v1641
        %v2307 = vpack.c.bf16 %v1644, %v1644
        %v2308 = vpack.c.bf16 %v1646, %v1646
        %v2309 = vpack.c.bf16 %v1649, %v1649
        %v2310 = vpack.c.bf16 %v1651, %v1651
        %v2311 = vpack.c.bf16 %v1654, %v1654
        %v2312 = vpack.c.bf16 %v1656, %v1656
        %v2313 = vpack.c.bf16 %v1659, %v1659
        %v2314 = vpack.c.bf16 %v1661, %v1661
        %v2315 = vpack.c.bf16 %v1664, %v1664
        %v2316 = vpack.c.bf16 %v1666, %v1666
        %v2317 = vpack.c.bf16 %v1669, %v1669
        %v2318 = vpack.c.bf16 %v1671, %v1671
        %v2319 = vpack.c.bf16 %v1674, %v1674
        %v2320 = vpack.c.bf16 %v1676, %v1676
        %v2321 = vpack.c.bf16 %v1679, %v1679
        %v2322 = vpack.c.bf16 %v1681, %v1681
        %v2323 = vpack.c.bf16 %v1684, %v1684
        %v2324 = vpack.c.bf16 %v1686, %v1686
        %v2325 = vpack.c.bf16 %v1689, %v1689
        %v2326 = vpack.c.bf16 %v1691, %v1691
        %v2327 = vpack.c.bf16 %v1694, %v1694
        %v2328 = vpack.c.bf16 %v1696, %v1696
        %v2329 = vpack.c.bf16 %v1699, %v1699
        %v2330 = vpack.c.bf16 %v1701, %v1701
        %v2331 = vpack.c.bf16 %v1704, %v1704
        %v2332 = vpack.c.bf16 %v1706, %v1706
        %v2333 = vpack.c.bf16 %v1709, %v1709
        %v2334 = vpack.c.bf16 %v1711, %v1711
        %v2335 = vpack.c.bf16 %v1714, %v1714
        %v2336 = vpack.c.bf16 %v1716, %v1716
        %v2337 = vpack.c.bf16 %v1719, %v1719
        %v2338 = vpack.c.bf16 %v1721, %v1721
        %v2339 = vpack.c.bf16 %v1724, %v1724
        %v2340 = vpack.c.bf16 %v1726, %v1726
        %v2341 = vpack.c.bf16 %v1729, %v1729
        %v2342 = vpack.c.bf16 %v1731, %v1731
        %v2343 = vpack.c.bf16 %v1734, %v1734
        %v2344 = vpack.c.bf16 %v1736, %v1736
        %v2345 = vpack.c.bf16 %v1739, %v1739
        %v2346 = vpack.c.bf16 %v1741, %v1741
        %v2347 = vpack.c.bf16 %v1744, %v1744
        %v2348 = vpack.c.bf16 %v1746, %v1746
        %v2349 = vpack.c.bf16 %v1749, %v1749
        %v2350 = vpack.c.bf16 %v1751, %v1751
        %v2351 = vpack.c.bf16 %v1754, %v1754
        %v2352 = vpack.c.bf16 %v1756, %v1756
        %v2353 = vpack.c.bf16 %v1759, %v1759
        %v2354 = vpack.c.bf16 %v1761, %v1761
        %v2355 = vpack.c.bf16 %v1764, %v1764
        %v2356 = vpack.c.bf16 %v1766, %v1766
        %v2357 = vpack.c.bf16 %v1769, %v1769
        %v2358 = vpack.c.bf16 %v1771, %v1771
        %v2359 = vpack.c.bf16 %v1774, %v1774
        %v2360 = vpack.c.bf16 %v1776, %v1776
        %v2361 = vpack.c.bf16 %v1779, %v1779
        %v2362 = vpack.c.bf16 %v1781, %v1781
        %v2363 = vpack.c.bf16 %v1784, %v1784
        %v2364 = vpack.c.bf16 %v1786, %v1786
        %v2365 = vpack.c.bf16 %v1789, %v1789
        %v2366 = vpack.c.bf16 %v1791, %v1791
        %v2367 = vpack.c.bf16 %v1794, %v1794
        %v2368 = vpack.c.bf16 %v1796, %v1796
        %v2369 = vpack.c.bf16 %v2146, %v2146
        %v2370 = vpack.c.bf16 %v2148, %v2148
        %v2371 = vpack.c.bf16 %v2151, %v2151
        %v2372 = vpack.c.bf16 %v2153, %v2153
        %v2373 = vpack.c.bf16 %v2156, %v2156
        %v2374 = vpack.c.bf16 %v2158, %v2158
        %v2375 = vpack.c.bf16 %v2161, %v2161
        %v2376 = vpack.c.bf16 %v2163, %v2163
        %v2377 = vpack.c.bf16 %v2166, %v2166
        %v2378 = vpack.c.bf16 %v2168, %v2168
        %v2379 = vpack.c.bf16 %v2171, %v2171
        %v2380 = vpack.c.bf16 %v2173, %v2173
        %v2381 = vpack.c.bf16 %v2176, %v2176
        %v2382 = vpack.c.bf16 %v2178, %v2178
        %v2383 = vpack.c.bf16 %v2181, %v2181
        %v2384 = vpack.c.bf16 %v2183, %v2183
        %v2385 = vpack.c.bf16 %v2186, %v2186
        %v2386 = vpack.c.bf16 %v2188, %v2188
        %v2387 = vpack.c.bf16 %v2191, %v2191
        %v2388 = vpack.c.bf16 %v2193, %v2193
        %v2389 = vpack.c.bf16 %v2196, %v2196
        %v2390 = vpack.c.bf16 %v2198, %v2198
        %v2391 = vpack.c.bf16 %v2201, %v2201
        %v2392 = vpack.c.bf16 %v2203, %v2203
        %v2393 = vpack.c.bf16 %v2206, %v2206
        %v2394 = vpack.c.bf16 %v2208, %v2208
        %v2395 = vpack.c.bf16 %v2211, %v2211
        %v2396 = vpack.c.bf16 %v2213, %v2213
        %v2397 = vpack.c.bf16 %v2216, %v2216
        %v2398 = vpack.c.bf16 %v2218, %v2218
        %v2399 = vpack.c.bf16 %v2221, %v2221
        %v2400 = vpack.c.bf16 %v2223, %v2223
        %v2401 = vpack.c.bf16 %v2226, %v2226
        %v2402 = vpack.c.bf16 %v2228, %v2228
        %v2403 = vpack.c.bf16 %v2231, %v2231
        %v2404 = vpack.c.bf16 %v2233, %v2233
        %v2405 = vpack.c.bf16 %v2236, %v2236
        %v2406 = vpack.c.bf16 %v2238, %v2238
        %v2407 = vpack.c.bf16 %v2241, %v2241
        %v2408 = vpack.c.bf16 %v2243, %v2243
        %v2409 = vpack.c.bf16 %v2246, %v2246
        %v2410 = vpack.c.bf16 %v2248, %v2248
        %v2411 = vpack.c.bf16 %v2251, %v2251
        %v2412 = vpack.c.bf16 %v2253, %v2253
        %v2413 = vpack.c.bf16 %v2256, %v2256
        %v2414 = vpack.c.bf16 %v2258, %v2258
        %v2415 = vpack.c.bf16 %v2261, %v2261
        %v2416 = vpack.c.bf16 %v2263, %v2263
        %v2417 = vpack.c.bf16 %v2266, %v2266
        %v2418 = vpack.c.bf16 %v2268, %v2268
        %v2419 = vpack.c.bf16 %v2271, %v2271
        %v2420 = vpack.c.bf16 %v2273, %v2273
        %v2421 = vpack.c.bf16 %v2276, %v2276
        %v2422 = vpack.c.bf16 %v2278, %v2278
        %v2423 = vpack.c.bf16 %v2281, %v2281
        %v2424 = vpack.c.bf16 %v2283, %v2283
        %v2425 = vpack.c.bf16 %v2286, %v2286
        %v2426 = vpack.c.bf16 %v2288, %v2288
        %v2427 = vpack.c.bf16 %v2291, %v2291
        %v2428 = vpack.c.bf16 %v2293, %v2293
        %v2429 = vpack.c.bf16 %v2296, %v2296
        %v2430 = vpack.c.bf16 %v2298, %v2298
        %v2431 = vpack.c.bf16 %v2301, %v2301
        %v2432 = vpack.c.bf16 %v2303, %v2303
        %v2449 = vunpack.c.l.b16 %v2305
        %v2450 = vunpack.c.l.b16 %v2306
        %v2451 = vunpack.c.l.b16 %v2307
        %v2452 = vunpack.c.l.b16 %v2308
        %v2453 = vunpack.c.l.b16 %v2309
        %v2454 = vunpack.c.l.b16 %v2310
        %v2455 = vunpack.c.l.b16 %v2311
        %v2456 = vunpack.c.l.b16 %v2312
        %v2457 = vunpack.c.l.b16 %v2313
        %v2458 = vunpack.c.l.b16 %v2314
        %v2459 = vunpack.c.l.b16 %v2315
        %v2460 = vunpack.c.l.b16 %v2316
        %v2461 = vunpack.c.l.b16 %v2317
        %v2462 = vunpack.c.l.b16 %v2318
        %v2463 = vunpack.c.l.b16 %v2319
        %v2464 = vunpack.c.l.b16 %v2320
        %v2465 = vpack.c.b16 %v2450, %v2449
        %v2466 = vpack.c.b16 %v2452, %v2451
        %v2467 = vpack.c.b16 %v2454, %v2453
        %v2468 = vpack.c.b16 %v2456, %v2455
        %v2469 = vpack.c.b16 %v2458, %v2457
        %v2470 = vpack.c.b16 %v2460, %v2459
        %v2471 = vpack.c.b16 %v2462, %v2461
        %v2472 = vpack.c.b16 %v2464, %v2463
        %2473 = vrot.lane.b32.xlu0 %v2465, 64
        %v2474 = vpop.permute.xlu0 %2473
        %2475 = vrot.lane.b32.xlu0 %v2466, 64
        %v2476 = vpop.permute.xlu0 %2475
        %2477 = vrot.lane.b32.xlu0 %v2467, 64
        %v2478 = vpop.permute.xlu0 %2477
        %2479 = vrot.lane.b32.xlu0 %v2468, 64
        %v2480 = vpop.permute.xlu0 %2479
        %2481 = vrot.lane.b32.xlu0 %v2469, 64
        %v2482 = vpop.permute.xlu0 %2481
        %2483 = vrot.lane.b32.xlu0 %v2470, 64
        %v2484 = vpop.permute.xlu0 %2483
        %2485 = vrot.lane.b32.xlu0 %v2471, 64
        %v2486 = vpop.permute.xlu0 %2485
        %2487 = vrot.lane.b32.xlu0 %v2472, 64
        %v2488 = vpop.permute.xlu0 %2487
        %vm2489 = vcmask 523264
        %v2491 = vsel %vm2489, %v2465, 0
        %v2494 = vsel %vm2489, %v2466, 0
        %v2497 = vsel %vm2489, %v2467, 0
        %v2500 = vsel %vm2489, %v2468, 0
        %v2503 = vsel %vm2489, %v2469, 0
        %v2506 = vsel %vm2489, %v2470, 0
        %v2509 = vsel %vm2489, %v2471, 0
        %v2512 = vsel %vm2489, %v2472, 0
        %v2515 = vsel %vm2489, %v2474, 0
        %v2518 = vsel %vm2489, %v2476, 0
        %v2521 = vsel %vm2489, %v2478, 0
        %v2524 = vsel %vm2489, %v2480, 0
        %v2527 = vsel %vm2489, %v2482, 0
        %v2530 = vsel %vm2489, %v2484, 0
        %v2533 = vsel %vm2489, %v2486, 0
        %v2536 = vsel %vm2489, %v2488, 0
        %2538 = vmatpush.bf16.xpose.msra.mxu0 %v2536
        %2539 = vmatpush.bf16.xpose.msra.mxu0 %v2533
        %2540 = vmatpush.bf16.xpose.msra.mxu0 %v2530
        %2541 = vmatpush.bf16.xpose.msra.mxu0 %v2527
        %2542 = vmatpush.bf16.xpose.msra.mxu0 %v2524
        %2543 = vmatpush.bf16.xpose.msra.mxu0 %v2521
        %2544 = vmatpush.bf16.xpose.msra.mxu0 %v2518
        %2545 = vmatpush.bf16.xpose.msra.mxu0 %v2515
        %2546 = vmatmul.bf16.gmra.mxu0 %v2491
        %v2547 = vpop.f32.mrf.mxu0
        %v2548 = vadd.f32 0.0, %v2547
        %v2549 = vpop.f32.mrf.mxu0
        %v2550 = vadd.f32 0.0, %v2549
        %2551 = vmatmul.bf16.gmra.mxu0 %v2494
        %v2552 = vpop.f32.mrf.mxu0
        %v2553 = vadd.f32 0.0, %v2552
        %v2554 = vpop.f32.mrf.mxu0
        %v2555 = vadd.f32 0.0, %v2554
        %2556 = vmatmul.bf16.gmra.mxu0 %v2497
        %v2557 = vpop.f32.mrf.mxu0
        %v2558 = vadd.f32 0.0, %v2557
        %v2559 = vpop.f32.mrf.mxu0
        %v2560 = vadd.f32 0.0, %v2559
        %2561 = vmatmul.bf16.gmra.mxu0 %v2500
        %v2562 = vpop.f32.mrf.mxu0
        %v2563 = vadd.f32 0.0, %v2562
        %v2564 = vpop.f32.mrf.mxu0
        %v2565 = vadd.f32 0.0, %v2564
        %2566 = vmatmul.bf16.gmra.mxu0 %v2503
        %v2567 = vpop.f32.mrf.mxu0
        %v2568 = vadd.f32 0.0, %v2567
        %v2569 = vpop.f32.mrf.mxu0
        %v2570 = vadd.f32 0.0, %v2569
        %2571 = vmatmul.bf16.gmra.mxu0 %v2506
        %v2572 = vpop.f32.mrf.mxu0
        %v2573 = vadd.f32 0.0, %v2572
        %v2574 = vpop.f32.mrf.mxu0
        %v2575 = vadd.f32 0.0, %v2574
        %2576 = vmatmul.bf16.gmra.mxu0 %v2509
        %v2577 = vpop.f32.mrf.mxu0
        %v2578 = vadd.f32 0.0, %v2577
        %v2579 = vpop.f32.mrf.mxu0
        %v2580 = vadd.f32 0.0, %v2579
        %2581 = vmatmul.bf16.gmra.mxu0 %v2512
        %v2582 = vpop.f32.mrf.mxu0
        %v2583 = vadd.f32 0.0, %v2582
        %v2584 = vpop.f32.mrf.mxu0
        %v2585 = vadd.f32 0.0, %v2584
        %2586 = vdwg.mxu0
        %v2603 = vunpack.c.l.b16 %v2321
        %v2604 = vunpack.c.l.b16 %v2322
        %v2605 = vunpack.c.l.b16 %v2323
        %v2606 = vunpack.c.l.b16 %v2324
        %v2607 = vunpack.c.l.b16 %v2325
        %v2608 = vunpack.c.l.b16 %v2326
        %v2609 = vunpack.c.l.b16 %v2327
        %v2610 = vunpack.c.l.b16 %v2328
        %v2611 = vunpack.c.l.b16 %v2329
        %v2612 = vunpack.c.l.b16 %v2330
        %v2613 = vunpack.c.l.b16 %v2331
        %v2614 = vunpack.c.l.b16 %v2332
        %v2615 = vunpack.c.l.b16 %v2333
        %v2616 = vunpack.c.l.b16 %v2334
        %v2617 = vunpack.c.l.b16 %v2335
        %v2618 = vunpack.c.l.b16 %v2336
        %v2619 = vpack.c.b16 %v2604, %v2603
        %v2620 = vpack.c.b16 %v2606, %v2605
        %v2621 = vpack.c.b16 %v2608, %v2607
        %v2622 = vpack.c.b16 %v2610, %v2609
        %v2623 = vpack.c.b16 %v2612, %v2611
        %v2624 = vpack.c.b16 %v2614, %v2613
        %v2625 = vpack.c.b16 %v2616, %v2615
        %v2626 = vpack.c.b16 %v2618, %v2617
        %2627 = vrot.lane.b32.xlu0 %v2619, 64
        %v2628 = vpop.permute.xlu0 %2627
        %2629 = vrot.lane.b32.xlu0 %v2620, 64
        %v2630 = vpop.permute.xlu0 %2629
        %2631 = vrot.lane.b32.xlu0 %v2621, 64
        %v2632 = vpop.permute.xlu0 %2631
        %2633 = vrot.lane.b32.xlu0 %v2622, 64
        %v2634 = vpop.permute.xlu0 %2633
        %2635 = vrot.lane.b32.xlu0 %v2623, 64
        %v2636 = vpop.permute.xlu0 %2635
        %2637 = vrot.lane.b32.xlu0 %v2624, 64
        %v2638 = vpop.permute.xlu0 %2637
        %2639 = vrot.lane.b32.xlu0 %v2625, 64
        %v2640 = vpop.permute.xlu0 %2639
        %2641 = vrot.lane.b32.xlu0 %v2626, 64
        %v2642 = vpop.permute.xlu0 %2641
        %v2644 = vsel %vm2489, %v2619, 0
        %v2647 = vsel %vm2489, %v2620, 0
        %v2650 = vsel %vm2489, %v2621, 0
        %v2653 = vsel %vm2489, %v2622, 0
        %v2656 = vsel %vm2489, %v2623, 0
        %v2659 = vsel %vm2489, %v2624, 0
        %v2662 = vsel %vm2489, %v2625, 0
        %v2665 = vsel %vm2489, %v2626, 0
        %v2668 = vsel %vm2489, %v2628, 0
        %v2671 = vsel %vm2489, %v2630, 0
        %v2674 = vsel %vm2489, %v2632, 0
        %v2677 = vsel %vm2489, %v2634, 0
        %v2680 = vsel %vm2489, %v2636, 0
        %v2683 = vsel %vm2489, %v2638, 0
        %v2686 = vsel %vm2489, %v2640, 0
        %v2689 = vsel %vm2489, %v2642, 0
        %2691 = vmatpush.bf16.xpose.msra.mxu0 %v2689
        %2692 = vmatpush.bf16.xpose.msra.mxu0 %v2686
        %2693 = vmatpush.bf16.xpose.msra.mxu0 %v2683
        %2694 = vmatpush.bf16.xpose.msra.mxu0 %v2680
        %2695 = vmatpush.bf16.xpose.msra.mxu0 %v2677
        %2696 = vmatpush.bf16.xpose.msra.mxu0 %v2674
        %2697 = vmatpush.bf16.xpose.msra.mxu0 %v2671
        %2698 = vmatpush.bf16.xpose.msra.mxu0 %v2668
        %2699 = vmatmul.bf16.gmra.mxu0 %v2644
        %v2700 = vpop.f32.mrf.mxu0
        %v2701 = vadd.f32 0.0, %v2700
        %v2702 = vpop.f32.mrf.mxu0
        %v2703 = vadd.f32 0.0, %v2702
        %2704 = vmatmul.bf16.gmra.mxu0 %v2647
        %v2705 = vpop.f32.mrf.mxu0
        %v2706 = vadd.f32 0.0, %v2705
        %v2707 = vpop.f32.mrf.mxu0
        %v2708 = vadd.f32 0.0, %v2707
        %2709 = vmatmul.bf16.gmra.mxu0 %v2650
        %v2710 = vpop.f32.mrf.mxu0
        %v2711 = vadd.f32 0.0, %v2710
        %v2712 = vpop.f32.mrf.mxu0
        %v2713 = vadd.f32 0.0, %v2712
        %2714 = vmatmul.bf16.gmra.mxu0 %v2653
        %v2715 = vpop.f32.mrf.mxu0
        %v2716 = vadd.f32 0.0, %v2715
        %v2717 = vpop.f32.mrf.mxu0
        %v2718 = vadd.f32 0.0, %v2717
        %2719 = vmatmul.bf16.gmra.mxu0 %v2656
        %v2720 = vpop.f32.mrf.mxu0
        %v2721 = vadd.f32 0.0, %v2720
        %v2722 = vpop.f32.mrf.mxu0
        %v2723 = vadd.f32 0.0, %v2722
        %2724 = vmatmul.bf16.gmra.mxu0 %v2659
        %v2725 = vpop.f32.mrf.mxu0
        %v2726 = vadd.f32 0.0, %v2725
        %v2727 = vpop.f32.mrf.mxu0
        %v2728 = vadd.f32 0.0, %v2727
        %2729 = vmatmul.bf16.gmra.mxu0 %v2662
        %v2730 = vpop.f32.mrf.mxu0
        %v2731 = vadd.f32 0.0, %v2730
        %v2732 = vpop.f32.mrf.mxu0
        %v2733 = vadd.f32 0.0, %v2732
        %2734 = vmatmul.bf16.gmra.mxu0 %v2665
        %v2735 = vpop.f32.mrf.mxu0
        %v2736 = vadd.f32 0.0, %v2735
        %v2737 = vpop.f32.mrf.mxu0
        %v2738 = vadd.f32 0.0, %v2737
        %2739 = vdwg.mxu0
        %v2756 = vunpack.c.l.b16 %v2337
        %v2757 = vunpack.c.l.b16 %v2338
        %v2758 = vunpack.c.l.b16 %v2339
        %v2759 = vunpack.c.l.b16 %v2340
        %v2760 = vunpack.c.l.b16 %v2341
        %v2761 = vunpack.c.l.b16 %v2342
        %v2762 = vunpack.c.l.b16 %v2343
        %v2763 = vunpack.c.l.b16 %v2344
        %v2764 = vunpack.c.l.b16 %v2345
        %v2765 = vunpack.c.l.b16 %v2346
        %v2766 = vunpack.c.l.b16 %v2347
        %v2767 = vunpack.c.l.b16 %v2348
        %v2768 = vunpack.c.l.b16 %v2349
        %v2769 = vunpack.c.l.b16 %v2350
        %v2770 = vunpack.c.l.b16 %v2351
        %v2771 = vunpack.c.l.b16 %v2352
        %v2772 = vpack.c.b16 %v2757, %v2756
        %v2773 = vpack.c.b16 %v2759, %v2758
        %v2774 = vpack.c.b16 %v2761, %v2760
        %v2775 = vpack.c.b16 %v2763, %v2762
        %v2776 = vpack.c.b16 %v2765, %v2764
        %v2777 = vpack.c.b16 %v2767, %v2766
        %v2778 = vpack.c.b16 %v2769, %v2768
        %v2779 = vpack.c.b16 %v2771, %v2770
        %2780 = vrot.lane.b32.xlu0 %v2772, 64
        %v2781 = vpop.permute.xlu0 %2780
        %2782 = vrot.lane.b32.xlu0 %v2773, 64
        %v2783 = vpop.permute.xlu0 %2782
        %2784 = vrot.lane.b32.xlu0 %v2774, 64
        %v2785 = vpop.permute.xlu0 %2784
        %2786 = vrot.lane.b32.xlu0 %v2775, 64
        %v2787 = vpop.permute.xlu0 %2786
        %2788 = vrot.lane.b32.xlu0 %v2776, 64
        %v2789 = vpop.permute.xlu0 %2788
        %2790 = vrot.lane.b32.xlu0 %v2777, 64
        %v2791 = vpop.permute.xlu0 %2790
        %2792 = vrot.lane.b32.xlu0 %v2778, 64
        %v2793 = vpop.permute.xlu0 %2792
        %2794 = vrot.lane.b32.xlu0 %v2779, 64
        %v2795 = vpop.permute.xlu0 %2794
        %v2797 = vsel %vm2489, %v2772, 0
        %v2800 = vsel %vm2489, %v2773, 0
        %v2803 = vsel %vm2489, %v2774, 0
        %v2806 = vsel %vm2489, %v2775, 0
        %v2809 = vsel %vm2489, %v2776, 0
        %v2812 = vsel %vm2489, %v2777, 0
        %v2815 = vsel %vm2489, %v2778, 0
        %v2818 = vsel %vm2489, %v2779, 0
        %v2821 = vsel %vm2489, %v2781, 0
        %v2824 = vsel %vm2489, %v2783, 0
        %v2827 = vsel %vm2489, %v2785, 0
        %v2830 = vsel %vm2489, %v2787, 0
        %v2833 = vsel %vm2489, %v2789, 0
        %v2836 = vsel %vm2489, %v2791, 0
        %v2839 = vsel %vm2489, %v2793, 0
        %v2842 = vsel %vm2489, %v2795, 0
        %2844 = vmatpush.bf16.xpose.msra.mxu0 %v2842
        %2845 = vmatpush.bf16.xpose.msra.mxu0 %v2839
        %2846 = vmatpush.bf16.xpose.msra.mxu0 %v2836
        %2847 = vmatpush.bf16.xpose.msra.mxu0 %v2833
        %2848 = vmatpush.bf16.xpose.msra.mxu0 %v2830
        %2849 = vmatpush.bf16.xpose.msra.mxu0 %v2827
        %2850 = vmatpush.bf16.xpose.msra.mxu0 %v2824
        %2851 = vmatpush.bf16.xpose.msra.mxu0 %v2821
        %2852 = vmatmul.bf16.gmra.mxu0 %v2797
        %v2853 = vpop.f32.mrf.mxu0
        %v2854 = vadd.f32 0.0, %v2853
        %v2855 = vpop.f32.mrf.mxu0
        %v2856 = vadd.f32 0.0, %v2855
        %2857 = vmatmul.bf16.gmra.mxu0 %v2800
        %v2858 = vpop.f32.mrf.mxu0
        %v2859 = vadd.f32 0.0, %v2858
        %v2860 = vpop.f32.mrf.mxu0
        %v2861 = vadd.f32 0.0, %v2860
        %2862 = vmatmul.bf16.gmra.mxu0 %v2803
        %v2863 = vpop.f32.mrf.mxu0
        %v2864 = vadd.f32 0.0, %v2863
        %v2865 = vpop.f32.mrf.mxu0
        %v2866 = vadd.f32 0.0, %v2865
        %2867 = vmatmul.bf16.gmra.mxu0 %v2806
        %v2868 = vpop.f32.mrf.mxu0
        %v2869 = vadd.f32 0.0, %v2868
        %v2870 = vpop.f32.mrf.mxu0
        %v2871 = vadd.f32 0.0, %v2870
        %2872 = vmatmul.bf16.gmra.mxu0 %v2809
        %v2873 = vpop.f32.mrf.mxu0
        %v2874 = vadd.f32 0.0, %v2873
        %v2875 = vpop.f32.mrf.mxu0
        %v2876 = vadd.f32 0.0, %v2875
        %2877 = vmatmul.bf16.gmra.mxu0 %v2812
        %v2878 = vpop.f32.mrf.mxu0
        %v2879 = vadd.f32 0.0, %v2878
        %v2880 = vpop.f32.mrf.mxu0
        %v2881 = vadd.f32 0.0, %v2880
        %2882 = vmatmul.bf16.gmra.mxu0 %v2815
        %v2883 = vpop.f32.mrf.mxu0
        %v2884 = vadd.f32 0.0, %v2883
        %v2885 = vpop.f32.mrf.mxu0
        %v2886 = vadd.f32 0.0, %v2885
        %2887 = vmatmul.bf16.gmra.mxu0 %v2818
        %v2888 = vpop.f32.mrf.mxu0
        %v2889 = vadd.f32 0.0, %v2888
        %v2890 = vpop.f32.mrf.mxu0
        %v2891 = vadd.f32 0.0, %v2890
        %2892 = vdwg.mxu0
        %v2909 = vunpack.c.l.b16 %v2353
        %v2910 = vunpack.c.l.b16 %v2354
        %v2911 = vunpack.c.l.b16 %v2355
        %v2912 = vunpack.c.l.b16 %v2356
        %v2913 = vunpack.c.l.b16 %v2357
        %v2914 = vunpack.c.l.b16 %v2358
        %v2915 = vunpack.c.l.b16 %v2359
        %v2916 = vunpack.c.l.b16 %v2360
        %v2917 = vunpack.c.l.b16 %v2361
        %v2918 = vunpack.c.l.b16 %v2362
        %v2919 = vunpack.c.l.b16 %v2363
        %v2920 = vunpack.c.l.b16 %v2364
        %v2921 = vunpack.c.l.b16 %v2365
        %v2922 = vunpack.c.l.b16 %v2366
        %v2923 = vunpack.c.l.b16 %v2367
        %v2924 = vunpack.c.l.b16 %v2368
        %v2925 = vpack.c.b16 %v2910, %v2909
        %v2926 = vpack.c.b16 %v2912, %v2911
        %v2927 = vpack.c.b16 %v2914, %v2913
        %v2928 = vpack.c.b16 %v2916, %v2915
        %v2929 = vpack.c.b16 %v2918, %v2917
        %v2930 = vpack.c.b16 %v2920, %v2919
        %v2931 = vpack.c.b16 %v2922, %v2921
        %v2932 = vpack.c.b16 %v2924, %v2923
        %2933 = vrot.lane.b32.xlu0 %v2925, 64
        %v2934 = vpop.permute.xlu0 %2933
        %2935 = vrot.lane.b32.xlu0 %v2926, 64
        %v2936 = vpop.permute.xlu0 %2935
        %2937 = vrot.lane.b32.xlu0 %v2927, 64
        %v2938 = vpop.permute.xlu0 %2937
        %2939 = vrot.lane.b32.xlu0 %v2928, 64
        %v2940 = vpop.permute.xlu0 %2939
        %2941 = vrot.lane.b32.xlu0 %v2929, 64
        %v2942 = vpop.permute.xlu0 %2941
        %2943 = vrot.lane.b32.xlu0 %v2930, 64
        %v2944 = vpop.permute.xlu0 %2943
        %2945 = vrot.lane.b32.xlu0 %v2931, 64
        %v2946 = vpop.permute.xlu0 %2945
        %2947 = vrot.lane.b32.xlu0 %v2932, 64
        %v2948 = vpop.permute.xlu0 %2947
        %v2950 = vsel %vm2489, %v2925, 0
        %v2953 = vsel %vm2489, %v2926, 0
        %v2956 = vsel %vm2489, %v2927, 0
        %v2959 = vsel %vm2489, %v2928, 0
        %v2962 = vsel %vm2489, %v2929, 0
        %v2965 = vsel %vm2489, %v2930, 0
        %v2968 = vsel %vm2489, %v2931, 0
        %v2971 = vsel %vm2489, %v2932, 0
        %v2974 = vsel %vm2489, %v2934, 0
        %v2977 = vsel %vm2489, %v2936, 0
        %v2980 = vsel %vm2489, %v2938, 0
        %v2983 = vsel %vm2489, %v2940, 0
        %v2986 = vsel %vm2489, %v2942, 0
        %v2989 = vsel %vm2489, %v2944, 0
        %v2992 = vsel %vm2489, %v2946, 0
        %v2995 = vsel %vm2489, %v2948, 0
        %2997 = vmatpush.bf16.xpose.msra.mxu0 %v2995
        %2998 = vmatpush.bf16.xpose.msra.mxu0 %v2992
        %2999 = vmatpush.bf16.xpose.msra.mxu0 %v2989
        %3000 = vmatpush.bf16.xpose.msra.mxu0 %v2986
        %3001 = vmatpush.bf16.xpose.msra.mxu0 %v2983
        %3002 = vmatpush.bf16.xpose.msra.mxu0 %v2980
        %3003 = vmatpush.bf16.xpose.msra.mxu0 %v2977
        %3004 = vmatpush.bf16.xpose.msra.mxu0 %v2974
        %3005 = vmatmul.bf16.gmra.mxu0 %v2950
        %v3006 = vpop.f32.mrf.mxu0
        %v3007 = vadd.f32 0.0, %v3006
        %v3008 = vpop.f32.mrf.mxu0
        %v3009 = vadd.f32 0.0, %v3008
        %3010 = vmatmul.bf16.gmra.mxu0 %v2953
        %v3011 = vpop.f32.mrf.mxu0
        %v3012 = vadd.f32 0.0, %v3011
        %v3013 = vpop.f32.mrf.mxu0
        %v3014 = vadd.f32 0.0, %v3013
        %3015 = vmatmul.bf16.gmra.mxu0 %v2956
        %v3016 = vpop.f32.mrf.mxu0
        %v3017 = vadd.f32 0.0, %v3016
        %v3018 = vpop.f32.mrf.mxu0
        %v3019 = vadd.f32 0.0, %v3018
        %3020 = vmatmul.bf16.gmra.mxu0 %v2959
        %v3021 = vpop.f32.mrf.mxu0
        %v3022 = vadd.f32 0.0, %v3021
        %v3023 = vpop.f32.mrf.mxu0
        %v3024 = vadd.f32 0.0, %v3023
        %3025 = vmatmul.bf16.gmra.mxu0 %v2962
        %v3026 = vpop.f32.mrf.mxu0
        %v3027 = vadd.f32 0.0, %v3026
        %v3028 = vpop.f32.mrf.mxu0
        %v3029 = vadd.f32 0.0, %v3028
        %3030 = vmatmul.bf16.gmra.mxu0 %v2965
        %v3031 = vpop.f32.mrf.mxu0
        %v3032 = vadd.f32 0.0, %v3031
        %v3033 = vpop.f32.mrf.mxu0
        %v3034 = vadd.f32 0.0, %v3033
        %3035 = vmatmul.bf16.gmra.mxu0 %v2968
        %v3036 = vpop.f32.mrf.mxu0
        %v3037 = vadd.f32 0.0, %v3036
        %v3038 = vpop.f32.mrf.mxu0
        %v3039 = vadd.f32 0.0, %v3038
        %3040 = vmatmul.bf16.gmra.mxu0 %v2971
        %v3041 = vpop.f32.mrf.mxu0
        %v3042 = vadd.f32 0.0, %v3041
        %v3043 = vpop.f32.mrf.mxu0
        %v3044 = vadd.f32 0.0, %v3043
        %3045 = vdwg.mxu0
        %v3046 = vlaneseq
        %v3047 = vshrl.u32 %v3046, 7
        %v3048 = vadd.s32 %v3047, 8
        %v3049 = vadd.s32 %v3047, 16
        %v3050 = vadd.s32 %v3047, 24
        %v3051 = vadd.s32 %v3047, 32
        %v3052 = vadd.s32 %v3047, 40
        %v3053 = vadd.s32 %v3047, 48
        %v3054 = vadd.s32 %v3047, 56
        %v3055 = vadd.s32 %v3047, 64
        %v3056 = vadd.s32 %v3047, 72
        %v3057 = vadd.s32 %v3047, 80
        %v3058 = vadd.s32 %v3047, 88
        %v3059 = vadd.s32 %v3047, 96
        %v3060 = vadd.s32 %v3047, 104
        %v3061 = vadd.s32 %v3047, 112
        %v3062 = vadd.s32 %v3047, 120
        %v3063 = vlaneseq
        %v3064 = vand.u32 %v3063, 127
        %vm3065 = vcmp.le.s32.totalorder %v3064, %v3047
        %vm3066 = vcmp.le.s32.totalorder %v3064, %v3048
        %vm3067 = vcmp.le.s32.totalorder %v3064, %v3049
        %vm3068 = vcmp.le.s32.totalorder %v3064, %v3050
        %vm3069 = vcmp.le.s32.totalorder %v3064, %v3051
        %vm3070 = vcmp.le.s32.totalorder %v3064, %v3052
        %vm3071 = vcmp.le.s32.totalorder %v3064, %v3053
        %vm3072 = vcmp.le.s32.totalorder %v3064, %v3054
        %vm3073 = vcmp.le.s32.totalorder %v3064, %v3055
        %vm3074 = vcmp.le.s32.totalorder %v3064, %v3056
        %vm3075 = vcmp.le.s32.totalorder %v3064, %v3057
        %vm3076 = vcmp.le.s32.totalorder %v3064, %v3058
        %vm3077 = vcmp.le.s32.totalorder %v3064, %v3059
        %vm3078 = vcmp.le.s32.totalorder %v3064, %v3060
        %vm3079 = vcmp.le.s32.totalorder %v3064, %v3061
        %vm3080 = vcmp.le.s32.totalorder %v3064, %v3062
        %v3081 = vsel %vm3065, %v2548, -inf
        %v3082 = vsel %vm3066, %v2550, -inf
        %v3083 = vsel %vm3067, %v2553, -inf
        %v3084 = vsel %vm3068, %v2555, -inf
        %v3085 = vsel %vm3069, %v2558, -inf
        %v3086 = vsel %vm3070, %v2560, -inf
        %v3087 = vsel %vm3071, %v2563, -inf
        %v3088 = vsel %vm3072, %v2565, -inf
        %v3089 = vsel %vm3073, %v2568, -inf
        %v3090 = vsel %vm3074, %v2570, -inf
        %v3091 = vsel %vm3075, %v2573, -inf
        %v3092 = vsel %vm3076, %v2575, -inf
        %v3093 = vsel %vm3077, %v2578, -inf
        %v3094 = vsel %vm3078, %v2580, -inf
        %v3095 = vsel %vm3079, %v2583, -inf
        %v3096 = vsel %vm3080, %v2585, -inf
        %v3097 = vsel %vm3065, %v2701, -inf
        %v3098 = vsel %vm3066, %v2703, -inf
        %v3099 = vsel %vm3067, %v2706, -inf
        %v3100 = vsel %vm3068, %v2708, -inf
        %v3101 = vsel %vm3069, %v2711, -inf
        %v3102 = vsel %vm3070, %v2713, -inf
        %v3103 = vsel %vm3071, %v2716, -inf
        %v3104 = vsel %vm3072, %v2718, -inf
        %v3105 = vsel %vm3073, %v2721, -inf
        %v3106 = vsel %vm3074, %v2723, -inf
        %v3107 = vsel %vm3075, %v2726, -inf
        %v3108 = vsel %vm3076, %v2728, -inf
        %v3109 = vsel %vm3077, %v2731, -inf
        %v3110 = vsel %vm3078, %v2733, -inf
        %v3111 = vsel %vm3079, %v2736, -inf
        %v3112 = vsel %vm3080, %v2738, -inf
        %v3113 = vsel %vm3065, %v2854, -inf
        %v3114 = vsel %vm3066, %v2856, -inf
        %v3115 = vsel %vm3067, %v2859, -inf
        %v3116 = vsel %vm3068, %v2861, -inf
        %v3117 = vsel %vm3069, %v2864, -inf
        %v3118 = vsel %vm3070, %v2866, -inf
        %v3119 = vsel %vm3071, %v2869, -inf
        %v3120 = vsel %vm3072, %v2871, -inf
        %v3121 = vsel %vm3073, %v2874, -inf
        %v3122 = vsel %vm3074, %v2876, -inf
        %v3123 = vsel %vm3075, %v2879, -inf
        %v3124 = vsel %vm3076, %v2881, -inf
        %v3125 = vsel %vm3077, %v2884, -inf
        %v3126 = vsel %vm3078, %v2886, -inf
        %v3127 = vsel %vm3079, %v2889, -inf
        %v3128 = vsel %vm3080, %v2891, -inf
        %v3129 = vsel %vm3065, %v3007, -inf
        %v3130 = vsel %vm3066, %v3009, -inf
        %v3131 = vsel %vm3067, %v3012, -inf
        %v3132 = vsel %vm3068, %v3014, -inf
        %v3133 = vsel %vm3069, %v3017, -inf
        %v3134 = vsel %vm3070, %v3019, -inf
        %v3135 = vsel %vm3071, %v3022, -inf
        %v3136 = vsel %vm3072, %v3024, -inf
        %v3137 = vsel %vm3073, %v3027, -inf
        %v3138 = vsel %vm3074, %v3029, -inf
        %v3139 = vsel %vm3075, %v3032, -inf
        %v3140 = vsel %vm3076, %v3034, -inf
        %v3141 = vsel %vm3077, %v3037, -inf
        %v3142 = vsel %vm3078, %v3039, -inf
        %v3143 = vsel %vm3079, %v3042, -inf
        %v3144 = vsel %vm3080, %v3044, -inf
        %3145 = vmax.xlane.f32.xlu0 %v3081
        %v3146 = vpop.xlane.xlu0 %3145
        %3147 = vmax.xlane.f32.xlu0 %v3082
        %v3148 = vpop.xlane.xlu0 %3147
        %3149 = vmax.xlane.f32.xlu0 %v3083
        %v3150 = vpop.xlane.xlu0 %3149
        %3151 = vmax.xlane.f32.xlu0 %v3084
        %v3152 = vpop.xlane.xlu0 %3151
        %3153 = vmax.xlane.f32.xlu0 %v3085
        %v3154 = vpop.xlane.xlu0 %3153
        %3155 = vmax.xlane.f32.xlu0 %v3086
        %v3156 = vpop.xlane.xlu0 %3155
        %3157 = vmax.xlane.f32.xlu0 %v3087
        %v3158 = vpop.xlane.xlu0 %3157
        %3159 = vmax.xlane.f32.xlu0 %v3088
        %v3160 = vpop.xlane.xlu0 %3159
        %3161 = vmax.xlane.f32.xlu0 %v3089
        %v3162 = vpop.xlane.xlu0 %3161
        %3163 = vmax.xlane.f32.xlu0 %v3090
        %v3164 = vpop.xlane.xlu0 %3163
        %3165 = vmax.xlane.f32.xlu0 %v3091
        %v3166 = vpop.xlane.xlu0 %3165
        %3167 = vmax.xlane.f32.xlu0 %v3092
        %v3168 = vpop.xlane.xlu0 %3167
        %3169 = vmax.xlane.f32.xlu0 %v3093
        %v3170 = vpop.xlane.xlu0 %3169
        %3171 = vmax.xlane.f32.xlu0 %v3094
        %v3172 = vpop.xlane.xlu0 %3171
        %3173 = vmax.xlane.f32.xlu0 %v3095
        %v3174 = vpop.xlane.xlu0 %3173
        %3175 = vmax.xlane.f32.xlu0 %v3096
        %v3176 = vpop.xlane.xlu0 %3175
        %3177 = vmax.xlane.f32.xlu0 %v3097
        %v3178 = vpop.xlane.xlu0 %3177
        %3179 = vmax.xlane.f32.xlu0 %v3098
        %v3180 = vpop.xlane.xlu0 %3179
        %3181 = vmax.xlane.f32.xlu0 %v3099
        %v3182 = vpop.xlane.xlu0 %3181
        %3183 = vmax.xlane.f32.xlu0 %v3100
        %v3184 = vpop.xlane.xlu0 %3183
        %3185 = vmax.xlane.f32.xlu0 %v3101
        %v3186 = vpop.xlane.xlu0 %3185
        %3187 = vmax.xlane.f32.xlu0 %v3102
        %v3188 = vpop.xlane.xlu0 %3187
        %3189 = vmax.xlane.f32.xlu0 %v3103
        %v3190 = vpop.xlane.xlu0 %3189
        %3191 = vmax.xlane.f32.xlu0 %v3104
        %v3192 = vpop.xlane.xlu0 %3191
        %3193 = vmax.xlane.f32.xlu0 %v3105
        %v3194 = vpop.xlane.xlu0 %3193
        %3195 = vmax.xlane.f32.xlu0 %v3106
        %v3196 = vpop.xlane.xlu0 %3195
        %3197 = vmax.xlane.f32.xlu0 %v3107
        %v3198 = vpop.xlane.xlu0 %3197
        %3199 = vmax.xlane.f32.xlu0 %v3108
        %v3200 = vpop.xlane.xlu0 %3199
        %3201 = vmax.xlane.f32.xlu0 %v3109
        %v3202 = vpop.xlane.xlu0 %3201
        %3203 = vmax.xlane.f32.xlu0 %v3110
        %v3204 = vpop.xlane.xlu0 %3203
        %3205 = vmax.xlane.f32.xlu0 %v3111
        %v3206 = vpop.xlane.xlu0 %3205
        %3207 = vmax.xlane.f32.xlu0 %v3112
        %v3208 = vpop.xlane.xlu0 %3207
        %3209 = vmax.xlane.f32.xlu0 %v3113
        %v3210 = vpop.xlane.xlu0 %3209
        %3211 = vmax.xlane.f32.xlu0 %v3114
        %v3212 = vpop.xlane.xlu0 %3211
        %3213 = vmax.xlane.f32.xlu0 %v3115
        %v3214 = vpop.xlane.xlu0 %3213
        %3215 = vmax.xlane.f32.xlu0 %v3116
        %v3216 = vpop.xlane.xlu0 %3215
        %3217 = vmax.xlane.f32.xlu0 %v3117
        %v3218 = vpop.xlane.xlu0 %3217
        %3219 = vmax.xlane.f32.xlu0 %v3118
        %v3220 = vpop.xlane.xlu0 %3219
        %3221 = vmax.xlane.f32.xlu0 %v3119
        %v3222 = vpop.xlane.xlu0 %3221
        %3223 = vmax.xlane.f32.xlu0 %v3120
        %v3224 = vpop.xlane.xlu0 %3223
        %3225 = vmax.xlane.f32.xlu0 %v3121
        %v3226 = vpop.xlane.xlu0 %3225
        %3227 = vmax.xlane.f32.xlu0 %v3122
        %v3228 = vpop.xlane.xlu0 %3227
        %3229 = vmax.xlane.f32.xlu0 %v3123
        %v3230 = vpop.xlane.xlu0 %3229
        %3231 = vmax.xlane.f32.xlu0 %v3124
        %v3232 = vpop.xlane.xlu0 %3231
        %3233 = vmax.xlane.f32.xlu0 %v3125
        %v3234 = vpop.xlane.xlu0 %3233
        %3235 = vmax.xlane.f32.xlu0 %v3126
        %v3236 = vpop.xlane.xlu0 %3235
        %3237 = vmax.xlane.f32.xlu0 %v3127
        %v3238 = vpop.xlane.xlu0 %3237
        %3239 = vmax.xlane.f32.xlu0 %v3128
        %v3240 = vpop.xlane.xlu0 %3239
        %3241 = vmax.xlane.f32.xlu0 %v3129
        %v3242 = vpop.xlane.xlu0 %3241
        %3243 = vmax.xlane.f32.xlu0 %v3130
        %v3244 = vpop.xlane.xlu0 %3243
        %3245 = vmax.xlane.f32.xlu0 %v3131
        %v3246 = vpop.xlane.xlu0 %3245
        %3247 = vmax.xlane.f32.xlu0 %v3132
        %v3248 = vpop.xlane.xlu0 %3247
        %3249 = vmax.xlane.f32.xlu0 %v3133
        %v3250 = vpop.xlane.xlu0 %3249
        %3251 = vmax.xlane.f32.xlu0 %v3134
        %v3252 = vpop.xlane.xlu0 %3251
        %3253 = vmax.xlane.f32.xlu0 %v3135
        %v3254 = vpop.xlane.xlu0 %3253
        %3255 = vmax.xlane.f32.xlu0 %v3136
        %v3256 = vpop.xlane.xlu0 %3255
        %3257 = vmax.xlane.f32.xlu0 %v3137
        %v3258 = vpop.xlane.xlu0 %3257
        %3259 = vmax.xlane.f32.xlu0 %v3138
        %v3260 = vpop.xlane.xlu0 %3259
        %3261 = vmax.xlane.f32.xlu0 %v3139
        %v3262 = vpop.xlane.xlu0 %3261
        %3263 = vmax.xlane.f32.xlu0 %v3140
        %v3264 = vpop.xlane.xlu0 %3263
        %3265 = vmax.xlane.f32.xlu0 %v3141
        %v3266 = vpop.xlane.xlu0 %3265
        %3267 = vmax.xlane.f32.xlu0 %v3142
        %v3268 = vpop.xlane.xlu0 %3267
        %3269 = vmax.xlane.f32.xlu0 %v3143
        %v3270 = vpop.xlane.xlu0 %3269
        %3271 = vmax.xlane.f32.xlu0 %v3144
        %v3272 = vpop.xlane.xlu0 %3271
        %v3273 = vsub.f32 %v3081, %v3146
        %v3274 = vsub.f32 %v3082, %v3148
        %v3275 = vsub.f32 %v3083, %v3150
        %v3276 = vsub.f32 %v3084, %v3152
        %v3277 = vsub.f32 %v3085, %v3154
        %v3278 = vsub.f32 %v3086, %v3156
        %v3279 = vsub.f32 %v3087, %v3158
        %v3280 = vsub.f32 %v3088, %v3160
        %v3281 = vsub.f32 %v3089, %v3162
        %v3282 = vsub.f32 %v3090, %v3164
        %v3283 = vsub.f32 %v3091, %v3166
        %v3284 = vsub.f32 %v3092, %v3168
        %v3285 = vsub.f32 %v3093, %v3170
        %v3286 = vsub.f32 %v3094, %v3172
        %v3287 = vsub.f32 %v3095, %v3174
        %v3288 = vsub.f32 %v3096, %v3176
        %v3289 = vsub.f32 %v3097, %v3178
        %v3290 = vsub.f32 %v3098, %v3180
        %v3291 = vsub.f32 %v3099, %v3182
        %v3292 = vsub.f32 %v3100, %v3184
        %v3293 = vsub.f32 %v3101, %v3186
        %v3294 = vsub.f32 %v3102, %v3188
        %v3295 = vsub.f32 %v3103, %v3190
        %v3296 = vsub.f32 %v3104, %v3192
        %v3297 = vsub.f32 %v3105, %v3194
        %v3298 = vsub.f32 %v3106, %v3196
        %v3299 = vsub.f32 %v3107, %v3198
        %v3300 = vsub.f32 %v3108, %v3200
        %v3301 = vsub.f32 %v3109, %v3202
        %v3302 = vsub.f32 %v3110, %v3204
        %v3303 = vsub.f32 %v3111, %v3206
        %v3304 = vsub.f32 %v3112, %v3208
        %v3305 = vsub.f32 %v3113, %v3210
        %v3306 = vsub.f32 %v3114, %v3212
        %v3307 = vsub.f32 %v3115, %v3214
        %v3308 = vsub.f32 %v3116, %v3216
        %v3309 = vsub.f32 %v3117, %v3218
        %v3310 = vsub.f32 %v3118, %v3220
        %v3311 = vsub.f32 %v3119, %v3222
        %v3312 = vsub.f32 %v3120, %v3224
        %v3313 = vsub.f32 %v3121, %v3226
        %v3314 = vsub.f32 %v3122, %v3228
        %v3315 = vsub.f32 %v3123, %v3230
        %v3316 = vsub.f32 %v3124, %v3232
        %v3317 = vsub.f32 %v3125, %v3234
        %v3318 = vsub.f32 %v3126, %v3236
        %v3319 = vsub.f32 %v3127, %v3238
        %v3320 = vsub.f32 %v3128, %v3240
        %v3321 = vsub.f32 %v3129, %v3242
        %v3322 = vsub.f32 %v3130, %v3244
        %v3323 = vsub.f32 %v3131, %v3246
        %v3324 = vsub.f32 %v3132, %v3248
        %v3325 = vsub.f32 %v3133, %v3250
        %v3326 = vsub.f32 %v3134, %v3252
        %v3327 = vsub.f32 %v3135, %v3254
        %v3328 = vsub.f32 %v3136, %v3256
        %v3329 = vsub.f32 %v3137, %v3258
        %v3330 = vsub.f32 %v3138, %v3260
        %v3331 = vsub.f32 %v3139, %v3262
        %v3332 = vsub.f32 %v3140, %v3264
        %v3333 = vsub.f32 %v3141, %v3266
        %v3334 = vsub.f32 %v3142, %v3268
        %v3335 = vsub.f32 %v3143, %v3270
        %v3336 = vsub.f32 %v3144, %v3272
        %v3337 = vmul.f32 %v3273, 1.442695
        %v3338 = vpow.pop %v3337
        %v3339 = vmul.f32 %v3274, 1.442695
        %v3340 = vpow.pop %v3339
        %v3341 = vmul.f32 %v3275, 1.442695
        %v3342 = vpow.pop %v3341
        %v3343 = vmul.f32 %v3276, 1.442695
        %v3344 = vpow.pop %v3343
        %v3345 = vmul.f32 %v3277, 1.442695
        %v3346 = vpow.pop %v3345
        %v3347 = vmul.f32 %v3278, 1.442695
        %v3348 = vpow.pop %v3347
        %v3349 = vmul.f32 %v3279, 1.442695
        %v3350 = vpow.pop %v3349
        %v3351 = vmul.f32 %v3280, 1.442695
        %v3352 = vpow.pop %v3351
        %v3353 = vmul.f32 %v3281, 1.442695
        %v3354 = vpow.pop %v3353
        %v3355 = vmul.f32 %v3282, 1.442695
        %v3356 = vpow.pop %v3355
        %v3357 = vmul.f32 %v3283, 1.442695
        %v3358 = vpow.pop %v3357
        %v3359 = vmul.f32 %v3284, 1.442695
        %v3360 = vpow.pop %v3359
        %v3361 = vmul.f32 %v3285, 1.442695
        %v3362 = vpow.pop %v3361
        %v3363 = vmul.f32 %v3286, 1.442695
        %v3364 = vpow.pop %v3363
        %v3365 = vmul.f32 %v3287, 1.442695
        %v3366 = vpow.pop %v3365
        %v3367 = vmul.f32 %v3288, 1.442695
        %v3368 = vpow.pop %v3367
        %v3369 = vmul.f32 %v3289, 1.442695
        %v3370 = vpow.pop %v3369
        %v3371 = vmul.f32 %v3290, 1.442695
        %v3372 = vpow.pop %v3371
        %v3373 = vmul.f32 %v3291, 1.442695
        %v3374 = vpow.pop %v3373
        %v3375 = vmul.f32 %v3292, 1.442695
        %v3376 = vpow.pop %v3375
        %v3377 = vmul.f32 %v3293, 1.442695
        %v3378 = vpow.pop %v3377
        %v3379 = vmul.f32 %v3294, 1.442695
        %v3380 = vpow.pop %v3379
        %v3381 = vmul.f32 %v3295, 1.442695
        %v3382 = vpow.pop %v3381
        %v3383 = vmul.f32 %v3296, 1.442695
        %v3384 = vpow.pop %v3383
        %v3385 = vmul.f32 %v3297, 1.442695
        %v3386 = vpow.pop %v3385
        %v3387 = vmul.f32 %v3298, 1.442695
        %v3388 = vpow.pop %v3387
        %v3389 = vmul.f32 %v3299, 1.442695
        %v3390 = vpow.pop %v3389
        %v3391 = vmul.f32 %v3300, 1.442695
        %v3392 = vpow.pop %v3391
        %v3393 = vmul.f32 %v3301, 1.442695
        %v3394 = vpow.pop %v3393
        %v3395 = vmul.f32 %v3302, 1.442695
        %v3396 = vpow.pop %v3395
        %v3397 = vmul.f32 %v3303, 1.442695
        %v3398 = vpow.pop %v3397
        %v3399 = vmul.f32 %v3304, 1.442695
        %v3400 = vpow.pop %v3399
        %v3401 = vmul.f32 %v3305, 1.442695
        %v3402 = vpow.pop %v3401
        %v3403 = vmul.f32 %v3306, 1.442695
        %v3404 = vpow.pop %v3403
        %v3405 = vmul.f32 %v3307, 1.442695
        %v3406 = vpow.pop %v3405
        %v3407 = vmul.f32 %v3308, 1.442695
        %v3408 = vpow.pop %v3407
        %v3409 = vmul.f32 %v3309, 1.442695
        %v3410 = vpow.pop %v3409
        %v3411 = vmul.f32 %v3310, 1.442695
        %v3412 = vpow.pop %v3411
        %v3413 = vmul.f32 %v3311, 1.442695
        %v3414 = vpow.pop %v3413
        %v3415 = vmul.f32 %v3312, 1.442695
        %v3416 = vpow.pop %v3415
        %v3417 = vmul.f32 %v3313, 1.442695
        %v3418 = vpow.pop %v3417
        %v3419 = vmul.f32 %v3314, 1.442695
        %v3420 = vpow.pop %v3419
        %v3421 = vmul.f32 %v3315, 1.442695
        %v3422 = vpow.pop %v3421
        %v3423 = vmul.f32 %v3316, 1.442695
        %v3424 = vpow.pop %v3423
        %v3425 = vmul.f32 %v3317, 1.442695
        %v3426 = vpow.pop %v3425
        %v3427 = vmul.f32 %v3318, 1.442695
        %v3428 = vpow.pop %v3427
        %v3429 = vmul.f32 %v3319, 1.442695
        %v3430 = vpow.pop %v3429
        %v3431 = vmul.f32 %v3320, 1.442695
        %v3432 = vpow.pop %v3431
        %v3433 = vmul.f32 %v3321, 1.442695
        %v3434 = vpow.pop %v3433
        %v3435 = vmul.f32 %v3322, 1.442695
        %v3436 = vpow.pop %v3435
        %v3437 = vmul.f32 %v3323, 1.442695
        %v3438 = vpow.pop %v3437
        %v3439 = vmul.f32 %v3324, 1.442695
        %v3440 = vpow.pop %v3439
        %v3441 = vmul.f32 %v3325, 1.442695
        %v3442 = vpow.pop %v3441
        %v3443 = vmul.f32 %v3326, 1.442695
        %v3444 = vpow.pop %v3443
        %v3445 = vmul.f32 %v3327, 1.442695
        %v3446 = vpow.pop %v3445
        %v3447 = vmul.f32 %v3328, 1.442695
        %v3448 = vpow.pop %v3447
        %v3449 = vmul.f32 %v3329, 1.442695
        %v3450 = vpow.pop %v3449
        %v3451 = vmul.f32 %v3330, 1.442695
        %v3452 = vpow.pop %v3451
        %v3453 = vmul.f32 %v3331, 1.442695
        %v3454 = vpow.pop %v3453
        %v3455 = vmul.f32 %v3332, 1.442695
        %v3456 = vpow.pop %v3455
        %v3457 = vmul.f32 %v3333, 1.442695
        %v3458 = vpow.pop %v3457
        %v3459 = vmul.f32 %v3334, 1.442695
        %v3460 = vpow.pop %v3459
        %v3461 = vmul.f32 %v3335, 1.442695
        %v3462 = vpow.pop %v3461
        %v3463 = vmul.f32 %v3336, 1.442695
        %v3464 = vpow.pop %v3463
        %3465 = vadd.xlane.f32.xlu0 %v3338
        %v3466 = vpop.xlane.xlu0 %3465
        %3467 = vadd.xlane.f32.xlu0 %v3340
        %v3468 = vpop.xlane.xlu0 %3467
        %3469 = vadd.xlane.f32.xlu0 %v3342
        %v3470 = vpop.xlane.xlu0 %3469
        %3471 = vadd.xlane.f32.xlu0 %v3344
        %v3472 = vpop.xlane.xlu0 %3471
        %3473 = vadd.xlane.f32.xlu0 %v3346
        %v3474 = vpop.xlane.xlu0 %3473
        %3475 = vadd.xlane.f32.xlu0 %v3348
        %v3476 = vpop.xlane.xlu0 %3475
        %3477 = vadd.xlane.f32.xlu0 %v3350
        %v3478 = vpop.xlane.xlu0 %3477
        %3479 = vadd.xlane.f32.xlu0 %v3352
        %v3480 = vpop.xlane.xlu0 %3479
        %3481 = vadd.xlane.f32.xlu0 %v3354
        %v3482 = vpop.xlane.xlu0 %3481
        %3483 = vadd.xlane.f32.xlu0 %v3356
        %v3484 = vpop.xlane.xlu0 %3483
        %3485 = vadd.xlane.f32.xlu0 %v3358
        %v3486 = vpop.xlane.xlu0 %3485
        %3487 = vadd.xlane.f32.xlu0 %v3360
        %v3488 = vpop.xlane.xlu0 %3487
        %3489 = vadd.xlane.f32.xlu0 %v3362
        %v3490 = vpop.xlane.xlu0 %3489
        %3491 = vadd.xlane.f32.xlu0 %v3364
        %v3492 = vpop.xlane.xlu0 %3491
        %3493 = vadd.xlane.f32.xlu0 %v3366
        %v3494 = vpop.xlane.xlu0 %3493
        %3495 = vadd.xlane.f32.xlu0 %v3368
        %v3496 = vpop.xlane.xlu0 %3495
        %3497 = vadd.xlane.f32.xlu0 %v3370
        %v3498 = vpop.xlane.xlu0 %3497
        %3499 = vadd.xlane.f32.xlu0 %v3372
        %v3500 = vpop.xlane.xlu0 %3499
        %3501 = vadd.xlane.f32.xlu0 %v3374
        %v3502 = vpop.xlane.xlu0 %3501
        %3503 = vadd.xlane.f32.xlu0 %v3376
        %v3504 = vpop.xlane.xlu0 %3503
        %3505 = vadd.xlane.f32.xlu0 %v3378
        %v3506 = vpop.xlane.xlu0 %3505
        %3507 = vadd.xlane.f32.xlu0 %v3380
        %v3508 = vpop.xlane.xlu0 %3507
        %3509 = vadd.xlane.f32.xlu0 %v3382
        %v3510 = vpop.xlane.xlu0 %3509
        %3511 = vadd.xlane.f32.xlu0 %v3384
        %v3512 = vpop.xlane.xlu0 %3511
        %3513 = vadd.xlane.f32.xlu0 %v3386
        %v3514 = vpop.xlane.xlu0 %3513
        %3515 = vadd.xlane.f32.xlu0 %v3388
        %v3516 = vpop.xlane.xlu0 %3515
        %3517 = vadd.xlane.f32.xlu0 %v3390
        %v3518 = vpop.xlane.xlu0 %3517
        %3519 = vadd.xlane.f32.xlu0 %v3392
        %v3520 = vpop.xlane.xlu0 %3519
        %3521 = vadd.xlane.f32.xlu0 %v3394
        %v3522 = vpop.xlane.xlu0 %3521
        %3523 = vadd.xlane.f32.xlu0 %v3396
        %v3524 = vpop.xlane.xlu0 %3523
        %3525 = vadd.xlane.f32.xlu0 %v3398
        %v3526 = vpop.xlane.xlu0 %3525
        %3527 = vadd.xlane.f32.xlu0 %v3400
        %v3528 = vpop.xlane.xlu0 %3527
        %3529 = vadd.xlane.f32.xlu0 %v3402
        %v3530 = vpop.xlane.xlu0 %3529
        %3531 = vadd.xlane.f32.xlu0 %v3404
        %v3532 = vpop.xlane.xlu0 %3531
        %3533 = vadd.xlane.f32.xlu0 %v3406
        %v3534 = vpop.xlane.xlu0 %3533
        %3535 = vadd.xlane.f32.xlu0 %v3408
        %v3536 = vpop.xlane.xlu0 %3535
        %3537 = vadd.xlane.f32.xlu0 %v3410
        %v3538 = vpop.xlane.xlu0 %3537
        %3539 = vadd.xlane.f32.xlu0 %v3412
        %v3540 = vpop.xlane.xlu0 %3539
        %3541 = vadd.xlane.f32.xlu0 %v3414
        %v3542 = vpop.xlane.xlu0 %3541
        %3543 = vadd.xlane.f32.xlu0 %v3416
        %v3544 = vpop.xlane.xlu0 %3543
        %3545 = vadd.xlane.f32.xlu0 %v3418
        %v3546 = vpop.xlane.xlu0 %3545
        %3547 = vadd.xlane.f32.xlu0 %v3420
        %v3548 = vpop.xlane.xlu0 %3547
        %3549 = vadd.xlane.f32.xlu0 %v3422
        %v3550 = vpop.xlane.xlu0 %3549
        %3551 = vadd.xlane.f32.xlu0 %v3424
        %v3552 = vpop.xlane.xlu0 %3551
        %3553 = vadd.xlane.f32.xlu0 %v3426
        %v3554 = vpop.xlane.xlu0 %3553
        %3555 = vadd.xlane.f32.xlu0 %v3428
        %v3556 = vpop.xlane.xlu0 %3555
        %3557 = vadd.xlane.f32.xlu0 %v3430
        %v3558 = vpop.xlane.xlu0 %3557
        %3559 = vadd.xlane.f32.xlu0 %v3432
        %v3560 = vpop.xlane.xlu0 %3559
        %3561 = vadd.xlane.f32.xlu0 %v3434
        %v3562 = vpop.xlane.xlu0 %3561
        %3563 = vadd.xlane.f32.xlu0 %v3436
        %v3564 = vpop.xlane.xlu0 %3563
        %3565 = vadd.xlane.f32.xlu0 %v3438
        %v3566 = vpop.xlane.xlu0 %3565
        %3567 = vadd.xlane.f32.xlu0 %v3440
        %v3568 = vpop.xlane.xlu0 %3567
        %3569 = vadd.xlane.f32.xlu0 %v3442
        %v3570 = vpop.xlane.xlu0 %3569
        %3571 = vadd.xlane.f32.xlu0 %v3444
        %v3572 = vpop.xlane.xlu0 %3571
        %3573 = vadd.xlane.f32.xlu0 %v3446
        %v3574 = vpop.xlane.xlu0 %3573
        %3575 = vadd.xlane.f32.xlu0 %v3448
        %v3576 = vpop.xlane.xlu0 %3575
        %3577 = vadd.xlane.f32.xlu0 %v3450
        %v3578 = vpop.xlane.xlu0 %3577
        %3579 = vadd.xlane.f32.xlu0 %v3452
        %v3580 = vpop.xlane.xlu0 %3579
        %3581 = vadd.xlane.f32.xlu0 %v3454
        %v3582 = vpop.xlane.xlu0 %3581
        %3583 = vadd.xlane.f32.xlu0 %v3456
        %v3584 = vpop.xlane.xlu0 %3583
        %3585 = vadd.xlane.f32.xlu0 %v3458
        %v3586 = vpop.xlane.xlu0 %3585
        %3587 = vadd.xlane.f32.xlu0 %v3460
        %v3588 = vpop.xlane.xlu0 %3587
        %3589 = vadd.xlane.f32.xlu0 %v3462
        %v3590 = vpop.xlane.xlu0 %3589
        %3591 = vadd.xlane.f32.xlu0 %v3464
        %v3592 = vpop.xlane.xlu0 %3591
        %v3593 = vrcp.pop %v3466
        %v3594 = vrcp.pop %v3468
        %v3595 = vrcp.pop %v3470
        %v3596 = vrcp.pop %v3472
        %v3597 = vrcp.pop %v3474
        %v3598 = vrcp.pop %v3476
        %v3599 = vrcp.pop %v3478
        %v3600 = vrcp.pop %v3480
        %v3601 = vrcp.pop %v3482
        %v3602 = vrcp.pop %v3484
        %v3603 = vrcp.pop %v3486
        %v3604 = vrcp.pop %v3488
        %v3605 = vrcp.pop %v3490
        %v3606 = vrcp.pop %v3492
        %v3607 = vrcp.pop %v3494
        %v3608 = vrcp.pop %v3496
        %v3609 = vrcp.pop %v3498
        %v3610 = vrcp.pop %v3500
        %v3611 = vrcp.pop %v3502
        %v3612 = vrcp.pop %v3504
        %v3613 = vrcp.pop %v3506
        %v3614 = vrcp.pop %v3508
        %v3615 = vrcp.pop %v3510
        %v3616 = vrcp.pop %v3512
        %v3617 = vrcp.pop %v3514
        %v3618 = vrcp.pop %v3516
        %v3619 = vrcp.pop %v3518
        %v3620 = vrcp.pop %v3520
        %v3621 = vrcp.pop %v3522
        %v3622 = vrcp.pop %v3524
        %v3623 = vrcp.pop %v3526
        %v3624 = vrcp.pop %v3528
        %v3625 = vrcp.pop %v3530
        %v3626 = vrcp.pop %v3532
        %v3627 = vrcp.pop %v3534
        %v3628 = vrcp.pop %v3536
        %v3629 = vrcp.pop %v3538
        %v3630 = vrcp.pop %v3540
        %v3631 = vrcp.pop %v3542
        %v3632 = vrcp.pop %v3544
        %v3633 = vrcp.pop %v3546
        %v3634 = vrcp.pop %v3548
        %v3635 = vrcp.pop %v3550
        %v3636 = vrcp.pop %v3552
        %v3637 = vrcp.pop %v3554
        %v3638 = vrcp.pop %v3556
        %v3639 = vrcp.pop %v3558
        %v3640 = vrcp.pop %v3560
        %v3641 = vrcp.pop %v3562
        %v3642 = vrcp.pop %v3564
        %v3643 = vrcp.pop %v3566
        %v3644 = vrcp.pop %v3568
        %v3645 = vrcp.pop %v3570
        %v3646 = vrcp.pop %v3572
        %v3647 = vrcp.pop %v3574
        %v3648 = vrcp.pop %v3576
        %v3649 = vrcp.pop %v3578
        %v3650 = vrcp.pop %v3580
        %v3651 = vrcp.pop %v3582
        %v3652 = vrcp.pop %v3584
        %v3653 = vrcp.pop %v3586
        %v3654 = vrcp.pop %v3588
        %v3655 = vrcp.pop %v3590
        %v3656 = vrcp.pop %v3592
        %v3657 = vmul.f32 %v3338, %v3593
        %v3658 = vmul.f32 %v3340, %v3594
        %v3659 = vmul.f32 %v3342, %v3595
        %v3660 = vmul.f32 %v3344, %v3596
        %v3661 = vmul.f32 %v3346, %v3597
        %v3662 = vmul.f32 %v3348, %v3598
        %v3663 = vmul.f32 %v3350, %v3599
        %v3664 = vmul.f32 %v3352, %v3600
        %v3665 = vmul.f32 %v3354, %v3601
        %v3666 = vmul.f32 %v3356, %v3602
        %v3667 = vmul.f32 %v3358, %v3603
        %v3668 = vmul.f32 %v3360, %v3604
        %v3669 = vmul.f32 %v3362, %v3605
        %v3670 = vmul.f32 %v3364, %v3606
        %v3671 = vmul.f32 %v3366, %v3607
        %v3672 = vmul.f32 %v3368, %v3608
        %v3673 = vmul.f32 %v3370, %v3609
        %v3674 = vmul.f32 %v3372, %v3610
        %v3675 = vmul.f32 %v3374, %v3611
        %v3676 = vmul.f32 %v3376, %v3612
        %v3677 = vmul.f32 %v3378, %v3613
        %v3678 = vmul.f32 %v3380, %v3614
        %v3679 = vmul.f32 %v3382, %v3615
        %v3680 = vmul.f32 %v3384, %v3616
        %v3681 = vmul.f32 %v3386, %v3617
        %v3682 = vmul.f32 %v3388, %v3618
        %v3683 = vmul.f32 %v3390, %v3619
        %v3684 = vmul.f32 %v3392, %v3620
        %v3685 = vmul.f32 %v3394, %v3621
        %v3686 = vmul.f32 %v3396, %v3622
        %v3687 = vmul.f32 %v3398, %v3623
        %v3688 = vmul.f32 %v3400, %v3624
        %v3689 = vmul.f32 %v3402, %v3625
        %v3690 = vmul.f32 %v3404, %v3626
        %v3691 = vmul.f32 %v3406, %v3627
        %v3692 = vmul.f32 %v3408, %v3628
        %v3693 = vmul.f32 %v3410, %v3629
        %v3694 = vmul.f32 %v3412, %v3630
        %v3695 = vmul.f32 %v3414, %v3631
        %v3696 = vmul.f32 %v3416, %v3632
        %v3697 = vmul.f32 %v3418, %v3633
        %v3698 = vmul.f32 %v3420, %v3634
        %v3699 = vmul.f32 %v3422, %v3635
        %v3700 = vmul.f32 %v3424, %v3636
        %v3701 = vmul.f32 %v3426, %v3637
        %v3702 = vmul.f32 %v3428, %v3638
        %v3703 = vmul.f32 %v3430, %v3639
        %v3704 = vmul.f32 %v3432, %v3640
        %v3705 = vmul.f32 %v3434, %v3641
        %v3706 = vmul.f32 %v3436, %v3642
        %v3707 = vmul.f32 %v3438, %v3643
        %v3708 = vmul.f32 %v3440, %v3644
        %v3709 = vmul.f32 %v3442, %v3645
        %v3710 = vmul.f32 %v3444, %v3646
        %v3711 = vmul.f32 %v3446, %v3647
        %v3712 = vmul.f32 %v3448, %v3648
        %v3713 = vmul.f32 %v3450, %v3649
        %v3714 = vmul.f32 %v3452, %v3650
        %v3715 = vmul.f32 %v3454, %v3651
        %v3716 = vmul.f32 %v3456, %v3652
        %v3717 = vmul.f32 %v3458, %v3653
        %v3718 = vmul.f32 %v3460, %v3654
        %v3719 = vmul.f32 %v3462, %v3655
        %v3720 = vmul.f32 %v3464, %v3656
        %v3721 = vpack.c.bf16 %v3657, %v3657
        %v3722 = vpack.c.bf16 %v3658, %v3658
        %v3723 = vpack.c.bf16 %v3659, %v3659
        %v3724 = vpack.c.bf16 %v3660, %v3660
        %v3725 = vpack.c.bf16 %v3661, %v3661
        %v3726 = vpack.c.bf16 %v3662, %v3662
        %v3727 = vpack.c.bf16 %v3663, %v3663
        %v3728 = vpack.c.bf16 %v3664, %v3664
        %v3729 = vpack.c.bf16 %v3665, %v3665
        %v3730 = vpack.c.bf16 %v3666, %v3666
        %v3731 = vpack.c.bf16 %v3667, %v3667
        %v3732 = vpack.c.bf16 %v3668, %v3668
        %v3733 = vpack.c.bf16 %v3669, %v3669
        %v3734 = vpack.c.bf16 %v3670, %v3670
        %v3735 = vpack.c.bf16 %v3671, %v3671
        %v3736 = vpack.c.bf16 %v3672, %v3672
        %v3737 = vpack.c.bf16 %v3673, %v3673
        %v3738 = vpack.c.bf16 %v3674, %v3674
        %v3739 = vpack.c.bf16 %v3675, %v3675
        %v3740 = vpack.c.bf16 %v3676, %v3676
        %v3741 = vpack.c.bf16 %v3677, %v3677
        %v3742 = vpack.c.bf16 %v3678, %v3678
        %v3743 = vpack.c.bf16 %v3679, %v3679
        %v3744 = vpack.c.bf16 %v3680, %v3680
        %v3745 = vpack.c.bf16 %v3681, %v3681
        %v3746 = vpack.c.bf16 %v3682, %v3682
        %v3747 = vpack.c.bf16 %v3683, %v3683
        %v3748 = vpack.c.bf16 %v3684, %v3684
        %v3749 = vpack.c.bf16 %v3685, %v3685
        %v3750 = vpack.c.bf16 %v3686, %v3686
        %v3751 = vpack.c.bf16 %v3687, %v3687
        %v3752 = vpack.c.bf16 %v3688, %v3688
        %v3753 = vpack.c.bf16 %v3689, %v3689
        %v3754 = vpack.c.bf16 %v3690, %v3690
        %v3755 = vpack.c.bf16 %v3691, %v3691
        %v3756 = vpack.c.bf16 %v3692, %v3692
        %v3757 = vpack.c.bf16 %v3693, %v3693
        %v3758 = vpack.c.bf16 %v3694, %v3694
        %v3759 = vpack.c.bf16 %v3695, %v3695
        %v3760 = vpack.c.bf16 %v3696, %v3696
        %v3761 = vpack.c.bf16 %v3697, %v3697
        %v3762 = vpack.c.bf16 %v3698, %v3698
        %v3763 = vpack.c.bf16 %v3699, %v3699
        %v3764 = vpack.c.bf16 %v3700, %v3700
        %v3765 = vpack.c.bf16 %v3701, %v3701
        %v3766 = vpack.c.bf16 %v3702, %v3702
        %v3767 = vpack.c.bf16 %v3703, %v3703
        %v3768 = vpack.c.bf16 %v3704, %v3704
        %v3769 = vpack.c.bf16 %v3705, %v3705
        %v3770 = vpack.c.bf16 %v3706, %v3706
        %v3771 = vpack.c.bf16 %v3707, %v3707
        %v3772 = vpack.c.bf16 %v3708, %v3708
        %v3773 = vpack.c.bf16 %v3709, %v3709
        %v3774 = vpack.c.bf16 %v3710, %v3710
        %v3775 = vpack.c.bf16 %v3711, %v3711
        %v3776 = vpack.c.bf16 %v3712, %v3712
        %v3777 = vpack.c.bf16 %v3713, %v3713
        %v3778 = vpack.c.bf16 %v3714, %v3714
        %v3779 = vpack.c.bf16 %v3715, %v3715
        %v3780 = vpack.c.bf16 %v3716, %v3716
        %v3781 = vpack.c.bf16 %v3717, %v3717
        %v3782 = vpack.c.bf16 %v3718, %v3718
        %v3783 = vpack.c.bf16 %v3719, %v3719
        %v3784 = vpack.c.bf16 %v3720, %v3720
        %v3801 = vunpack.c.l.b16 %v3721
        %v3802 = vunpack.c.l.b16 %v3722
        %v3803 = vunpack.c.l.b16 %v3723
        %v3804 = vunpack.c.l.b16 %v3724
        %v3805 = vunpack.c.l.b16 %v3725
        %v3806 = vunpack.c.l.b16 %v3726
        %v3807 = vunpack.c.l.b16 %v3727
        %v3808 = vunpack.c.l.b16 %v3728
        %v3809 = vunpack.c.l.b16 %v3729
        %v3810 = vunpack.c.l.b16 %v3730
        %v3811 = vunpack.c.l.b16 %v3731
        %v3812 = vunpack.c.l.b16 %v3732
        %v3813 = vunpack.c.l.b16 %v3733
        %v3814 = vunpack.c.l.b16 %v3734
        %v3815 = vunpack.c.l.b16 %v3735
        %v3816 = vunpack.c.l.b16 %v3736
        %v3817 = vpack.c.b16 %v3802, %v3801
        %v3818 = vpack.c.b16 %v3804, %v3803
        %v3819 = vpack.c.b16 %v3806, %v3805
        %v3820 = vpack.c.b16 %v3808, %v3807
        %v3821 = vpack.c.b16 %v3810, %v3809
        %v3822 = vpack.c.b16 %v3812, %v3811
        %v3823 = vpack.c.b16 %v3814, %v3813
        %v3824 = vpack.c.b16 %v3816, %v3815
        %v3849 = vunpack.c.l.b16 %v2369
        %v3850 = vunpack.c.l.b16 %v2370
        %v3851 = vunpack.c.l.b16 %v2371
        %v3852 = vunpack.c.l.b16 %v2372
        %v3853 = vunpack.c.l.b16 %v2373
        %v3854 = vunpack.c.l.b16 %v2374
        %v3855 = vunpack.c.l.b16 %v2375
        %v3856 = vunpack.c.l.b16 %v2376
        %v3857 = vunpack.c.l.b16 %v2377
        %v3858 = vunpack.c.l.b16 %v2378
        %v3859 = vunpack.c.l.b16 %v2379
        %v3860 = vunpack.c.l.b16 %v2380
        %v3861 = vunpack.c.l.b16 %v2381
        %v3862 = vunpack.c.l.b16 %v2382
        %v3863 = vunpack.c.l.b16 %v2383
        %v3864 = vunpack.c.l.b16 %v2384
        %v3865 = vpack.c.b16 %v3850, %v3849
        %v3866 = vpack.c.b16 %v3852, %v3851
        %v3867 = vpack.c.b16 %v3854, %v3853
        %v3868 = vpack.c.b16 %v3856, %v3855
        %v3869 = vpack.c.b16 %v3858, %v3857
        %v3870 = vpack.c.b16 %v3860, %v3859
        %v3871 = vpack.c.b16 %v3862, %v3861
        %v3872 = vpack.c.b16 %v3864, %v3863
        %3881 = vmatpush.bf16.msra.mxu0 %v3872
        %3882 = vmatpush.bf16.msra.mxu0 %v3871
        %3883 = vmatpush.bf16.msra.mxu0 %v3870
        %3884 = vmatpush.bf16.msra.mxu0 %v3869
        %3885 = vmatpush.bf16.msra.mxu0 %v3868
        %3886 = vmatpush.bf16.msra.mxu0 %v3867
        %3887 = vmatpush.bf16.msra.mxu0 %v3866
        %3888 = vmatpush.bf16.msra.mxu0 %v3865
        %3889 = vmatmul.bf16.gmra.mxu0 %v3817
        %v3890 = vpop.f32.mrf.mxu0
        %v3891 = vadd.f32 0.0, %v3890
        %v3892 = vpop.f32.mrf.mxu0
        %v3893 = vadd.f32 0.0, %v3892
        %3894 = vmatmul.bf16.gmra.mxu0 %v3818
        %v3895 = vpop.f32.mrf.mxu0
        %v3896 = vadd.f32 0.0, %v3895
        %v3897 = vpop.f32.mrf.mxu0
        %v3898 = vadd.f32 0.0, %v3897
        %3899 = vmatmul.bf16.gmra.mxu0 %v3819
        %v3900 = vpop.f32.mrf.mxu0
        %v3901 = vadd.f32 0.0, %v3900
        %v3902 = vpop.f32.mrf.mxu0
        %v3903 = vadd.f32 0.0, %v3902
        %3904 = vmatmul.bf16.gmra.mxu0 %v3820
        %v3905 = vpop.f32.mrf.mxu0
        %v3906 = vadd.f32 0.0, %v3905
        %v3907 = vpop.f32.mrf.mxu0
        %v3908 = vadd.f32 0.0, %v3907
        %3909 = vmatmul.bf16.gmra.mxu0 %v3821
        %v3910 = vpop.f32.mrf.mxu0
        %v3911 = vadd.f32 0.0, %v3910
        %v3912 = vpop.f32.mrf.mxu0
        %v3913 = vadd.f32 0.0, %v3912
        %3914 = vmatmul.bf16.gmra.mxu0 %v3822
        %v3915 = vpop.f32.mrf.mxu0
        %v3916 = vadd.f32 0.0, %v3915
        %v3917 = vpop.f32.mrf.mxu0
        %v3918 = vadd.f32 0.0, %v3917
        %3919 = vmatmul.bf16.gmra.mxu0 %v3823
        %v3920 = vpop.f32.mrf.mxu0
        %v3921 = vadd.f32 0.0, %v3920
        %v3922 = vpop.f32.mrf.mxu0
        %v3923 = vadd.f32 0.0, %v3922
        %3924 = vmatmul.bf16.gmra.mxu0 %v3824
        %v3925 = vpop.f32.mrf.mxu0
        %v3926 = vadd.f32 0.0, %v3925
        %v3927 = vpop.f32.mrf.mxu0
        %v3928 = vadd.f32 0.0, %v3927
        %3929 = vdwg.mxu0
        %v3946 = vunpack.c.l.b16 %v3737
        %v3947 = vunpack.c.l.b16 %v3738
        %v3948 = vunpack.c.l.b16 %v3739
        %v3949 = vunpack.c.l.b16 %v3740
        %v3950 = vunpack.c.l.b16 %v3741
        %v3951 = vunpack.c.l.b16 %v3742
        %v3952 = vunpack.c.l.b16 %v3743
        %v3953 = vunpack.c.l.b16 %v3744
        %v3954 = vunpack.c.l.b16 %v3745
        %v3955 = vunpack.c.l.b16 %v3746
        %v3956 = vunpack.c.l.b16 %v3747
        %v3957 = vunpack.c.l.b16 %v3748
        %v3958 = vunpack.c.l.b16 %v3749
        %v3959 = vunpack.c.l.b16 %v3750
        %v3960 = vunpack.c.l.b16 %v3751
        %v3961 = vunpack.c.l.b16 %v3752
        %v3962 = vpack.c.b16 %v3947, %v3946
        %v3963 = vpack.c.b16 %v3949, %v3948
        %v3964 = vpack.c.b16 %v3951, %v3950
        %v3965 = vpack.c.b16 %v3953, %v3952
        %v3966 = vpack.c.b16 %v3955, %v3954
        %v3967 = vpack.c.b16 %v3957, %v3956
        %v3968 = vpack.c.b16 %v3959, %v3958
        %v3969 = vpack.c.b16 %v3961, %v3960
        %v3994 = vunpack.c.l.b16 %v2385
        %v3995 = vunpack.c.l.b16 %v2386
        %v3996 = vunpack.c.l.b16 %v2387
        %v3997 = vunpack.c.l.b16 %v2388
        %v3998 = vunpack.c.l.b16 %v2389
        %v3999 = vunpack.c.l.b16 %v2390
        %v4000 = vunpack.c.l.b16 %v2391
        %v4001 = vunpack.c.l.b16 %v2392
        %v4002 = vunpack.c.l.b16 %v2393
        %v4003 = vunpack.c.l.b16 %v2394
        %v4004 = vunpack.c.l.b16 %v2395
        %v4005 = vunpack.c.l.b16 %v2396
        %v4006 = vunpack.c.l.b16 %v2397
        %v4007 = vunpack.c.l.b16 %v2398
        %v4008 = vunpack.c.l.b16 %v2399
        %v4009 = vunpack.c.l.b16 %v2400
        %v4010 = vpack.c.b16 %v3995, %v3994
        %v4011 = vpack.c.b16 %v3997, %v3996
        %v4012 = vpack.c.b16 %v3999, %v3998
        %v4013 = vpack.c.b16 %v4001, %v4000
        %v4014 = vpack.c.b16 %v4003, %v4002
        %v4015 = vpack.c.b16 %v4005, %v4004
        %v4016 = vpack.c.b16 %v4007, %v4006
        %v4017 = vpack.c.b16 %v4009, %v4008
        %4026 = vmatpush.bf16.msra.mxu0 %v4017
        %4027 = vmatpush.bf16.msra.mxu0 %v4016
        %4028 = vmatpush.bf16.msra.mxu0 %v4015
        %4029 = vmatpush.bf16.msra.mxu0 %v4014
        %4030 = vmatpush.bf16.msra.mxu0 %v4013
        %4031 = vmatpush.bf16.msra.mxu0 %v4012
        %4032 = vmatpush.bf16.msra.mxu0 %v4011
        %4033 = vmatpush.bf16.msra.mxu0 %v4010
        %4034 = vmatmul.bf16.gmra.mxu0 %v3962
        %v4035 = vpop.f32.mrf.mxu0
        %v4036 = vadd.f32 0.0, %v4035
        %v4037 = vpop.f32.mrf.mxu0
        %v4038 = vadd.f32 0.0, %v4037
        %4039 = vmatmul.bf16.gmra.mxu0 %v3963
        %v4040 = vpop.f32.mrf.mxu0
        %v4041 = vadd.f32 0.0, %v4040
        %v4042 = vpop.f32.mrf.mxu0
        %v4043 = vadd.f32 0.0, %v4042
        %4044 = vmatmul.bf16.gmra.mxu0 %v3964
        %v4045 = vpop.f32.mrf.mxu0
        %v4046 = vadd.f32 0.0, %v4045
        %v4047 = vpop.f32.mrf.mxu0
        %v4048 = vadd.f32 0.0, %v4047
        %4049 = vmatmul.bf16.gmra.mxu0 %v3965
        %v4050 = vpop.f32.mrf.mxu0
        %v4051 = vadd.f32 0.0, %v4050
        %v4052 = vpop.f32.mrf.mxu0
        %v4053 = vadd.f32 0.0, %v4052
        %4054 = vmatmul.bf16.gmra.mxu0 %v3966
        %v4055 = vpop.f32.mrf.mxu0
        %v4056 = vadd.f32 0.0, %v4055
        %v4057 = vpop.f32.mrf.mxu0
        %v4058 = vadd.f32 0.0, %v4057
        %4059 = vmatmul.bf16.gmra.mxu0 %v3967
        %v4060 = vpop.f32.mrf.mxu0
        %v4061 = vadd.f32 0.0, %v4060
        %v4062 = vpop.f32.mrf.mxu0
        %v4063 = vadd.f32 0.0, %v4062
        %4064 = vmatmul.bf16.gmra.mxu0 %v3968
        %v4065 = vpop.f32.mrf.mxu0
        %v4066 = vadd.f32 0.0, %v4065
        %v4067 = vpop.f32.mrf.mxu0
        %v4068 = vadd.f32 0.0, %v4067
        %4069 = vmatmul.bf16.gmra.mxu0 %v3969
        %v4070 = vpop.f32.mrf.mxu0
        %v4071 = vadd.f32 0.0, %v4070
        %v4072 = vpop.f32.mrf.mxu0
        %v4073 = vadd.f32 0.0, %v4072
        %4074 = vdwg.mxu0
        %v4091 = vunpack.c.l.b16 %v3753
        %v4092 = vunpack.c.l.b16 %v3754
        %v4093 = vunpack.c.l.b16 %v3755
        %v4094 = vunpack.c.l.b16 %v3756
        %v4095 = vunpack.c.l.b16 %v3757
        %v4096 = vunpack.c.l.b16 %v3758
        %v4097 = vunpack.c.l.b16 %v3759
        %v4098 = vunpack.c.l.b16 %v3760
        %v4099 = vunpack.c.l.b16 %v3761
        %v4100 = vunpack.c.l.b16 %v3762
        %v4101 = vunpack.c.l.b16 %v3763
        %v4102 = vunpack.c.l.b16 %v3764
        %v4103 = vunpack.c.l.b16 %v3765
        %v4104 = vunpack.c.l.b16 %v3766
        %v4105 = vunpack.c.l.b16 %v3767
        %v4106 = vunpack.c.l.b16 %v3768
        %v4107 = vpack.c.b16 %v4092, %v4091
        %v4108 = vpack.c.b16 %v4094, %v4093
        %v4109 = vpack.c.b16 %v4096, %v4095
        %v4110 = vpack.c.b16 %v4098, %v4097
        %v4111 = vpack.c.b16 %v4100, %v4099
        %v4112 = vpack.c.b16 %v4102, %v4101
        %v4113 = vpack.c.b16 %v4104, %v4103
        %v4114 = vpack.c.b16 %v4106, %v4105
        %v4139 = vunpack.c.l.b16 %v2401
        %v4140 = vunpack.c.l.b16 %v2402
        %v4141 = vunpack.c.l.b16 %v2403
        %v4142 = vunpack.c.l.b16 %v2404
        %v4143 = vunpack.c.l.b16 %v2405
        %v4144 = vunpack.c.l.b16 %v2406
        %v4145 = vunpack.c.l.b16 %v2407
        %v4146 = vunpack.c.l.b16 %v2408
        %v4147 = vunpack.c.l.b16 %v2409
        %v4148 = vunpack.c.l.b16 %v2410
        %v4149 = vunpack.c.l.b16 %v2411
        %v4150 = vunpack.c.l.b16 %v2412
        %v4151 = vunpack.c.l.b16 %v2413
        %v4152 = vunpack.c.l.b16 %v2414
        %v4153 = vunpack.c.l.b16 %v2415
        %v4154 = vunpack.c.l.b16 %v2416
        %v4155 = vpack.c.b16 %v4140, %v4139
        %v4156 = vpack.c.b16 %v4142, %v4141
        %v4157 = vpack.c.b16 %v4144, %v4143
        %v4158 = vpack.c.b16 %v4146, %v4145
        %v4159 = vpack.c.b16 %v4148, %v4147
        %v4160 = vpack.c.b16 %v4150, %v4149
        %v4161 = vpack.c.b16 %v4152, %v4151
        %v4162 = vpack.c.b16 %v4154, %v4153
        %4171 = vmatpush.bf16.msra.mxu0 %v4162
        %4172 = vmatpush.bf16.msra.mxu0 %v4161
        %4173 = vmatpush.bf16.msra.mxu0 %v4160
        %4174 = vmatpush.bf16.msra.mxu0 %v4159
        %4175 = vmatpush.bf16.msra.mxu0 %v4158
        %4176 = vmatpush.bf16.msra.mxu0 %v4157
        %4177 = vmatpush.bf16.msra.mxu0 %v4156
        %4178 = vmatpush.bf16.msra.mxu0 %v4155
        %4179 = vmatmul.bf16.gmra.mxu0 %v4107
        %v4180 = vpop.f32.mrf.mxu0
        %v4181 = vadd.f32 0.0, %v4180
        %v4182 = vpop.f32.mrf.mxu0
        %v4183 = vadd.f32 0.0, %v4182
        %4184 = vmatmul.bf16.gmra.mxu0 %v4108
        %v4185 = vpop.f32.mrf.mxu0
        %v4186 = vadd.f32 0.0, %v4185
        %v4187 = vpop.f32.mrf.mxu0
        %v4188 = vadd.f32 0.0, %v4187
        %4189 = vmatmul.bf16.gmra.mxu0 %v4109
        %v4190 = vpop.f32.mrf.mxu0
        %v4191 = vadd.f32 0.0, %v4190
        %v4192 = vpop.f32.mrf.mxu0
        %v4193 = vadd.f32 0.0, %v4192
        %4194 = vmatmul.bf16.gmra.mxu0 %v4110
        %v4195 = vpop.f32.mrf.mxu0
        %v4196 = vadd.f32 0.0, %v4195
        %v4197 = vpop.f32.mrf.mxu0
        %v4198 = vadd.f32 0.0, %v4197
        %4199 = vmatmul.bf16.gmra.mxu0 %v4111
        %v4200 = vpop.f32.mrf.mxu0
        %v4201 = vadd.f32 0.0, %v4200
        %v4202 = vpop.f32.mrf.mxu0
        %v4203 = vadd.f32 0.0, %v4202
        %4204 = vmatmul.bf16.gmra.mxu0 %v4112
        %v4205 = vpop.f32.mrf.mxu0
        %v4206 = vadd.f32 0.0, %v4205
        %v4207 = vpop.f32.mrf.mxu0
        %v4208 = vadd.f32 0.0, %v4207
        %4209 = vmatmul.bf16.gmra.mxu0 %v4113
        %v4210 = vpop.f32.mrf.mxu0
        %v4211 = vadd.f32 0.0, %v4210
        %v4212 = vpop.f32.mrf.mxu0
        %v4213 = vadd.f32 0.0, %v4212
        %4214 = vmatmul.bf16.gmra.mxu0 %v4114
        %v4215 = vpop.f32.mrf.mxu0
        %v4216 = vadd.f32 0.0, %v4215
        %v4217 = vpop.f32.mrf.mxu0
        %v4218 = vadd.f32 0.0, %v4217
        %4219 = vdwg.mxu0
        %v4236 = vunpack.c.l.b16 %v3769
        %v4237 = vunpack.c.l.b16 %v3770
        %v4238 = vunpack.c.l.b16 %v3771
        %v4239 = vunpack.c.l.b16 %v3772
        %v4240 = vunpack.c.l.b16 %v3773
        %v4241 = vunpack.c.l.b16 %v3774
        %v4242 = vunpack.c.l.b16 %v3775
        %v4243 = vunpack.c.l.b16 %v3776
        %v4244 = vunpack.c.l.b16 %v3777
        %v4245 = vunpack.c.l.b16 %v3778
        %v4246 = vunpack.c.l.b16 %v3779
        %v4247 = vunpack.c.l.b16 %v3780
        %v4248 = vunpack.c.l.b16 %v3781
        %v4249 = vunpack.c.l.b16 %v3782
        %v4250 = vunpack.c.l.b16 %v3783
        %v4251 = vunpack.c.l.b16 %v3784
        %v4252 = vpack.c.b16 %v4237, %v4236
        %v4253 = vpack.c.b16 %v4239, %v4238
        %v4254 = vpack.c.b16 %v4241, %v4240
        %v4255 = vpack.c.b16 %v4243, %v4242
        %v4256 = vpack.c.b16 %v4245, %v4244
        %v4257 = vpack.c.b16 %v4247, %v4246
        %v4258 = vpack.c.b16 %v4249, %v4248
        %v4259 = vpack.c.b16 %v4251, %v4250
        %v4284 = vunpack.c.l.b16 %v2417
        %v4285 = vunpack.c.l.b16 %v2418
        %v4286 = vunpack.c.l.b16 %v2419
        %v4287 = vunpack.c.l.b16 %v2420
        %v4288 = vunpack.c.l.b16 %v2421
        %v4289 = vunpack.c.l.b16 %v2422
        %v4290 = vunpack.c.l.b16 %v2423
        %v4291 = vunpack.c.l.b16 %v2424
        %v4292 = vunpack.c.l.b16 %v2425
        %v4293 = vunpack.c.l.b16 %v2426
        %v4294 = vunpack.c.l.b16 %v2427
        %v4295 = vunpack.c.l.b16 %v2428
        %v4296 = vunpack.c.l.b16 %v2429
        %v4297 = vunpack.c.l.b16 %v2430
        %v4298 = vunpack.c.l.b16 %v2431
        %v4299 = vunpack.c.l.b16 %v2432
        %v4300 = vpack.c.b16 %v4285, %v4284
        %v4301 = vpack.c.b16 %v4287, %v4286
        %v4302 = vpack.c.b16 %v4289, %v4288
        %v4303 = vpack.c.b16 %v4291, %v4290
        %v4304 = vpack.c.b16 %v4293, %v4292
        %v4305 = vpack.c.b16 %v4295, %v4294
        %v4306 = vpack.c.b16 %v4297, %v4296
        %v4307 = vpack.c.b16 %v4299, %v4298
        %4316 = vmatpush.bf16.msra.mxu0 %v4307
        %4317 = vmatpush.bf16.msra.mxu0 %v4306
        %4318 = vmatpush.bf16.msra.mxu0 %v4305
        %4319 = vmatpush.bf16.msra.mxu0 %v4304
        %4320 = vmatpush.bf16.msra.mxu0 %v4303
        %4321 = vmatpush.bf16.msra.mxu0 %v4302
        %4322 = vmatpush.bf16.msra.mxu0 %v4301
        %4323 = vmatpush.bf16.msra.mxu0 %v4300
        %4324 = vmatmul.bf16.gmra.mxu0 %v4252
        %v4325 = vpop.f32.mrf.mxu0
        %v4326 = vadd.f32 0.0, %v4325
        %v4327 = vpop.f32.mrf.mxu0
        %v4328 = vadd.f32 0.0, %v4327
        %4329 = vmatmul.bf16.gmra.mxu0 %v4253
        %v4330 = vpop.f32.mrf.mxu0
        %v4331 = vadd.f32 0.0, %v4330
        %v4332 = vpop.f32.mrf.mxu0
        %v4333 = vadd.f32 0.0, %v4332
        %4334 = vmatmul.bf16.gmra.mxu0 %v4254
        %v4335 = vpop.f32.mrf.mxu0
        %v4336 = vadd.f32 0.0, %v4335
        %v4337 = vpop.f32.mrf.mxu0
        %v4338 = vadd.f32 0.0, %v4337
        %4339 = vmatmul.bf16.gmra.mxu0 %v4255
        %v4340 = vpop.f32.mrf.mxu0
        %v4341 = vadd.f32 0.0, %v4340
        %v4342 = vpop.f32.mrf.mxu0
        %v4343 = vadd.f32 0.0, %v4342
        %4344 = vmatmul.bf16.gmra.mxu0 %v4256
        %v4345 = vpop.f32.mrf.mxu0
        %v4346 = vadd.f32 0.0, %v4345
        %v4347 = vpop.f32.mrf.mxu0
        %v4348 = vadd.f32 0.0, %v4347
        %4349 = vmatmul.bf16.gmra.mxu0 %v4257
        %v4350 = vpop.f32.mrf.mxu0
        %v4351 = vadd.f32 0.0, %v4350
        %v4352 = vpop.f32.mrf.mxu0
        %v4353 = vadd.f32 0.0, %v4352
        %4354 = vmatmul.bf16.gmra.mxu0 %v4258
        %v4355 = vpop.f32.mrf.mxu0
        %v4356 = vadd.f32 0.0, %v4355
        %v4357 = vpop.f32.mrf.mxu0
        %v4358 = vadd.f32 0.0, %v4357
        %4359 = vmatmul.bf16.gmra.mxu0 %v4259
        %v4360 = vpop.f32.mrf.mxu0
        %v4361 = vadd.f32 0.0, %v4360
        %v4362 = vpop.f32.mrf.mxu0
        %v4363 = vadd.f32 0.0, %v4362
        %4364 = vdwg.mxu0
        %4365 = vst.msk [vmem:[%s169] sm:$0xff] %vm2489, %v3891
        %4366 = vst.msk [vmem:[%s169 + $0x8] sm:$0xff] %vm2489, %v3893
        %4367 = vst.msk [vmem:[%s169 + $0x10] sm:$0xff] %vm2489, %v3896
        %4368 = vst.msk [vmem:[%s169 + $0x18] sm:$0xff] %vm2489, %v3898
        %4369 = vst.msk [vmem:[%s169 + $0x20] sm:$0xff] %vm2489, %v3901
        %4370 = vst.msk [vmem:[%s169 + $0x28] sm:$0xff] %vm2489, %v3903
        %4371 = vst.msk [vmem:[%s169 + $0x30] sm:$0xff] %vm2489, %v3906
        %4372 = vst.msk [vmem:[%s169 + $0x38] sm:$0xff] %vm2489, %v3908
        %4373 = vst.msk [vmem:[%s169 + $0x40] sm:$0xff] %vm2489, %v3911
        %4374 = vst.msk [vmem:[%s169 + $0x48] sm:$0xff] %vm2489, %v3913
        %4375 = vst.msk [vmem:[%s169 + $0x50] sm:$0xff] %vm2489, %v3916
        %4376 = vst.msk [vmem:[%s169 + $0x58] sm:$0xff] %vm2489, %v3918
        %4377 = vst.msk [vmem:[%s169 + $0x60] sm:$0xff] %vm2489, %v3921
        %4378 = vst.msk [vmem:[%s169 + $0x68] sm:$0xff] %vm2489, %v3923
        %4379 = vst.msk [vmem:[%s169 + $0x70] sm:$0xff] %vm2489, %v3926
        %4380 = vst.msk [vmem:[%s169 + $0x78] sm:$0xff] %vm2489, %v3928
        %4381 = vst.msk [vmem:[%s169 + $0x80] sm:$0xff] %vm2489, %v4036
        %4382 = vst.msk [vmem:[%s169 + $0x88] sm:$0xff] %vm2489, %v4038
        %4383 = vst.msk [vmem:[%s169 + $0x90] sm:$0xff] %vm2489, %v4041
        %4384 = vst.msk [vmem:[%s169 + $0x98] sm:$0xff] %vm2489, %v4043
        %4385 = vst.msk [vmem:[%s169 + $0xa0] sm:$0xff] %vm2489, %v4046
        %4386 = vst.msk [vmem:[%s169 + $0xa8] sm:$0xff] %vm2489, %v4048
        %4387 = vst.msk [vmem:[%s169 + $0xb0] sm:$0xff] %vm2489, %v4051
        %4388 = vst.msk [vmem:[%s169 + $0xb8] sm:$0xff] %vm2489, %v4053
        %4389 = vst.msk [vmem:[%s169 + $0xc0] sm:$0xff] %vm2489, %v4056
        %4390 = vst.msk [vmem:[%s169 + $0xc8] sm:$0xff] %vm2489, %v4058
        %4391 = vst.msk [vmem:[%s169 + $0xd0] sm:$0xff] %vm2489, %v4061
        %4392 = vst.msk [vmem:[%s169 + $0xd8] sm:$0xff] %vm2489, %v4063
        %4393 = vst.msk [vmem:[%s169 + $0xe0] sm:$0xff] %vm2489, %v4066
        %4394 = vst.msk [vmem:[%s169 + $0xe8] sm:$0xff] %vm2489, %v4068
        %4395 = vst.msk [vmem:[%s169 + $0xf0] sm:$0xff] %vm2489, %v4071
        %4396 = vst.msk [vmem:[%s169 + $0xf8] sm:$0xff] %vm2489, %v4073
        %4397 = vst.msk [vmem:[%s169 + $0x100] sm:$0xff] %vm2489, %v4181
        %4398 = vst.msk [vmem:[%s169 + $0x108] sm:$0xff] %vm2489, %v4183
        %4399 = vst.msk [vmem:[%s169 + $0x110] sm:$0xff] %vm2489, %v4186
        %4400 = vst.msk [vmem:[%s169 + $0x118] sm:$0xff] %vm2489, %v4188
        %4401 = vst.msk [vmem:[%s169 + $0x120] sm:$0xff] %vm2489, %v4191
        %4402 = vst.msk [vmem:[%s169 + $0x128] sm:$0xff] %vm2489, %v4193
        %4403 = vst.msk [vmem:[%s169 + $0x130] sm:$0xff] %vm2489, %v4196
        %4404 = vst.msk [vmem:[%s169 + $0x138] sm:$0xff] %vm2489, %v4198
        %4405 = vst.msk [vmem:[%s169 + $0x140] sm:$0xff] %vm2489, %v4201
        %4406 = vst.msk [vmem:[%s169 + $0x148] sm:$0xff] %vm2489, %v4203
        %4407 = vst.msk [vmem:[%s169 + $0x150] sm:$0xff] %vm2489, %v4206
        %4408 = vst.msk [vmem:[%s169 + $0x158] sm:$0xff] %vm2489, %v4208
        %4409 = vst.msk [vmem:[%s169 + $0x160] sm:$0xff] %vm2489, %v4211
        %4410 = vst.msk [vmem:[%s169 + $0x168] sm:$0xff] %vm2489, %v4213
        %4411 = vst.msk [vmem:[%s169 + $0x170] sm:$0xff] %vm2489, %v4216
        %4412 = vst.msk [vmem:[%s169 + $0x178] sm:$0xff] %vm2489, %v4218
        %4413 = vst.msk [vmem:[%s169 + $0x180] sm:$0xff] %vm2489, %v4326
        %4414 = vst.msk [vmem:[%s169 + $0x188] sm:$0xff] %vm2489, %v4328
        %4415 = vst.msk [vmem:[%s169 + $0x190] sm:$0xff] %vm2489, %v4331
        %4416 = vst.msk [vmem:[%s169 + $0x198] sm:$0xff] %vm2489, %v4333
        %4417 = vst.msk [vmem:[%s169 + $0x1a0] sm:$0xff] %vm2489, %v4336
        %4418 = vst.msk [vmem:[%s169 + $0x1a8] sm:$0xff] %vm2489, %v4338
        %4419 = vst.msk [vmem:[%s169 + $0x1b0] sm:$0xff] %vm2489, %v4341
        %4420 = vst.msk [vmem:[%s169 + $0x1b8] sm:$0xff] %vm2489, %v4343
        %4421 = vst.msk [vmem:[%s169 + $0x1c0] sm:$0xff] %vm2489, %v4346
        %4422 = vst.msk [vmem:[%s169 + $0x1c8] sm:$0xff] %vm2489, %v4348
        %4423 = vst.msk [vmem:[%s169 + $0x1d0] sm:$0xff] %vm2489, %v4351
        %4424 = vst.msk [vmem:[%s169 + $0x1d8] sm:$0xff] %vm2489, %v4353
        %4425 = vst.msk [vmem:[%s169 + $0x1e0] sm:$0xff] %vm2489, %v4356
        %4426 = vst.msk [vmem:[%s169 + $0x1e8] sm:$0xff] %vm2489, %v4358
        %4427 = vst.msk [vmem:[%s169 + $0x1f0] sm:$0xff] %vm2489, %v4361
        %4428 = vst.msk [vmem:[%s169 + $0x1f8] sm:$0xff] %vm2489, %v4363
        %s4429 = smul.u32 4, %s16
        %p4430 = scmp.lt.s32.totalorder %s4429, 7
        %s4431 = scalar_select %p4430, %s4429, 7
        %s4432 = smul.addr %s4431, 16
        %s4433 = smul.addr %s4432, 8
        %s4434 = scalar_lea.vmem %s2, %s4433
        // Predicated region
        $region33: #{tpu_custom_call.1} parent=27 // pred_check
          %p4435 = pneg %p81
        $region34: #{tpu_custom_call.1} parent=27 // pred_check_branch
          %4437 = sbr.rel (%p4435) target = $region36
        $region35: #{tpu_custom_call.1} parent=27 // pred_region
          %s4438 = smul.u32 4, %s16
        $region36: #{tpu_custom_call.1} parent=27 // pred_fallthru
          _
      $region28: #{tpu_custom_call.1} parent=5 // pred_fallthru
        _
      %p4439 = scmp.le.s32.totalorder 2, %s11
      // Predicated region
      $region37: #{tpu_custom_call.1} parent=5 // pred_check
        %p4440 = pneg %p4439
      $region38: #{tpu_custom_call.1} parent=5 // pred_check_branch
        %4442 = sbr.rel (%p4440) target = $region40
      $region39: #{tpu_custom_call.1} parent=5 // pred_region
        %s4443 = ssub.s32 %s11, 2
        // Predicated region
        $region41: #{tpu_custom_call.1} parent=39 // pred_check
          %p4444 = pneg %p87
        $region42: #{tpu_custom_call.1} parent=39 // pred_check_branch
          %4446 = sbr.rel (%p4444) target = $region44
        $region43: #{tpu_custom_call.1} parent=39 // pred_region
          %s4447 = smul.u32 4, %s17
          %p4448 = scmp.lt.s32.totalorder %s4447, 7
          %s4449 = scalar_select %p4448, %s4447, 7
          %s4450 = smul.addr %s4449, 16
          %s4451 = smul.addr %s4450, 8
          %s4452 = scalar_lea.vmem %s2, %s4451
        $region44: #{tpu_custom_call.1} parent=39 // pred_fallthru
          _
      $region40: #{tpu_custom_call.1} parent=5 // pred_fallthru
        _
    $region6: #{tpu_custom_call.1} parent=1 // loop_footer
      %s15 = sadd.s32 1, %s11
    $region7: #{tpu_custom_call.1} parent=1 // loop_footer_branch
      %10 = sbr.rel target = $region3
    $region8: #{tpu_custom_call.1} parent=1 // loop_exit
      _
    %4453 = vsyncpa [#allocation3], 1
    %s4454 = scalar_lea.sflag [#allocation3], 1
    %4455 = vsyncpa %s4454, 1

</llo_original>
